<compile_context>
chip_gen: v7x
topology: tpu7x:2x2x1
jax: 0.10.0
libtpu: 0.0.40
codegen_flags: <defaults>
</compile_context>

<pallas_src>
import functools

import jax
import jax.numpy as jnp
from jax.experimental import pallas as pl
from jax.experimental.pallas import tpu as pltpu


def _attention_kernel(x_ref, wq_ref, wk_ref, wv_ref, wp_ref, b_ref, o_ref,
                      *, num_heads: int):
    # x_ref:  (1, N, C)  one batch element per grid step
    # wq_ref/wk_ref/wv_ref: (H, C, Dh)  per-head projection weights (scale folded into Wq)
    # wp_ref: (H, Dh, C)  per-head output-projection weights
    # b_ref:  (1, C)
    # o_ref:  (1, N, C)
    x = x_ref[0]                                   # (N, C)
    N, C = x.shape
    H = num_heads

    # Cheap vreg replication so every contraction below is a leading-batch-dim
    # batched matmul (no reshapes/transposes of activations inside the kernel).
    xh = jnp.broadcast_to(x, (H, N, C))            # (H, N, C)

    f32 = jnp.float32
    q = jnp.einsum('hnc,hcd->hnd', xh, wq_ref[...], preferred_element_type=f32)
    k = jnp.einsum('hnc,hcd->hnd', xh, wk_ref[...], preferred_element_type=f32)
    v = jnp.einsum('hnc,hcd->hnd', xh, wv_ref[...], preferred_element_type=f32)

    # Scores: contract the last dim of both operands -> no explicit k transpose.
    s = jnp.einsum('hqd,hkd->hqk', q, k, preferred_element_type=f32)   # (H, N, N)

    # Softmax in f32 (VPU/EUP math stays f32; exact normalization).
    s = s - jnp.max(s, axis=-1, keepdims=True)
    p = jnp.exp(s)
    p = p / jnp.sum(p, axis=-1, keepdims=True)

    # Attention-weighted values, still head-batched.
    o = jnp.einsum('hqk,hkd->hqd', p, v, preferred_element_type=f32)   # (H, N, Dh)

    # Per-head partial output projections reduced over heads: replaces the
    # concat + (N, C) x (C, C) matmul without any VMEM scratch round-trip.
    y = jnp.einsum('hnd,hdc->hnc', o, wp_ref[...], preferred_element_type=f32)
    out = jnp.sum(y, axis=0) + b_ref[...]          # (N, C)
    o_ref[0] = out.astype(o_ref.dtype)


def attention_pallas(x, w_qkv, w_proj, b_proj, *, num_heads: int):
    """x: (B, N, C); w_qkv: (C, 3C); w_proj: (C, C); b_proj: (C,)."""
    B, N, C = x.shape
    head_dim = C // num_heads
    scale = head_dim ** (-0.5)

    # --- one-time parameter prep (conceptually done at weight-load time) ---
    # Split W_qkv into per-head (H, C, Dh) operands, fold the softmax scale into
    # the query weights, reshape W_proj to (H, Dh, C).
    def _per_head(w2d):  # (C, C) -> (H, C, Dh)
        return w2d.reshape(C, num_heads, head_dim).transpose(1, 0, 2)

    w_q = _per_head(w_qkv[:, 0 * C:1 * C] * scale)
    w_k = _per_head(w_qkv[:, 1 * C:2 * C])
    w_v = _per_head(w_qkv[:, 2 * C:3 * C])
    w_p = w_proj.reshape(num_heads, head_dim, C)
    b_p = b_proj.reshape(1, C)

    kernel = functools.partial(_attention_kernel, num_heads=num_heads)

    cost = pl.CostEstimate(
        flops=B * (8 * N * C * C + 4 * N * N * C),
        transcendentals=B * num_heads * N * N,
        bytes_accessed=4 * (2 * B * N * C + 4 * C * C + C),
    )

    out = pl.pallas_call(
        kernel,
        out_shape=jax.ShapeDtypeStruct((B, N, C), x.dtype),
        grid_spec=pltpu.PrefetchScalarGridSpec(
            num_scalar_prefetch=0,
            grid=(B,),                                        # one batch per step
            in_specs=[
                pl.BlockSpec((1, N, C), lambda b: (b, 0, 0)),                 # x
                pl.BlockSpec((num_heads, C, head_dim), lambda b: (0, 0, 0)),  # Wq (scaled)
                pl.BlockSpec((num_heads, C, head_dim), lambda b: (0, 0, 0)),  # Wk
                pl.BlockSpec((num_heads, C, head_dim), lambda b: (0, 0, 0)),  # Wv
                pl.BlockSpec((num_heads, head_dim, C), lambda b: (0, 0, 0)),  # Wproj
                pl.BlockSpec((1, C), lambda b: (0, 0)),                       # bproj
            ],
            out_specs=pl.BlockSpec((1, N, C), lambda b: (b, 0, 0)),
        ),
        compiler_params=pltpu.CompilerParams(
            dimension_semantics=("parallel",),          # both TCs on v7x get batches
            vmem_limit_bytes=32 * 1024 * 1024,
        ),
        cost_estimate=cost,
    )(x, w_q, w_k, w_v, w_p, b_p)

    return out


def attention_reference(x, w_qkv, w_proj, b_proj, *, num_heads: int):
    """Pure-JAX reference mirroring the PyTorch forward (mask=None, dropout=0)."""
    B, N, C = x.shape
    head_dim = C // num_heads
    scale = head_dim ** (-0.5)
    qkv = jnp.einsum('bnc,ck->bnk', x, w_qkv, precision='highest')        # (B, N, 3C)
    qkv = qkv.reshape(B, N, 3, num_heads, head_dim).transpose(2, 0, 3, 1, 4)
    q, k, v = qkv[0], qkv[1], qkv[2]                                      # (B, H, N, Dh)
    attn = jnp.einsum('bhnd,bhmd->bhnm', q, k, precision='highest') * scale
    attn = jax.nn.softmax(attn, axis=-1)
    out = jnp.einsum('bhnm,bhmd->bhnd', attn, v, precision='highest')     # (B, H, N, Dh)
    out = out.transpose(0, 2, 1, 3).reshape(B, N, C)
    return jnp.einsum('bnc,cd->bnd', out, w_proj, precision='highest') + b_proj


if __name__ == "__main__":
    # Small shapes consistent with the module: dim=32, num_heads=8 -> head_dim=4.
    B, N, C = 2, 8, 32
    num_heads = 8

    key = jax.random.PRNGKey(0)
    kx, kqkv, kproj, kb = jax.random.split(key, 4)

    x = jax.random.normal(kx, (B, N, C), dtype=jnp.float32)
    # Deterministic parameter init (synthetic; shapes match nn.Linear weights,
    # stored transposed so the kernel computes x @ W).
    w_qkv = jax.random.normal(kqkv, (C, 3 * C), dtype=jnp.float32) * (1.0 / jnp.sqrt(C))
    w_proj = jax.random.normal(kproj, (C, C), dtype=jnp.float32) * (1.0 / jnp.sqrt(C))
    b_proj = jax.random.normal(kb, (C,), dtype=jnp.float32) * 0.01

    out = attention_pallas(x, w_qkv, w_proj, b_proj, num_heads=num_heads)
    out = jax.block_until_ready(out)

    ref = attention_reference(x, w_qkv, w_proj, b_proj, num_heads=num_heads)
    assert out.shape == (B, N, C)
    # Exact softmax normalization (no approx reciprocal) -> tolerance tightened
    # vs. the previous version; remaining slack covers MXU f32 multi-pass rounding.
    assert jnp.allclose(out, ref, atol=1e-2, rtol=1e-2), "mismatch vs reference"

    print("KERNEL_OK")
</pallas_src>

<mosaic_0001>
module attributes {stable_mosaic.version = 11 : i64} {
  func.func @_attention_kernel(%arg0: i32, %arg1: memref<1x8x32xf32, #tpu.memory_space<vmem>>, %arg2: memref<8x32x4xf32, #tpu.memory_space<vmem>>, %arg3: memref<8x32x4xf32, #tpu.memory_space<vmem>>, %arg4: memref<8x32x4xf32, #tpu.memory_space<vmem>>, %arg5: memref<8x4x32xf32, #tpu.memory_space<vmem>>, %arg6: memref<1x32xf32, #tpu.memory_space<vmem>>, %arg7: memref<1x8x32xf32, #tpu.memory_space<vmem>>) attributes {dimension_semantics = [#tpu.dimension_semantics<parallel>], iteration_bounds = array<i64: 2>, scalar_prefetch = 0 : i64, scratch_operands = 0 : i64, tpu.core_type = #tpu.core_type<tc>, window_params = [{transform_indices = @transform_0, window_bounds = array<i64: 1, 8, 32>}, {pipeline_mode = #tpu.pipeline_mode<synchronous>, transform_indices = @transform_1, window_bounds = array<i64: 8, 32, 4>}, {pipeline_mode = #tpu.pipeline_mode<synchronous>, transform_indices = @transform_2, window_bounds = array<i64: 8, 32, 4>}, {pipeline_mode = #tpu.pipeline_mode<synchronous>, transform_indices = @transform_3, window_bounds = array<i64: 8, 32, 4>}, {pipeline_mode = #tpu.pipeline_mode<synchronous>, transform_indices = @transform_4, window_bounds = array<i64: 8, 4, 32>}, {pipeline_mode = #tpu.pipeline_mode<synchronous>, transform_indices = @transform_5, window_bounds = array<i64: 1, 32>}, {transform_indices = @transform_6, window_bounds = array<i64: 1, 8, 32>}]} {
    %c0 = arith.constant 0 : index
    %c0_0 = arith.constant 0 : index
    %c0_1 = arith.constant 0 : index
    %0 = vector.load %arg1[%c0, %c0_0, %c0_1] : memref<1x8x32xf32, #tpu.memory_space<vmem>>, vector<1x8x32xf32>
    %1 = vector.shape_cast %0 : vector<1x8x32xf32> to vector<8x32xf32>
    %2 = vector.shape_cast %1 : vector<8x32xf32> to vector<1x8x32xf32>
    %3 = vector.broadcast %2 : vector<1x8x32xf32> to vector<8x8x32xf32>
    %c0_2 = arith.constant 0 : index
    %c0_3 = arith.constant 0 : index
    %c0_4 = arith.constant 0 : index
    %4 = vector.load %arg2[%c0_2, %c0_3, %c0_4] : memref<8x32x4xf32, #tpu.memory_space<vmem>>, vector<8x32x4xf32>
    "tpu.trace_start"() <{level = 10 : i32, message = "hnc,hcd->hnd"}> : () -> ()
    %cst = arith.constant dense<0.000000e+00> : vector<8x8x4xf32>
    %5 = tpu.matmul %3, %4, %cst {dimension_numbers = #tpu.dot_dimension_numbers<[2], [1], [1], [2], [0, 0, 0, 1, 1, 2], [0], [0]>} : vector<8x8x32xf32>, vector<8x32x4xf32>, vector<8x8x4xf32> -> vector<8x8x4xf32>
    "tpu.trace_stop"() : () -> ()
    %c0_5 = arith.constant 0 : index
    %c0_6 = arith.constant 0 : index
    %c0_7 = arith.constant 0 : index
    %6 = vector.load %arg3[%c0_5, %c0_6, %c0_7] : memref<8x32x4xf32, #tpu.memory_space<vmem>>, vector<8x32x4xf32>
    "tpu.trace_start"() <{level = 10 : i32, message = "hnc,hcd->hnd"}> : () -> ()
    %cst_8 = arith.constant dense<0.000000e+00> : vector<8x8x4xf32>
    %7 = tpu.matmul %3, %6, %cst_8 {dimension_numbers = #tpu.dot_dimension_numbers<[2], [1], [1], [2], [0, 0, 0, 1, 1, 2], [0], [0]>} : vector<8x8x32xf32>, vector<8x32x4xf32>, vector<8x8x4xf32> -> vector<8x8x4xf32>
    "tpu.trace_stop"() : () -> ()
    %c0_9 = arith.constant 0 : index
    %c0_10 = arith.constant 0 : index
    %c0_11 = arith.constant 0 : index
    %8 = vector.load %arg4[%c0_9, %c0_10, %c0_11] : memref<8x32x4xf32, #tpu.memory_space<vmem>>, vector<8x32x4xf32>
    "tpu.trace_start"() <{level = 10 : i32, message = "hnc,hcd->hnd"}> : () -> ()
    %cst_12 = arith.constant dense<0.000000e+00> : vector<8x8x4xf32>
    %9 = tpu.matmul %3, %8, %cst_12 {dimension_numbers = #tpu.dot_dimension_numbers<[2], [1], [1], [2], [0, 0, 0, 1, 1, 2], [0], [0]>} : vector<8x8x32xf32>, vector<8x32x4xf32>, vector<8x8x4xf32> -> vector<8x8x4xf32>
    "tpu.trace_stop"() : () -> ()
    "tpu.trace_start"() <{level = 10 : i32, message = "hqd,hkd->hqk"}> : () -> ()
    %cst_13 = arith.constant dense<0.000000e+00> : vector<8x8x8xf32>
    %10 = tpu.matmul %5, %7, %cst_13 {dimension_numbers = #tpu.dot_dimension_numbers<[2], [2], [1], [1], [0, 0, 0, 1, 1, 1], [0], [0]>} : vector<8x8x4xf32>, vector<8x8x4xf32>, vector<8x8x8xf32> -> vector<8x8x8xf32>
    "tpu.trace_stop"() : () -> ()
    %cst_14 = arith.constant dense<0xFF800000> : vector<8x8xf32>
    %11 = vector.multi_reduction <maximumf>, %10, %cst_14 [2] : vector<8x8x8xf32> to vector<8x8xf32>
    %12 = vector.shape_cast %11 : vector<8x8xf32> to vector<8x8x1xf32>
    %13 = vector.broadcast %12 : vector<8x8x1xf32> to vector<8x8x8xf32>
    %14 = arith.subf %10, %13 : vector<8x8x8xf32>
    %15 = math.exp %14 : vector<8x8x8xf32>
    %cst_15 = arith.constant dense<0.000000e+00> : vector<8x8xf32>
    %16 = vector.multi_reduction <add>, %15, %cst_15 [2] : vector<8x8x8xf32> to vector<8x8xf32>
    %17 = vector.shape_cast %16 : vector<8x8xf32> to vector<8x8x1xf32>
    %18 = vector.broadcast %17 : vector<8x8x1xf32> to vector<8x8x8xf32>
    %19 = arith.divf %15, %18 : vector<8x8x8xf32>
    "tpu.trace_start"() <{level = 10 : i32, message = "hqk,hkd->hqd"}> : () -> ()
    %cst_16 = arith.constant dense<0.000000e+00> : vector<8x8x4xf32>
    %20 = tpu.matmul %19, %9, %cst_16 {dimension_numbers = #tpu.dot_dimension_numbers<[2], [1], [1], [2], [0, 0, 0, 1, 1, 2], [0], [0]>} : vector<8x8x8xf32>, vector<8x8x4xf32>, vector<8x8x4xf32> -> vector<8x8x4xf32>
    "tpu.trace_stop"() : () -> ()
    %c0_17 = arith.constant 0 : index
    %c0_18 = arith.constant 0 : index
    %c0_19 = arith.constant 0 : index
    %21 = vector.load %arg5[%c0_17, %c0_18, %c0_19] : memref<8x4x32xf32, #tpu.memory_space<vmem>>, vector<8x4x32xf32>
    "tpu.trace_start"() <{level = 10 : i32, message = "hnd,hdc->hnc"}> : () -> ()
    %cst_20 = arith.constant dense<0.000000e+00> : vector<8x8x32xf32>
    %22 = tpu.matmul %20, %21, %cst_20 {dimension_numbers = #tpu.dot_dimension_numbers<[2], [1], [1], [2], [0, 0, 0, 1, 1, 2], [0], [0]>} : vector<8x8x4xf32>, vector<8x4x32xf32>, vector<8x8x32xf32> -> vector<8x8x32xf32>
    "tpu.trace_stop"() : () -> ()
    %cst_21 = arith.constant dense<0.000000e+00> : vector<8x32xf32>
    %23 = vector.multi_reduction <add>, %22, %cst_21 [0] : vector<8x8x32xf32> to vector<8x32xf32>
    %c0_22 = arith.constant 0 : index
    %c0_23 = arith.constant 0 : index
    %24 = vector.load %arg6[%c0_22, %c0_23] : memref<1x32xf32, #tpu.memory_space<vmem>>, vector<1x32xf32>
    %25 = vector.broadcast %24 : vector<1x32xf32> to vector<8x32xf32>
    %26 = arith.addf %23, %25 : vector<8x32xf32>
    %c0_24 = arith.constant 0 : index
    %c0_25 = arith.constant 0 : index
    %c0_26 = arith.constant 0 : index
    %27 = vector.load %arg7[%c0_24, %c0_25, %c0_26] : memref<1x8x32xf32, #tpu.memory_space<vmem>>, vector<1x8x32xf32>
    %28 = vector.shape_cast %27 : vector<1x8x32xf32> to vector<8x32xf32>
    %29 = vector.shape_cast %26 : vector<8x32xf32> to vector<1x8x32xf32>
    tpu.vector_store %arg7[%c0_24, %c0_25, %c0_26], %29 {strides = array<i32>} : memref<1x8x32xf32, #tpu.memory_space<vmem>>, vector<1x8x32xf32>,
    return
  }
  func.func @transform_0(%arg0: i32) -> (i32, i32, i32) {
    %c0_i32 = arith.constant 0 : i32
    %c0_i32_0 = arith.constant 0 : i32
    %c0_i32_1 = arith.constant 0 : i32
    return %arg0, %c0_i32, %c0_i32_0 : i32, i32, i32
  }
  func.func @transform_1(%arg0: i32) -> (i32, i32, i32) {
    %c0_i32 = arith.constant 0 : i32
    %c0_i32_0 = arith.constant 0 : i32
    %c0_i32_1 = arith.constant 0 : i32
    %c0_i32_2 = arith.constant 0 : i32
    return %c0_i32, %c0_i32_0, %c0_i32_1 : i32, i32, i32
  }
  func.func @transform_2(%arg0: i32) -> (i32, i32, i32) {
    %c0_i32 = arith.constant 0 : i32
    %c0_i32_0 = arith.constant 0 : i32
    %c0_i32_1 = arith.constant 0 : i32
    %c0_i32_2 = arith.constant 0 : i32
    return %c0_i32, %c0_i32_0, %c0_i32_1 : i32, i32, i32
  }
  func.func @transform_3(%arg0: i32) -> (i32, i32, i32) {
    %c0_i32 = arith.constant 0 : i32
    %c0_i32_0 = arith.constant 0 : i32
    %c0_i32_1 = arith.constant 0 : i32
    %c0_i32_2 = arith.constant 0 : i32
    return %c0_i32, %c0_i32_0, %c0_i32_1 : i32, i32, i32
  }
  func.func @transform_4(%arg0: i32) -> (i32, i32, i32) {
    %c0_i32 = arith.constant 0 : i32
    %c0_i32_0 = arith.constant 0 : i32
    %c0_i32_1 = arith.constant 0 : i32
    %c0_i32_2 = arith.constant 0 : i32
    return %c0_i32, %c0_i32_0, %c0_i32_1 : i32, i32, i32
  }
  func.func @transform_5(%arg0: i32) -> (i32, i32) {
    %c0_i32 = arith.constant 0 : i32
    %c0_i32_0 = arith.constant 0 : i32
    %c0_i32_1 = arith.constant 0 : i32
    return %c0_i32, %c0_i32_0 : i32, i32
  }
  func.func @transform_6(%arg0: i32) -> (i32, i32, i32) {
    %c0_i32 = arith.constant 0 : i32
    %c0_i32_0 = arith.constant 0 : i32
    %c0_i32_1 = arith.constant 0 : i32
    return %arg0, %c0_i32, %c0_i32_0 : i32, i32, i32
  }
}

</mosaic_0001>

<llo_original>
// kernel: tpu_custom_call.1
$region0: #{tpu_custom_call.1}
  #allocation0 [shape = 'u32[]', space=smem, size = 0x4, offset = 0x4, fixed_abs, tag = 'smem constant byte address 0x4 - core index']
  #allocation1 [shape = 'u32[144,128]{1,0:T(1,128)}', space=vmem, size = 0x12000, scoped, tag = 'internal scratch']
  %s0 = inlined_call_operand.vmem [shape: f32[2,8,32], index: 0, kind: input, shape index: {}]
  %s1 = inlined_call_operand.vmem [shape: f32[8,32,4], index: 1, kind: input, shape index: {}]
  %s2 = inlined_call_operand.vmem [shape: f32[8,32,4], index: 2, kind: input, shape index: {}]
  %s3 = inlined_call_operand.vmem [shape: f32[8,32,4], index: 3, kind: input, shape index: {}]
  %s4 = inlined_call_operand.vmem [shape: f32[8,4,32], index: 4, kind: input, shape index: {}]
  %s5 = inlined_call_operand.vmem [shape: f32[1,32], index: 5, kind: input, shape index: {}]
  %s6 = inlined_call_operand.hbm [shape: f32[2,8,32], index: 6, kind: output, shape index: {}]
  %s7 = sld [smem:[#allocation0]]
  $region57: #{tpu_custom_call.1} parent=0
    _
  %s9 = ssub.s32 1, %s7
  %s10 = scalar_select 0, %s9, %s7
  $region1: #{tpu_custom_call.1} parent=0
    #allocation2 [shape = 'u8[8192]{0}', space=vmem, size = 0x2000, scoped, tag = 'output window, operand 0']
    #allocation3 [shape = 's32[2]{0}', space=sflag, size = 0x8, scoped, tag = 'scoped memory for tpu_custom_call.1']
    %11 = vsyncpa [#allocation3], 0
    %s12 = scalar_lea.sflag [#allocation3], 1
    %13 = vsyncpa %s12, 0
    loop: start=0, step=1, limit=4
    $region2: #{tpu_custom_call.1} parent=1 // loop_pre_header
      _
    $region3: #{tpu_custom_call.1} parent=1 // loop_header
      %s15 = sphi 0, %s19
      %p16 = scmp.ge.s32.totalorder %s15, 4
      %s25 = sphi 0, %s27
      %s28 = sphi 0, %s25
      %s29 = sphi 0, %s28
      %s45 = sphi 0, %s29
      %s49 = sphi 0, %s49
      %s51 = sphi 0, %s49
      %s52 = sphi 0, %s51
      %s66 = sphi 0, %s52
      %s70 = sphi 0, %s70
      %s72 = sphi 0, %s70
      %s73 = sphi 0, %s72
      %s87 = sphi 0, %s73
      %s91 = sphi 0, %s91
      %s93 = sphi 0, %s91
      %s94 = sphi 0, %s93
      %s108 = sphi 0, %s94
      %s112 = sphi 0, %s112
      %s114 = sphi 0, %s112
      %s115 = sphi 0, %s114
      %s129 = sphi 0, %s115
      %s133 = sphi 0, %s133
      %s135 = sphi 0, %s133
      %s136 = sphi 0, %s135
      %s150 = sphi 0, %s136
      %s156 = sphi 0, %s158
      %s159 = sphi 0, %s156
      %s160 = sphi 0, %s159
      %s176 = sphi 0, %s160
    $region4: #{tpu_custom_call.1} parent=1 // loop_header_branch
      %18 = sbr.rel (%p16) target = $region8
    $region5: #{tpu_custom_call.1} parent=1 // loop_body
      %s20 = ssub.s32 %s15, 1
      %s21 = ssub.s32 %s15, 2
      %s22 = sadd.s32 %s15, 1
      %s23 = ssub.s32 %s15, %s22
      %p24 = scmp.eq.s32.totalorder %s23, 0
      %s26 = sadd.s32 %s25, 1
      %s27 = scalar_select %p24, %s25, %s26
      %p30 = pneg %p24
      %p31 = scmp.eq.s32.totalorder %s15, 1
      %p32 = por %p30, %p31
      %p33 = scmp.ne.s32.totalorder %s25, %s28
      %p34 = scmp.eq.s32.totalorder %s15, 0
      %p35 = por %p33, %p34
      %p36 = scmp.ne.s32.totalorder %s25, %s28
      %p37 = scmp.eq.s32.totalorder %s20, 1
      %p38 = por %p36, %p37
      %p39 = scmp.ne.s32.totalorder %s28, %s29
      %p40 = scmp.eq.s32.totalorder %s20, 0
      %p41 = por %p39, %p40
      %p42 = scmp.ne.s32.totalorder %s28, %s29
      %p43 = scmp.eq.s32.totalorder %s21, 1
      %p44 = por %p42, %p43
      %p46 = scmp.ne.s32.totalorder %s29, %s45
      %p47 = scmp.eq.s32.totalorder %s21, 0
      %p48 = por %p46, %p47
      %s50 = sadd.s32 %s49, 1
      %p53 = scmp.eq.s32.totalorder %s15, 1
      %p54 = scmp.ne.s32.totalorder %s49, %s51
      %p55 = scmp.eq.s32.totalorder %s15, 0
      %p56 = por %p54, %p55
      %p57 = scmp.ne.s32.totalorder %s49, %s51
      %p58 = scmp.eq.s32.totalorder %s20, 1
      %p59 = por %p57, %p58
      %p60 = scmp.ne.s32.totalorder %s51, %s52
      %p61 = scmp.eq.s32.totalorder %s20, 0
      %p62 = por %p60, %p61
      %p63 = scmp.ne.s32.totalorder %s51, %s52
      %p64 = scmp.eq.s32.totalorder %s21, 1
      %p65 = por %p63, %p64
      %p67 = scmp.ne.s32.totalorder %s52, %s66
      %p68 = scmp.eq.s32.totalorder %s21, 0
      %p69 = por %p67, %p68
      %s71 = sadd.s32 %s70, 1
      %p74 = scmp.eq.s32.totalorder %s15, 1
      %p75 = scmp.ne.s32.totalorder %s70, %s72
      %p76 = scmp.eq.s32.totalorder %s15, 0
      %p77 = por %p75, %p76
      %p78 = scmp.ne.s32.totalorder %s70, %s72
      %p79 = scmp.eq.s32.totalorder %s20, 1
      %p80 = por %p78, %p79
      %p81 = scmp.ne.s32.totalorder %s72, %s73
      %p82 = scmp.eq.s32.totalorder %s20, 0
      %p83 = por %p81, %p82
      %p84 = scmp.ne.s32.totalorder %s72, %s73
      %p85 = scmp.eq.s32.totalorder %s21, 1
      %p86 = por %p84, %p85
      %p88 = scmp.ne.s32.totalorder %s73, %s87
      %p89 = scmp.eq.s32.totalorder %s21, 0
      %p90 = por %p88, %p89
      %s92 = sadd.s32 %s91, 1
      %p95 = scmp.eq.s32.totalorder %s15, 1
      %p96 = scmp.ne.s32.totalorder %s91, %s93
      %p97 = scmp.eq.s32.totalorder %s15, 0
      %p98 = por %p96, %p97
      %p99 = scmp.ne.s32.totalorder %s91, %s93
      %p100 = scmp.eq.s32.totalorder %s20, 1
      %p101 = por %p99, %p100
      %p102 = scmp.ne.s32.totalorder %s93, %s94
      %p103 = scmp.eq.s32.totalorder %s20, 0
      %p104 = por %p102, %p103
      %p105 = scmp.ne.s32.totalorder %s93, %s94
      %p106 = scmp.eq.s32.totalorder %s21, 1
      %p107 = por %p105, %p106
      %p109 = scmp.ne.s32.totalorder %s94, %s108
      %p110 = scmp.eq.s32.totalorder %s21, 0
      %p111 = por %p109, %p110
      %s113 = sadd.s32 %s112, 1
      %p116 = scmp.eq.s32.totalorder %s15, 1
      %p117 = scmp.ne.s32.totalorder %s112, %s114
      %p118 = scmp.eq.s32.totalorder %s15, 0
      %p119 = por %p117, %p118
      %p120 = scmp.ne.s32.totalorder %s112, %s114
      %p121 = scmp.eq.s32.totalorder %s20, 1
      %p122 = por %p120, %p121
      %p123 = scmp.ne.s32.totalorder %s114, %s115
      %p124 = scmp.eq.s32.totalorder %s20, 0
      %p125 = por %p123, %p124
      %p126 = scmp.ne.s32.totalorder %s114, %s115
      %p127 = scmp.eq.s32.totalorder %s21, 1
      %p128 = por %p126, %p127
      %p130 = scmp.ne.s32.totalorder %s115, %s129
      %p131 = scmp.eq.s32.totalorder %s21, 0
      %p132 = por %p130, %p131
      %s134 = sadd.s32 %s133, 1
      %p137 = scmp.eq.s32.totalorder %s15, 1
      %p138 = scmp.ne.s32.totalorder %s133, %s135
      %p139 = scmp.eq.s32.totalorder %s15, 0
      %p140 = por %p138, %p139
      %p141 = scmp.ne.s32.totalorder %s133, %s135
      %p142 = scmp.eq.s32.totalorder %s20, 1
      %p143 = por %p141, %p142
      %p144 = scmp.ne.s32.totalorder %s135, %s136
      %p145 = scmp.eq.s32.totalorder %s20, 0
      %p146 = por %p144, %p145
      %p147 = scmp.ne.s32.totalorder %s135, %s136
      %p148 = scmp.eq.s32.totalorder %s21, 1
      %p149 = por %p147, %p148
      %p151 = scmp.ne.s32.totalorder %s136, %s150
      %p152 = scmp.eq.s32.totalorder %s21, 0
      %p153 = por %p151, %p152
      %s154 = ssub.s32 %s15, %s22
      %p155 = scmp.eq.s32.totalorder %s154, 0
      %s157 = sadd.s32 %s156, 1
      %s158 = scalar_select %p155, %s156, %s157
      %p161 = pneg %p155
      %p162 = scmp.eq.s32.totalorder %s15, 1
      %p163 = por %p161, %p162
      %p164 = scmp.ne.s32.totalorder %s156, %s159
      %p165 = scmp.eq.s32.totalorder %s15, 0
      %p166 = por %p164, %p165
      %p167 = scmp.ne.s32.totalorder %s156, %s159
      %p168 = scmp.eq.s32.totalorder %s20, 1
      %p169 = por %p167, %p168
      %p170 = scmp.ne.s32.totalorder %s159, %s160
      %p171 = scmp.eq.s32.totalorder %s20, 0
      %p172 = por %p170, %p171
      %p173 = scmp.ne.s32.totalorder %s159, %s160
      %p174 = scmp.eq.s32.totalorder %s21, 1
      %p175 = por %p173, %p174
      %p177 = scmp.ne.s32.totalorder %s160, %s176
      %p178 = scmp.eq.s32.totalorder %s21, 0
      %p179 = por %p177, %p178
      %p180 = scmp.le.s32.totalorder 1, %s15
      %p181 = scmp.lt.s32.totalorder %s15, 3
      %p182 = pnand %p180, %p181
      %p183 = pneg %p182
      // Predicated region
      $region9: #{tpu_custom_call.1} parent=5 // pred_check
        _
      $region10: #{tpu_custom_call.1} parent=5 // pred_check_branch
        %185 = sbr.rel (%p182) target = $region12
      $region11: #{tpu_custom_call.1} parent=5 // pred_region
        %s186 = ssub.s32 %s15, 1
        // Predicated region
        $region13: #{tpu_custom_call.1} parent=11 // pred_check
          %p187 = pneg %p62
        $region14: #{tpu_custom_call.1} parent=11 // pred_check_branch
          %189 = sbr.rel (%p187) target = $region16
        $region15: #{tpu_custom_call.1} parent=11 // pred_region
          _
        $region16: #{tpu_custom_call.1} parent=11 // pred_fallthru
          _
        // Predicated region
        $region17: #{tpu_custom_call.1} parent=11 // pred_check
          %p190 = pneg %p83
        $region18: #{tpu_custom_call.1} parent=11 // pred_check_branch
          %192 = sbr.rel (%p190) target = $region20
        $region19: #{tpu_custom_call.1} parent=11 // pred_region
          _
        $region20: #{tpu_custom_call.1} parent=11 // pred_fallthru
          _
        // Predicated region
        $region21: #{tpu_custom_call.1} parent=11 // pred_check
          %p193 = pneg %p104
        $region22: #{tpu_custom_call.1} parent=11 // pred_check_branch
          %195 = sbr.rel (%p193) target = $region24
        $region23: #{tpu_custom_call.1} parent=11 // pred_region
          _
        $region24: #{tpu_custom_call.1} parent=11 // pred_fallthru
          _
        // Predicated region
        $region25: #{tpu_custom_call.1} parent=11 // pred_check
          %p196 = pneg %p125
        $region26: #{tpu_custom_call.1} parent=11 // pred_check_branch
          %198 = sbr.rel (%p196) target = $region28
        $region27: #{tpu_custom_call.1} parent=11 // pred_region
          _
        $region28: #{tpu_custom_call.1} parent=11 // pred_fallthru
          _
        // Predicated region
        $region29: #{tpu_custom_call.1} parent=11 // pred_check
          %p199 = pneg %p146
        $region30: #{tpu_custom_call.1} parent=11 // pred_check_branch
          %201 = sbr.rel (%p199) target = $region32
        $region31: #{tpu_custom_call.1} parent=11 // pred_region
          _
        $region32: #{tpu_custom_call.1} parent=11 // pred_fallthru
          _
      $region12: #{tpu_custom_call.1} parent=5 // pred_fallthru
        _
      %p202 = scmp.lt.s32.totalorder %s15, 2
      // Predicated region
      $region33: #{tpu_custom_call.1} parent=5 // pred_check
        %p203 = pneg %p202
      $region34: #{tpu_custom_call.1} parent=5 // pred_check_branch
        %205 = sbr.rel (%p203) target = $region36
      $region35: #{tpu_custom_call.1} parent=5 // pred_region
        // Predicated region
        $region37: #{tpu_custom_call.1} parent=35 // pred_check
          %p206 = pneg %p35
        $region38: #{tpu_custom_call.1} parent=35 // pred_check_branch
          %208 = sbr.rel (%p206) target = $region40
        $region39: #{tpu_custom_call.1} parent=35 // pred_region
          %p209 = scmp.lt.s32.totalorder %s15, 1
          %s210 = scalar_select %p209, %s15, 1
          %s211 = smul.addr %s210, 8
          %s212 = scalar_lea.vmem %s0, %s211
        $region40: #{tpu_custom_call.1} parent=35 // pred_fallthru
          _
      $region36: #{tpu_custom_call.1} parent=5 // pred_fallthru
        _
      %p213 = scmp.le.s32.totalorder 1, %s15
      %p214 = scmp.lt.s32.totalorder %s15, 3
      %p215 = pnand %p213, %p214
      %p216 = pneg %p215
      // Predicated region
      $region41: #{tpu_custom_call.1} parent=5 // pred_check
        _
      $region42: #{tpu_custom_call.1} parent=5 // pred_check_branch
        %218 = sbr.rel (%p215) target = $region44
      $region43: #{tpu_custom_call.1} parent=5 // pred_region
        %s219 = ssub.s32 %s15, 1
        %p220 = scmp.lt.s32.totalorder %s20, 1
        %s221 = scalar_select %p220, %s20, 1
        %s222 = smul.addr %s221, 8
        %s223 = scalar_lea.vmem %s0, %s222
        %p224 = pneg %p41
        %p225 = pneg %p38
        %p226 = pneg %p62
        %p227 = pneg %p59
        %p228 = pneg %p83
        %p229 = pneg %p80
        %p230 = pneg %p104
        %p231 = pneg %p101
        %p232 = pneg %p125
        %p233 = pneg %p122
        %p234 = pneg %p146
        %p235 = pneg %p143
        %p236 = pneg %p172
        %p237 = pneg %p169
        %s238 = sand.u32 %s159, 1
        %s239 = scalar_lea.sflag [#allocation3], %s238
        %s240 = sand.u32 %s159, 1
        %s241 = smul.addr %s240, 8
        %s242 = scalar_lea.vmem [#allocation2], %s241
        %p243 = scmp.lt.s32.totalorder %s20, 1
        %s244 = scalar_select %p243, %s20, 1
        %s245 = smul.addr %s244, 8
        %s246 = scalar_lea.vmem %s0, %s245
        %v247 = vld [vmem:[%s246] sm:$0xff]
        %v248 = vld [vmem:[%s1] sm:$0xff]
        %v249 = vld [vmem:[%s1 + $0x8] sm:$0xff]
        %v250 = vld [vmem:[%s1 + $0x10] sm:$0xff]
        %v251 = vld [vmem:[%s1 + $0x18] sm:$0xff]
        %v252 = vld [vmem:[%s1 + $0x20] sm:$0xff]
        %v253 = vld [vmem:[%s1 + $0x28] sm:$0xff]
        %v254 = vld [vmem:[%s1 + $0x30] sm:$0xff]
        %v255 = vld [vmem:[%s1 + $0x38] sm:$0xff]
        %v256 = vld [vmem:[%s1 + $0x40] sm:$0xff]
        %v257 = vld [vmem:[%s1 + $0x48] sm:$0xff]
        %v258 = vld [vmem:[%s1 + $0x50] sm:$0xff]
        %v259 = vld [vmem:[%s1 + $0x58] sm:$0xff]
        %v260 = vld [vmem:[%s1 + $0x60] sm:$0xff]
        %v261 = vld [vmem:[%s1 + $0x68] sm:$0xff]
        %v262 = vld [vmem:[%s1 + $0x70] sm:$0xff]
        %v263 = vld [vmem:[%s1 + $0x78] sm:$0xff]
        %v264 = vld [vmem:[%s1 + $0x80] sm:$0xff]
        %v265 = vld [vmem:[%s1 + $0x88] sm:$0xff]
        %v266 = vld [vmem:[%s1 + $0x90] sm:$0xff]
        %v267 = vld [vmem:[%s1 + $0x98] sm:$0xff]
        %v268 = vld [vmem:[%s1 + $0xa0] sm:$0xff]
        %v269 = vld [vmem:[%s1 + $0xa8] sm:$0xff]
        %v270 = vld [vmem:[%s1 + $0xb0] sm:$0xff]
        %v271 = vld [vmem:[%s1 + $0xb8] sm:$0xff]
        %v272 = vld [vmem:[%s1 + $0xc0] sm:$0xff]
        %v273 = vld [vmem:[%s1 + $0xc8] sm:$0xff]
        %v274 = vld [vmem:[%s1 + $0xd0] sm:$0xff]
        %v275 = vld [vmem:[%s1 + $0xd8] sm:$0xff]
        %v276 = vld [vmem:[%s1 + $0xe0] sm:$0xff]
        %v277 = vld [vmem:[%s1 + $0xe8] sm:$0xff]
        %v278 = vld [vmem:[%s1 + $0xf0] sm:$0xff]
        %v279 = vld [vmem:[%s1 + $0xf8] sm:$0xff]
        %vm280 = vcmask 261120
        %v282 = vsel %vm280, %v247, 0
        %284 = vmatprep.subr.mxu0 0.0
        %285 = vmatpush1.msra.mxu0 %v248
        %286 = vmatprep.subr.mxu0 0.0
        %287 = vmatpush1.msra.mxu0 %v249
        %288 = vmatprep.subr.mxu0 0.0
        %289 = vmatpush1.msra.mxu0 %v250
        %290 = vmatprep.subr.mxu0 0.0
        %291 = vmatpush1.msra.mxu0 %v251
        %292 = vmatprep.subr.mxu0 0.0
        %293 = vmatpush1.msra.mxu0 0.0
        %294 = vmatprep.subr.mxu0 0.0
        %295 = vmatpush1.msra.mxu0 0.0
        %296 = vmatprep.subr.mxu0 0.0
        %297 = vmatpush1.msra.mxu0 0.0
        %298 = vmatprep.subr.mxu0 0.0
        %299 = vmatpush1.msra.mxu0 0.0
        %300 = vmatprep.subr.mxu0 0.0
        %301 = vmatpush1.msra.mxu0 0.0
        %302 = vmatprep.subr.mxu0 0.0
        %303 = vmatpush1.msra.mxu0 0.0
        %304 = vmatprep.subr.mxu0 0.0
        %305 = vmatpush1.msra.mxu0 0.0
        %306 = vmatprep.subr.mxu0 0.0
        %307 = vmatpush1.msra.mxu0 0.0
        %308 = vmatprep.subr.mxu0 0.0
        %309 = vmatpush1.msra.mxu0 0.0
        %310 = vmatprep.subr.mxu0 0.0
        %311 = vmatpush1.msra.mxu0 0.0
        %312 = vmatprep.subr.mxu0 0.0
        %313 = vmatpush1.msra.mxu0 0.0
        %314 = vmatprep.subr.mxu0 0.0
        %315 = vmatpush1.msra.mxu0 0.0
        %316 = vmatprep.subr.mxu0 0.0
        %317 = vmatpush1.msra.mxu0 0.0
        %318 = vmatprep.subr.mxu0 0.0
        %319 = vmatpush1.msra.mxu0 0.0
        %320 = vmatprep.subr.mxu0 0.0
        %321 = vmatpush1.msra.mxu0 0.0
        %322 = vmatprep.subr.mxu0 0.0
        %323 = vmatpush1.msra.mxu0 0.0
        %324 = vmatprep.subr.mxu0 0.0
        %325 = vmatpush1.msra.mxu0 0.0
        %326 = vmatprep.subr.mxu0 0.0
        %327 = vmatpush1.msra.mxu0 0.0
        %328 = vmatprep.subr.mxu0 0.0
        %329 = vmatpush1.msra.mxu0 0.0
        %330 = vmatprep.subr.mxu0 0.0
        %331 = vmatpush1.msra.mxu0 0.0
        %332 = vmatprep.subr.mxu0 0.0
        %333 = vmatpush1.msra.mxu0 0.0
        %334 = vmatprep.subr.mxu0 0.0
        %335 = vmatpush1.msra.mxu0 0.0
        %336 = vmatprep.subr.mxu0 0.0
        %337 = vmatpush1.msra.mxu0 0.0
        %338 = vmatprep.subr.mxu0 0.0
        %339 = vmatpush1.msra.mxu0 0.0
        %340 = vmatprep.subr.mxu0 0.0
        %341 = vmatpush1.msra.mxu0 0.0
        %342 = vmatprep.subr.mxu0 0.0
        %343 = vmatpush1.msra.mxu0 0.0
        %344 = vmatprep.subr.mxu0 0.0
        %345 = vmatpush1.msra.mxu0 0.0
        %346 = vmatprep.subr.mxu0 0.0
        %347 = vmatpush1.msra.mxu0 0.0
        %348 = vmatprep.mubr.f32.mxu0 0.0
        %349 = vmatmul.mubr.f32.gmra.mrb[0].mxu0 %v282
        %v350 = vpop.f32.mrb[0].mxu0
        %v351 = vadd.f32 0.0, %v350
        %v352 = vpop.f32.mrb[0].mxu0
        %353 = vdwg.mxu0
        %354 = vmatprep.subr.mxu0 0.0
        %355 = vmatpush1.msra.mxu0 %v252
        %356 = vmatprep.subr.mxu0 0.0
        %357 = vmatpush1.msra.mxu0 %v253
        %358 = vmatprep.subr.mxu0 0.0
        %359 = vmatpush1.msra.mxu0 %v254
        %360 = vmatprep.subr.mxu0 0.0
        %361 = vmatpush1.msra.mxu0 %v255
        %362 = vmatprep.subr.mxu0 0.0
        %363 = vmatpush1.msra.mxu0 0.0
        %364 = vmatprep.subr.mxu0 0.0
        %365 = vmatpush1.msra.mxu0 0.0
        %366 = vmatprep.subr.mxu0 0.0
        %367 = vmatpush1.msra.mxu0 0.0
        %368 = vmatprep.subr.mxu0 0.0
        %369 = vmatpush1.msra.mxu0 0.0
        %370 = vmatprep.subr.mxu0 0.0
        %371 = vmatpush1.msra.mxu0 0.0
        %372 = vmatprep.subr.mxu0 0.0
        %373 = vmatpush1.msra.mxu0 0.0
        %374 = vmatprep.subr.mxu0 0.0
        %375 = vmatpush1.msra.mxu0 0.0
        %376 = vmatprep.subr.mxu0 0.0
        %377 = vmatpush1.msra.mxu0 0.0
        %378 = vmatprep.subr.mxu0 0.0
        %379 = vmatpush1.msra.mxu0 0.0
        %380 = vmatprep.subr.mxu0 0.0
        %381 = vmatpush1.msra.mxu0 0.0
        %382 = vmatprep.subr.mxu0 0.0
        %383 = vmatpush1.msra.mxu0 0.0
        %384 = vmatprep.subr.mxu0 0.0
        %385 = vmatpush1.msra.mxu0 0.0
        %386 = vmatprep.subr.mxu0 0.0
        %387 = vmatpush1.msra.mxu0 0.0
        %388 = vmatprep.subr.mxu0 0.0
        %389 = vmatpush1.msra.mxu0 0.0
        %390 = vmatprep.subr.mxu0 0.0
        %391 = vmatpush1.msra.mxu0 0.0
        %392 = vmatprep.subr.mxu0 0.0
        %393 = vmatpush1.msra.mxu0 0.0
        %394 = vmatprep.subr.mxu0 0.0
        %395 = vmatpush1.msra.mxu0 0.0
        %396 = vmatprep.subr.mxu0 0.0
        %397 = vmatpush1.msra.mxu0 0.0
        %398 = vmatprep.subr.mxu0 0.0
        %399 = vmatpush1.msra.mxu0 0.0
        %400 = vmatprep.subr.mxu0 0.0
        %401 = vmatpush1.msra.mxu0 0.0
        %402 = vmatprep.subr.mxu0 0.0
        %403 = vmatpush1.msra.mxu0 0.0
        %404 = vmatprep.subr.mxu0 0.0
        %405 = vmatpush1.msra.mxu0 0.0
        %406 = vmatprep.subr.mxu0 0.0
        %407 = vmatpush1.msra.mxu0 0.0
        %408 = vmatprep.subr.mxu0 0.0
        %409 = vmatpush1.msra.mxu0 0.0
        %410 = vmatprep.subr.mxu0 0.0
        %411 = vmatpush1.msra.mxu0 0.0
        %412 = vmatprep.subr.mxu0 0.0
        %413 = vmatpush1.msra.mxu0 0.0
        %414 = vmatprep.subr.mxu0 0.0
        %415 = vmatpush1.msra.mxu0 0.0
        %416 = vmatprep.subr.mxu0 0.0
        %417 = vmatpush1.msra.mxu0 0.0
        %418 = vmatprep.mubr.f32.mxu0 0.0
        %419 = vmatmul.mubr.f32.gmra.mrb[0].mxu0 %v282
        %v420 = vpop.f32.mrb[0].mxu0
        %v421 = vadd.f32 0.0, %v420
        %v422 = vpop.f32.mrb[0].mxu0
        %423 = vdwg.mxu0
        %424 = vmatprep.subr.mxu0 0.0
        %425 = vmatpush1.msra.mxu0 %v256
        %426 = vmatprep.subr.mxu0 0.0
        %427 = vmatpush1.msra.mxu0 %v257
        %428 = vmatprep.subr.mxu0 0.0
        %429 = vmatpush1.msra.mxu0 %v258
        %430 = vmatprep.subr.mxu0 0.0
        %431 = vmatpush1.msra.mxu0 %v259
        %432 = vmatprep.subr.mxu0 0.0
        %433 = vmatpush1.msra.mxu0 0.0
        %434 = vmatprep.subr.mxu0 0.0
        %435 = vmatpush1.msra.mxu0 0.0
        %436 = vmatprep.subr.mxu0 0.0
        %437 = vmatpush1.msra.mxu0 0.0
        %438 = vmatprep.subr.mxu0 0.0
        %439 = vmatpush1.msra.mxu0 0.0
        %440 = vmatprep.subr.mxu0 0.0
        %441 = vmatpush1.msra.mxu0 0.0
        %442 = vmatprep.subr.mxu0 0.0
        %443 = vmatpush1.msra.mxu0 0.0
        %444 = vmatprep.subr.mxu0 0.0
        %445 = vmatpush1.msra.mxu0 0.0
        %446 = vmatprep.subr.mxu0 0.0
        %447 = vmatpush1.msra.mxu0 0.0
        %448 = vmatprep.subr.mxu0 0.0
        %449 = vmatpush1.msra.mxu0 0.0
        %450 = vmatprep.subr.mxu0 0.0
        %451 = vmatpush1.msra.mxu0 0.0
        %452 = vmatprep.subr.mxu0 0.0
        %453 = vmatpush1.msra.mxu0 0.0
        %454 = vmatprep.subr.mxu0 0.0
        %455 = vmatpush1.msra.mxu0 0.0
        %456 = vmatprep.subr.mxu0 0.0
        %457 = vmatpush1.msra.mxu0 0.0
        %458 = vmatprep.subr.mxu0 0.0
        %459 = vmatpush1.msra.mxu0 0.0
        %460 = vmatprep.subr.mxu0 0.0
        %461 = vmatpush1.msra.mxu0 0.0
        %462 = vmatprep.subr.mxu0 0.0
        %463 = vmatpush1.msra.mxu0 0.0
        %464 = vmatprep.subr.mxu0 0.0
        %465 = vmatpush1.msra.mxu0 0.0
        %466 = vmatprep.subr.mxu0 0.0
        %467 = vmatpush1.msra.mxu0 0.0
        %468 = vmatprep.subr.mxu0 0.0
        %469 = vmatpush1.msra.mxu0 0.0
        %470 = vmatprep.subr.mxu0 0.0
        %471 = vmatpush1.msra.mxu0 0.0
        %472 = vmatprep.subr.mxu0 0.0
        %473 = vmatpush1.msra.mxu0 0.0
        %474 = vmatprep.subr.mxu0 0.0
        %475 = vmatpush1.msra.mxu0 0.0
        %476 = vmatprep.subr.mxu0 0.0
        %477 = vmatpush1.msra.mxu0 0.0
        %478 = vmatprep.subr.mxu0 0.0
        %479 = vmatpush1.msra.mxu0 0.0
        %480 = vmatprep.subr.mxu0 0.0
        %481 = vmatpush1.msra.mxu0 0.0
        %482 = vmatprep.subr.mxu0 0.0
        %483 = vmatpush1.msra.mxu0 0.0
        %484 = vmatprep.subr.mxu0 0.0
        %485 = vmatpush1.msra.mxu0 0.0
        %486 = vmatprep.subr.mxu0 0.0
        %487 = vmatpush1.msra.mxu0 0.0
        %488 = vmatprep.mubr.f32.mxu0 0.0
        %489 = vmatmul.mubr.f32.gmra.mrb[0].mxu0 %v282
        %v490 = vpop.f32.mrb[0].mxu0
        %v491 = vadd.f32 0.0, %v490
        %v492 = vpop.f32.mrb[0].mxu0
        %493 = vdwg.mxu0
        %494 = vmatprep.subr.mxu0 0.0
        %495 = vmatpush1.msra.mxu0 %v260
        %496 = vmatprep.subr.mxu0 0.0
        %497 = vmatpush1.msra.mxu0 %v261
        %498 = vmatprep.subr.mxu0 0.0
        %499 = vmatpush1.msra.mxu0 %v262
        %500 = vmatprep.subr.mxu0 0.0
        %501 = vmatpush1.msra.mxu0 %v263
        %502 = vmatprep.subr.mxu0 0.0
        %503 = vmatpush1.msra.mxu0 0.0
        %504 = vmatprep.subr.mxu0 0.0
        %505 = vmatpush1.msra.mxu0 0.0
        %506 = vmatprep.subr.mxu0 0.0
        %507 = vmatpush1.msra.mxu0 0.0
        %508 = vmatprep.subr.mxu0 0.0
        %509 = vmatpush1.msra.mxu0 0.0
        %510 = vmatprep.subr.mxu0 0.0
        %511 = vmatpush1.msra.mxu0 0.0
        %512 = vmatprep.subr.mxu0 0.0
        %513 = vmatpush1.msra.mxu0 0.0
        %514 = vmatprep.subr.mxu0 0.0
        %515 = vmatpush1.msra.mxu0 0.0
        %516 = vmatprep.subr.mxu0 0.0
        %517 = vmatpush1.msra.mxu0 0.0
        %518 = vmatprep.subr.mxu0 0.0
        %519 = vmatpush1.msra.mxu0 0.0
        %520 = vmatprep.subr.mxu0 0.0
        %521 = vmatpush1.msra.mxu0 0.0
        %522 = vmatprep.subr.mxu0 0.0
        %523 = vmatpush1.msra.mxu0 0.0
        %524 = vmatprep.subr.mxu0 0.0
        %525 = vmatpush1.msra.mxu0 0.0
        %526 = vmatprep.subr.mxu0 0.0
        %527 = vmatpush1.msra.mxu0 0.0
        %528 = vmatprep.subr.mxu0 0.0
        %529 = vmatpush1.msra.mxu0 0.0
        %530 = vmatprep.subr.mxu0 0.0
        %531 = vmatpush1.msra.mxu0 0.0
        %532 = vmatprep.subr.mxu0 0.0
        %533 = vmatpush1.msra.mxu0 0.0
        %534 = vmatprep.subr.mxu0 0.0
        %535 = vmatpush1.msra.mxu0 0.0
        %536 = vmatprep.subr.mxu0 0.0
        %537 = vmatpush1.msra.mxu0 0.0
        %538 = vmatprep.subr.mxu0 0.0
        %539 = vmatpush1.msra.mxu0 0.0
        %540 = vmatprep.subr.mxu0 0.0
        %541 = vmatpush1.msra.mxu0 0.0
        %542 = vmatprep.subr.mxu0 0.0
        %543 = vmatpush1.msra.mxu0 0.0
        %544 = vmatprep.subr.mxu0 0.0
        %545 = vmatpush1.msra.mxu0 0.0
        %546 = vmatprep.subr.mxu0 0.0
        %547 = vmatpush1.msra.mxu0 0.0
        %548 = vmatprep.subr.mxu0 0.0
        %549 = vmatpush1.msra.mxu0 0.0
        %550 = vmatprep.subr.mxu0 0.0
        %551 = vmatpush1.msra.mxu0 0.0
        %552 = vmatprep.subr.mxu0 0.0
        %553 = vmatpush1.msra.mxu0 0.0
        %554 = vmatprep.subr.mxu0 0.0
        %555 = vmatpush1.msra.mxu0 0.0
        %556 = vmatprep.subr.mxu0 0.0
        %557 = vmatpush1.msra.mxu0 0.0
        %558 = vmatprep.mubr.f32.mxu0 0.0
        %559 = vmatmul.mubr.f32.gmra.mrb[0].mxu0 %v282
        %v560 = vpop.f32.mrb[0].mxu0
        %v561 = vadd.f32 0.0, %v560
        %v562 = vpop.f32.mrb[0].mxu0
        %563 = vdwg.mxu0
        %564 = vmatprep.subr.mxu0 0.0
        %565 = vmatpush1.msra.mxu0 %v264
        %566 = vmatprep.subr.mxu0 0.0
        %567 = vmatpush1.msra.mxu0 %v265
        %568 = vmatprep.subr.mxu0 0.0
        %569 = vmatpush1.msra.mxu0 %v266
        %570 = vmatprep.subr.mxu0 0.0
        %571 = vmatpush1.msra.mxu0 %v267
        %572 = vmatprep.subr.mxu0 0.0
        %573 = vmatpush1.msra.mxu0 0.0
        %574 = vmatprep.subr.mxu0 0.0
        %575 = vmatpush1.msra.mxu0 0.0
        %576 = vmatprep.subr.mxu0 0.0
        %577 = vmatpush1.msra.mxu0 0.0
        %578 = vmatprep.subr.mxu0 0.0
        %579 = vmatpush1.msra.mxu0 0.0
        %580 = vmatprep.subr.mxu0 0.0
        %581 = vmatpush1.msra.mxu0 0.0
        %582 = vmatprep.subr.mxu0 0.0
        %583 = vmatpush1.msra.mxu0 0.0
        %584 = vmatprep.subr.mxu0 0.0
        %585 = vmatpush1.msra.mxu0 0.0
        %586 = vmatprep.subr.mxu0 0.0
        %587 = vmatpush1.msra.mxu0 0.0
        %588 = vmatprep.subr.mxu0 0.0
        %589 = vmatpush1.msra.mxu0 0.0
        %590 = vmatprep.subr.mxu0 0.0
        %591 = vmatpush1.msra.mxu0 0.0
        %592 = vmatprep.subr.mxu0 0.0
        %593 = vmatpush1.msra.mxu0 0.0
        %594 = vmatprep.subr.mxu0 0.0
        %595 = vmatpush1.msra.mxu0 0.0
        %596 = vmatprep.subr.mxu0 0.0
        %597 = vmatpush1.msra.mxu0 0.0
        %598 = vmatprep.subr.mxu0 0.0
        %599 = vmatpush1.msra.mxu0 0.0
        %600 = vmatprep.subr.mxu0 0.0
        %601 = vmatpush1.msra.mxu0 0.0
        %602 = vmatprep.subr.mxu0 0.0
        %603 = vmatpush1.msra.mxu0 0.0
        %604 = vmatprep.subr.mxu0 0.0
        %605 = vmatpush1.msra.mxu0 0.0
        %606 = vmatprep.subr.mxu0 0.0
        %607 = vmatpush1.msra.mxu0 0.0
        %608 = vmatprep.subr.mxu0 0.0
        %609 = vmatpush1.msra.mxu0 0.0
        %610 = vmatprep.subr.mxu0 0.0
        %611 = vmatpush1.msra.mxu0 0.0
        %612 = vmatprep.subr.mxu0 0.0
        %613 = vmatpush1.msra.mxu0 0.0
        %614 = vmatprep.subr.mxu0 0.0
        %615 = vmatpush1.msra.mxu0 0.0
        %616 = vmatprep.subr.mxu0 0.0
        %617 = vmatpush1.msra.mxu0 0.0
        %618 = vmatprep.subr.mxu0 0.0
        %619 = vmatpush1.msra.mxu0 0.0
        %620 = vmatprep.subr.mxu0 0.0
        %621 = vmatpush1.msra.mxu0 0.0
        %622 = vmatprep.subr.mxu0 0.0
        %623 = vmatpush1.msra.mxu0 0.0
        %624 = vmatprep.subr.mxu0 0.0
        %625 = vmatpush1.msra.mxu0 0.0
        %626 = vmatprep.subr.mxu0 0.0
        %627 = vmatpush1.msra.mxu0 0.0
        %628 = vmatprep.mubr.f32.mxu0 0.0
        %629 = vmatmul.mubr.f32.gmra.mrb[0].mxu0 %v282
        %v630 = vpop.f32.mrb[0].mxu0
        %v631 = vadd.f32 0.0, %v630
        %v632 = vpop.f32.mrb[0].mxu0
        %633 = vdwg.mxu0
        %634 = vmatprep.subr.mxu0 0.0
        %635 = vmatpush1.msra.mxu0 %v268
        %636 = vmatprep.subr.mxu0 0.0
        %637 = vmatpush1.msra.mxu0 %v269
        %638 = vmatprep.subr.mxu0 0.0
        %639 = vmatpush1.msra.mxu0 %v270
        %640 = vmatprep.subr.mxu0 0.0
        %641 = vmatpush1.msra.mxu0 %v271
        %642 = vmatprep.subr.mxu0 0.0
        %643 = vmatpush1.msra.mxu0 0.0
        %644 = vmatprep.subr.mxu0 0.0
        %645 = vmatpush1.msra.mxu0 0.0
        %646 = vmatprep.subr.mxu0 0.0
        %647 = vmatpush1.msra.mxu0 0.0
        %648 = vmatprep.subr.mxu0 0.0
        %649 = vmatpush1.msra.mxu0 0.0
        %650 = vmatprep.subr.mxu0 0.0
        %651 = vmatpush1.msra.mxu0 0.0
        %652 = vmatprep.subr.mxu0 0.0
        %653 = vmatpush1.msra.mxu0 0.0
        %654 = vmatprep.subr.mxu0 0.0
        %655 = vmatpush1.msra.mxu0 0.0
        %656 = vmatprep.subr.mxu0 0.0
        %657 = vmatpush1.msra.mxu0 0.0
        %658 = vmatprep.subr.mxu0 0.0
        %659 = vmatpush1.msra.mxu0 0.0
        %660 = vmatprep.subr.mxu0 0.0
        %661 = vmatpush1.msra.mxu0 0.0
        %662 = vmatprep.subr.mxu0 0.0
        %663 = vmatpush1.msra.mxu0 0.0
        %664 = vmatprep.subr.mxu0 0.0
        %665 = vmatpush1.msra.mxu0 0.0
        %666 = vmatprep.subr.mxu0 0.0
        %667 = vmatpush1.msra.mxu0 0.0
        %668 = vmatprep.subr.mxu0 0.0
        %669 = vmatpush1.msra.mxu0 0.0
        %670 = vmatprep.subr.mxu0 0.0
        %671 = vmatpush1.msra.mxu0 0.0
        %672 = vmatprep.subr.mxu0 0.0
        %673 = vmatpush1.msra.mxu0 0.0
        %674 = vmatprep.subr.mxu0 0.0
        %675 = vmatpush1.msra.mxu0 0.0
        %676 = vmatprep.subr.mxu0 0.0
        %677 = vmatpush1.msra.mxu0 0.0
        %678 = vmatprep.subr.mxu0 0.0
        %679 = vmatpush1.msra.mxu0 0.0
        %680 = vmatprep.subr.mxu0 0.0
        %681 = vmatpush1.msra.mxu0 0.0
        %682 = vmatprep.subr.mxu0 0.0
        %683 = vmatpush1.msra.mxu0 0.0
        %684 = vmatprep.subr.mxu0 0.0
        %685 = vmatpush1.msra.mxu0 0.0
        %686 = vmatprep.subr.mxu0 0.0
        %687 = vmatpush1.msra.mxu0 0.0
        %688 = vmatprep.subr.mxu0 0.0
        %689 = vmatpush1.msra.mxu0 0.0
        %690 = vmatprep.subr.mxu0 0.0
        %691 = vmatpush1.msra.mxu0 0.0
        %692 = vmatprep.subr.mxu0 0.0
        %693 = vmatpush1.msra.mxu0 0.0
        %694 = vmatprep.subr.mxu0 0.0
        %695 = vmatpush1.msra.mxu0 0.0
        %696 = vmatprep.subr.mxu0 0.0
        %697 = vmatpush1.msra.mxu0 0.0
        %698 = vmatprep.mubr.f32.mxu0 0.0
        %699 = vmatmul.mubr.f32.gmra.mrb[0].mxu0 %v282
        %v700 = vpop.f32.mrb[0].mxu0
        %v701 = vadd.f32 0.0, %v700
        %v702 = vpop.f32.mrb[0].mxu0
        %703 = vdwg.mxu0
        %704 = vmatprep.subr.mxu0 0.0
        %705 = vmatpush1.msra.mxu0 %v272
        %706 = vmatprep.subr.mxu0 0.0
        %707 = vmatpush1.msra.mxu0 %v273
        %708 = vmatprep.subr.mxu0 0.0
        %709 = vmatpush1.msra.mxu0 %v274
        %710 = vmatprep.subr.mxu0 0.0
        %711 = vmatpush1.msra.mxu0 %v275
        %712 = vmatprep.subr.mxu0 0.0
        %713 = vmatpush1.msra.mxu0 0.0
        %714 = vmatprep.subr.mxu0 0.0
        %715 = vmatpush1.msra.mxu0 0.0
        %716 = vmatprep.subr.mxu0 0.0
        %717 = vmatpush1.msra.mxu0 0.0
        %718 = vmatprep.subr.mxu0 0.0
        %719 = vmatpush1.msra.mxu0 0.0
        %720 = vmatprep.subr.mxu0 0.0
        %721 = vmatpush1.msra.mxu0 0.0
        %722 = vmatprep.subr.mxu0 0.0
        %723 = vmatpush1.msra.mxu0 0.0
        %724 = vmatprep.subr.mxu0 0.0
        %725 = vmatpush1.msra.mxu0 0.0
        %726 = vmatprep.subr.mxu0 0.0
        %727 = vmatpush1.msra.mxu0 0.0
        %728 = vmatprep.subr.mxu0 0.0
        %729 = vmatpush1.msra.mxu0 0.0
        %730 = vmatprep.subr.mxu0 0.0
        %731 = vmatpush1.msra.mxu0 0.0
        %732 = vmatprep.subr.mxu0 0.0
        %733 = vmatpush1.msra.mxu0 0.0
        %734 = vmatprep.subr.mxu0 0.0
        %735 = vmatpush1.msra.mxu0 0.0
        %736 = vmatprep.subr.mxu0 0.0
        %737 = vmatpush1.msra.mxu0 0.0
        %738 = vmatprep.subr.mxu0 0.0
        %739 = vmatpush1.msra.mxu0 0.0
        %740 = vmatprep.subr.mxu0 0.0
        %741 = vmatpush1.msra.mxu0 0.0
        %742 = vmatprep.subr.mxu0 0.0
        %743 = vmatpush1.msra.mxu0 0.0
        %744 = vmatprep.subr.mxu0 0.0
        %745 = vmatpush1.msra.mxu0 0.0
        %746 = vmatprep.subr.mxu0 0.0
        %747 = vmatpush1.msra.mxu0 0.0
        %748 = vmatprep.subr.mxu0 0.0
        %749 = vmatpush1.msra.mxu0 0.0
        %750 = vmatprep.subr.mxu0 0.0
        %751 = vmatpush1.msra.mxu0 0.0
        %752 = vmatprep.subr.mxu0 0.0
        %753 = vmatpush1.msra.mxu0 0.0
        %754 = vmatprep.subr.mxu0 0.0
        %755 = vmatpush1.msra.mxu0 0.0
        %756 = vmatprep.subr.mxu0 0.0
        %757 = vmatpush1.msra.mxu0 0.0
        %758 = vmatprep.subr.mxu0 0.0
        %759 = vmatpush1.msra.mxu0 0.0
        %760 = vmatprep.subr.mxu0 0.0
        %761 = vmatpush1.msra.mxu0 0.0
        %762 = vmatprep.subr.mxu0 0.0
        %763 = vmatpush1.msra.mxu0 0.0
        %764 = vmatprep.subr.mxu0 0.0
        %765 = vmatpush1.msra.mxu0 0.0
        %766 = vmatprep.subr.mxu0 0.0
        %767 = vmatpush1.msra.mxu0 0.0
        %768 = vmatprep.mubr.f32.mxu0 0.0
        %769 = vmatmul.mubr.f32.gmra.mrb[0].mxu0 %v282
        %v770 = vpop.f32.mrb[0].mxu0
        %v771 = vadd.f32 0.0, %v770
        %v772 = vpop.f32.mrb[0].mxu0
        %773 = vdwg.mxu0
        %774 = vmatprep.subr.mxu0 0.0
        %775 = vmatpush1.msra.mxu0 %v276
        %776 = vmatprep.subr.mxu0 0.0
        %777 = vmatpush1.msra.mxu0 %v277
        %778 = vmatprep.subr.mxu0 0.0
        %779 = vmatpush1.msra.mxu0 %v278
        %780 = vmatprep.subr.mxu0 0.0
        %781 = vmatpush1.msra.mxu0 %v279
        %782 = vmatprep.subr.mxu0 0.0
        %783 = vmatpush1.msra.mxu0 0.0
        %784 = vmatprep.subr.mxu0 0.0
        %785 = vmatpush1.msra.mxu0 0.0
        %786 = vmatprep.subr.mxu0 0.0
        %787 = vmatpush1.msra.mxu0 0.0
        %788 = vmatprep.subr.mxu0 0.0
        %789 = vmatpush1.msra.mxu0 0.0
        %790 = vmatprep.subr.mxu0 0.0
        %791 = vmatpush1.msra.mxu0 0.0
        %792 = vmatprep.subr.mxu0 0.0
        %793 = vmatpush1.msra.mxu0 0.0
        %794 = vmatprep.subr.mxu0 0.0
        %795 = vmatpush1.msra.mxu0 0.0
        %796 = vmatprep.subr.mxu0 0.0
        %797 = vmatpush1.msra.mxu0 0.0
        %798 = vmatprep.subr.mxu0 0.0
        %799 = vmatpush1.msra.mxu0 0.0
        %800 = vmatprep.subr.mxu0 0.0
        %801 = vmatpush1.msra.mxu0 0.0
        %802 = vmatprep.subr.mxu0 0.0
        %803 = vmatpush1.msra.mxu0 0.0
        %804 = vmatprep.subr.mxu0 0.0
        %805 = vmatpush1.msra.mxu0 0.0
        %806 = vmatprep.subr.mxu0 0.0
        %807 = vmatpush1.msra.mxu0 0.0
        %808 = vmatprep.subr.mxu0 0.0
        %809 = vmatpush1.msra.mxu0 0.0
        %810 = vmatprep.subr.mxu0 0.0
        %811 = vmatpush1.msra.mxu0 0.0
        %812 = vmatprep.subr.mxu0 0.0
        %813 = vmatpush1.msra.mxu0 0.0
        %814 = vmatprep.subr.mxu0 0.0
        %815 = vmatpush1.msra.mxu0 0.0
        %816 = vmatprep.subr.mxu0 0.0
        %817 = vmatpush1.msra.mxu0 0.0
        %818 = vmatprep.subr.mxu0 0.0
        %819 = vmatpush1.msra.mxu0 0.0
        %820 = vmatprep.subr.mxu0 0.0
        %821 = vmatpush1.msra.mxu0 0.0
        %822 = vmatprep.subr.mxu0 0.0
        %823 = vmatpush1.msra.mxu0 0.0
        %824 = vmatprep.subr.mxu0 0.0
        %825 = vmatpush1.msra.mxu0 0.0
        %826 = vmatprep.subr.mxu0 0.0
        %827 = vmatpush1.msra.mxu0 0.0
        %828 = vmatprep.subr.mxu0 0.0
        %829 = vmatpush1.msra.mxu0 0.0
        %830 = vmatprep.subr.mxu0 0.0
        %831 = vmatpush1.msra.mxu0 0.0
        %832 = vmatprep.subr.mxu0 0.0
        %833 = vmatpush1.msra.mxu0 0.0
        %834 = vmatprep.subr.mxu0 0.0
        %835 = vmatpush1.msra.mxu0 0.0
        %836 = vmatprep.subr.mxu0 0.0
        %837 = vmatpush1.msra.mxu0 0.0
        %838 = vmatprep.mubr.f32.mxu0 0.0
        %839 = vmatmul.mubr.f32.gmra.mrb[0].mxu0 %v282
        %v840 = vpop.f32.mrb[0].mxu0
        %v841 = vadd.f32 0.0, %v840
        %v842 = vpop.f32.mrb[0].mxu0
        %843 = vdwg.mxu0
        %v844 = vld [vmem:[%s2] sm:$0xff]
        %v845 = vld [vmem:[%s2 + $0x8] sm:$0xff]
        %v846 = vld [vmem:[%s2 + $0x10] sm:$0xff]
        %v847 = vld [vmem:[%s2 + $0x18] sm:$0xff]
        %v848 = vld [vmem:[%s2 + $0x20] sm:$0xff]
        %v849 = vld [vmem:[%s2 + $0x28] sm:$0xff]
        %v850 = vld [vmem:[%s2 + $0x30] sm:$0xff]
        %v851 = vld [vmem:[%s2 + $0x38] sm:$0xff]
        %v852 = vld [vmem:[%s2 + $0x40] sm:$0xff]
        %v853 = vld [vmem:[%s2 + $0x48] sm:$0xff]
        %v854 = vld [vmem:[%s2 + $0x50] sm:$0xff]
        %v855 = vld [vmem:[%s2 + $0x58] sm:$0xff]
        %v856 = vld [vmem:[%s2 + $0x60] sm:$0xff]
        %v857 = vld [vmem:[%s2 + $0x68] sm:$0xff]
        %v858 = vld [vmem:[%s2 + $0x70] sm:$0xff]
        %v859 = vld [vmem:[%s2 + $0x78] sm:$0xff]
        %v860 = vld [vmem:[%s2 + $0x80] sm:$0xff]
        %v861 = vld [vmem:[%s2 + $0x88] sm:$0xff]
        %v862 = vld [vmem:[%s2 + $0x90] sm:$0xff]
        %v863 = vld [vmem:[%s2 + $0x98] sm:$0xff]
        %v864 = vld [vmem:[%s2 + $0xa0] sm:$0xff]
        %v865 = vld [vmem:[%s2 + $0xa8] sm:$0xff]
        %v866 = vld [vmem:[%s2 + $0xb0] sm:$0xff]
        %v867 = vld [vmem:[%s2 + $0xb8] sm:$0xff]
        %v868 = vld [vmem:[%s2 + $0xc0] sm:$0xff]
        %v869 = vld [vmem:[%s2 + $0xc8] sm:$0xff]
        %v870 = vld [vmem:[%s2 + $0xd0] sm:$0xff]
        %v871 = vld [vmem:[%s2 + $0xd8] sm:$0xff]
        %v872 = vld [vmem:[%s2 + $0xe0] sm:$0xff]
        %v873 = vld [vmem:[%s2 + $0xe8] sm:$0xff]
        %v874 = vld [vmem:[%s2 + $0xf0] sm:$0xff]
        %v875 = vld [vmem:[%s2 + $0xf8] sm:$0xff]
        %876 = vmatprep.subr.mxu0 0.0
        %877 = vmatpush1.msra.mxu0 %v844
        %878 = vmatprep.subr.mxu0 0.0
        %879 = vmatpush1.msra.mxu0 %v845
        %880 = vmatprep.subr.mxu0 0.0
        %881 = vmatpush1.msra.mxu0 %v846
        %882 = vmatprep.subr.mxu0 0.0
        %883 = vmatpush1.msra.mxu0 %v847
        %884 = vmatprep.subr.mxu0 0.0
        %885 = vmatpush1.msra.mxu0 0.0
        %886 = vmatprep.subr.mxu0 0.0
        %887 = vmatpush1.msra.mxu0 0.0
        %888 = vmatprep.subr.mxu0 0.0
        %889 = vmatpush1.msra.mxu0 0.0
        %890 = vmatprep.subr.mxu0 0.0
        %891 = vmatpush1.msra.mxu0 0.0
        %892 = vmatprep.subr.mxu0 0.0
        %893 = vmatpush1.msra.mxu0 0.0
        %894 = vmatprep.subr.mxu0 0.0
        %895 = vmatpush1.msra.mxu0 0.0
        %896 = vmatprep.subr.mxu0 0.0
        %897 = vmatpush1.msra.mxu0 0.0
        %898 = vmatprep.subr.mxu0 0.0
        %899 = vmatpush1.msra.mxu0 0.0
        %900 = vmatprep.subr.mxu0 0.0
        %901 = vmatpush1.msra.mxu0 0.0
        %902 = vmatprep.subr.mxu0 0.0
        %903 = vmatpush1.msra.mxu0 0.0
        %904 = vmatprep.subr.mxu0 0.0
        %905 = vmatpush1.msra.mxu0 0.0
        %906 = vmatprep.subr.mxu0 0.0
        %907 = vmatpush1.msra.mxu0 0.0
        %908 = vmatprep.subr.mxu0 0.0
        %909 = vmatpush1.msra.mxu0 0.0
        %910 = vmatprep.subr.mxu0 0.0
        %911 = vmatpush1.msra.mxu0 0.0
        %912 = vmatprep.subr.mxu0 0.0
        %913 = vmatpush1.msra.mxu0 0.0
        %914 = vmatprep.subr.mxu0 0.0
        %915 = vmatpush1.msra.mxu0 0.0
        %916 = vmatprep.subr.mxu0 0.0
        %917 = vmatpush1.msra.mxu0 0.0
        %918 = vmatprep.subr.mxu0 0.0
        %919 = vmatpush1.msra.mxu0 0.0
        %920 = vmatprep.subr.mxu0 0.0
        %921 = vmatpush1.msra.mxu0 0.0
        %922 = vmatprep.subr.mxu0 0.0
        %923 = vmatpush1.msra.mxu0 0.0
        %924 = vmatprep.subr.mxu0 0.0
        %925 = vmatpush1.msra.mxu0 0.0
        %926 = vmatprep.subr.mxu0 0.0
        %927 = vmatpush1.msra.mxu0 0.0
        %928 = vmatprep.subr.mxu0 0.0
        %929 = vmatpush1.msra.mxu0 0.0
        %930 = vmatprep.subr.mxu0 0.0
        %931 = vmatpush1.msra.mxu0 0.0
        %932 = vmatprep.subr.mxu0 0.0
        %933 = vmatpush1.msra.mxu0 0.0
        %934 = vmatprep.subr.mxu0 0.0
        %935 = vmatpush1.msra.mxu0 0.0
        %936 = vmatprep.subr.mxu0 0.0
        %937 = vmatpush1.msra.mxu0 0.0
        %938 = vmatprep.subr.mxu0 0.0
        %939 = vmatpush1.msra.mxu0 0.0
        %940 = vmatprep.mubr.f32.mxu0 0.0
        %941 = vmatmul.mubr.f32.gmra.mrb[0].mxu0 %v282
        %v942 = vpop.f32.mrb[0].mxu0
        %v943 = vadd.f32 0.0, %v942
        %v944 = vpop.f32.mrb[0].mxu0
        %945 = vdwg.mxu0
        %946 = vmatprep.subr.mxu0 0.0
        %947 = vmatpush1.msra.mxu0 %v848
        %948 = vmatprep.subr.mxu0 0.0
        %949 = vmatpush1.msra.mxu0 %v849
        %950 = vmatprep.subr.mxu0 0.0
        %951 = vmatpush1.msra.mxu0 %v850
        %952 = vmatprep.subr.mxu0 0.0
        %953 = vmatpush1.msra.mxu0 %v851
        %954 = vmatprep.subr.mxu0 0.0
        %955 = vmatpush1.msra.mxu0 0.0
        %956 = vmatprep.subr.mxu0 0.0
        %957 = vmatpush1.msra.mxu0 0.0
        %958 = vmatprep.subr.mxu0 0.0
        %959 = vmatpush1.msra.mxu0 0.0
        %960 = vmatprep.subr.mxu0 0.0
        %961 = vmatpush1.msra.mxu0 0.0
        %962 = vmatprep.subr.mxu0 0.0
        %963 = vmatpush1.msra.mxu0 0.0
        %964 = vmatprep.subr.mxu0 0.0
        %965 = vmatpush1.msra.mxu0 0.0
        %966 = vmatprep.subr.mxu0 0.0
        %967 = vmatpush1.msra.mxu0 0.0
        %968 = vmatprep.subr.mxu0 0.0
        %969 = vmatpush1.msra.mxu0 0.0
        %970 = vmatprep.subr.mxu0 0.0
        %971 = vmatpush1.msra.mxu0 0.0
        %972 = vmatprep.subr.mxu0 0.0
        %973 = vmatpush1.msra.mxu0 0.0
        %974 = vmatprep.subr.mxu0 0.0
        %975 = vmatpush1.msra.mxu0 0.0
        %976 = vmatprep.subr.mxu0 0.0
        %977 = vmatpush1.msra.mxu0 0.0
        %978 = vmatprep.subr.mxu0 0.0
        %979 = vmatpush1.msra.mxu0 0.0
        %980 = vmatprep.subr.mxu0 0.0
        %981 = vmatpush1.msra.mxu0 0.0
        %982 = vmatprep.subr.mxu0 0.0
        %983 = vmatpush1.msra.mxu0 0.0
        %984 = vmatprep.subr.mxu0 0.0
        %985 = vmatpush1.msra.mxu0 0.0
        %986 = vmatprep.subr.mxu0 0.0
        %987 = vmatpush1.msra.mxu0 0.0
        %988 = vmatprep.subr.mxu0 0.0
        %989 = vmatpush1.msra.mxu0 0.0
        %990 = vmatprep.subr.mxu0 0.0
        %991 = vmatpush1.msra.mxu0 0.0
        %992 = vmatprep.subr.mxu0 0.0
        %993 = vmatpush1.msra.mxu0 0.0
        %994 = vmatprep.subr.mxu0 0.0
        %995 = vmatpush1.msra.mxu0 0.0
        %996 = vmatprep.subr.mxu0 0.0
        %997 = vmatpush1.msra.mxu0 0.0
        %998 = vmatprep.subr.mxu0 0.0
        %999 = vmatpush1.msra.mxu0 0.0
        %1000 = vmatprep.subr.mxu0 0.0
        %1001 = vmatpush1.msra.mxu0 0.0
        %1002 = vmatprep.subr.mxu0 0.0
        %1003 = vmatpush1.msra.mxu0 0.0
        %1004 = vmatprep.subr.mxu0 0.0
        %1005 = vmatpush1.msra.mxu0 0.0
        %1006 = vmatprep.subr.mxu0 0.0
        %1007 = vmatpush1.msra.mxu0 0.0
        %1008 = vmatprep.subr.mxu0 0.0
        %1009 = vmatpush1.msra.mxu0 0.0
        %1010 = vmatprep.mubr.f32.mxu0 0.0
        %1011 = vmatmul.mubr.f32.gmra.mrb[0].mxu0 %v282
        %v1012 = vpop.f32.mrb[0].mxu0
        %v1013 = vadd.f32 0.0, %v1012
        %v1014 = vpop.f32.mrb[0].mxu0
        %1015 = vdwg.mxu0
        %1016 = vmatprep.subr.mxu0 0.0
        %1017 = vmatpush1.msra.mxu0 %v852
        %1018 = vmatprep.subr.mxu0 0.0
        %1019 = vmatpush1.msra.mxu0 %v853
        %1020 = vmatprep.subr.mxu0 0.0
        %1021 = vmatpush1.msra.mxu0 %v854
        %1022 = vmatprep.subr.mxu0 0.0
        %1023 = vmatpush1.msra.mxu0 %v855
        %1024 = vmatprep.subr.mxu0 0.0
        %1025 = vmatpush1.msra.mxu0 0.0
        %1026 = vmatprep.subr.mxu0 0.0
        %1027 = vmatpush1.msra.mxu0 0.0
        %1028 = vmatprep.subr.mxu0 0.0
        %1029 = vmatpush1.msra.mxu0 0.0
        %1030 = vmatprep.subr.mxu0 0.0
        %1031 = vmatpush1.msra.mxu0 0.0
        %1032 = vmatprep.subr.mxu0 0.0
        %1033 = vmatpush1.msra.mxu0 0.0
        %1034 = vmatprep.subr.mxu0 0.0
        %1035 = vmatpush1.msra.mxu0 0.0
        %1036 = vmatprep.subr.mxu0 0.0
        %1037 = vmatpush1.msra.mxu0 0.0
        %1038 = vmatprep.subr.mxu0 0.0
        %1039 = vmatpush1.msra.mxu0 0.0
        %1040 = vmatprep.subr.mxu0 0.0
        %1041 = vmatpush1.msra.mxu0 0.0
        %1042 = vmatprep.subr.mxu0 0.0
        %1043 = vmatpush1.msra.mxu0 0.0
        %1044 = vmatprep.subr.mxu0 0.0
        %1045 = vmatpush1.msra.mxu0 0.0
        %1046 = vmatprep.subr.mxu0 0.0
        %1047 = vmatpush1.msra.mxu0 0.0
        %1048 = vmatprep.subr.mxu0 0.0
        %1049 = vmatpush1.msra.mxu0 0.0
        %1050 = vmatprep.subr.mxu0 0.0
        %1051 = vmatpush1.msra.mxu0 0.0
        %1052 = vmatprep.subr.mxu0 0.0
        %1053 = vmatpush1.msra.mxu0 0.0
        %1054 = vmatprep.subr.mxu0 0.0
        %1055 = vmatpush1.msra.mxu0 0.0
        %1056 = vmatprep.subr.mxu0 0.0
        %1057 = vmatpush1.msra.mxu0 0.0
        %1058 = vmatprep.subr.mxu0 0.0
        %1059 = vmatpush1.msra.mxu0 0.0
        %1060 = vmatprep.subr.mxu0 0.0
        %1061 = vmatpush1.msra.mxu0 0.0
        %1062 = vmatprep.subr.mxu0 0.0
        %1063 = vmatpush1.msra.mxu0 0.0
        %1064 = vmatprep.subr.mxu0 0.0
        %1065 = vmatpush1.msra.mxu0 0.0
        %1066 = vmatprep.subr.mxu0 0.0
        %1067 = vmatpush1.msra.mxu0 0.0
        %1068 = vmatprep.subr.mxu0 0.0
        %1069 = vmatpush1.msra.mxu0 0.0
        %1070 = vmatprep.subr.mxu0 0.0
        %1071 = vmatpush1.msra.mxu0 0.0
        %1072 = vmatprep.subr.mxu0 0.0
        %1073 = vmatpush1.msra.mxu0 0.0
        %1074 = vmatprep.subr.mxu0 0.0
        %1075 = vmatpush1.msra.mxu0 0.0
        %1076 = vmatprep.subr.mxu0 0.0
        %1077 = vmatpush1.msra.mxu0 0.0
        %1078 = vmatprep.subr.mxu0 0.0
        %1079 = vmatpush1.msra.mxu0 0.0
        %1080 = vmatprep.mubr.f32.mxu0 0.0
        %1081 = vmatmul.mubr.f32.gmra.mrb[0].mxu0 %v282
        %v1082 = vpop.f32.mrb[0].mxu0
        %v1083 = vadd.f32 0.0, %v1082
        %v1084 = vpop.f32.mrb[0].mxu0
        %1085 = vdwg.mxu0
        %1086 = vmatprep.subr.mxu0 0.0
        %1087 = vmatpush1.msra.mxu0 %v856
        %1088 = vmatprep.subr.mxu0 0.0
        %1089 = vmatpush1.msra.mxu0 %v857
        %1090 = vmatprep.subr.mxu0 0.0
        %1091 = vmatpush1.msra.mxu0 %v858
        %1092 = vmatprep.subr.mxu0 0.0
        %1093 = vmatpush1.msra.mxu0 %v859
        %1094 = vmatprep.subr.mxu0 0.0
        %1095 = vmatpush1.msra.mxu0 0.0
        %1096 = vmatprep.subr.mxu0 0.0
        %1097 = vmatpush1.msra.mxu0 0.0
        %1098 = vmatprep.subr.mxu0 0.0
        %1099 = vmatpush1.msra.mxu0 0.0
        %1100 = vmatprep.subr.mxu0 0.0
        %1101 = vmatpush1.msra.mxu0 0.0
        %1102 = vmatprep.subr.mxu0 0.0
        %1103 = vmatpush1.msra.mxu0 0.0
        %1104 = vmatprep.subr.mxu0 0.0
        %1105 = vmatpush1.msra.mxu0 0.0
        %1106 = vmatprep.subr.mxu0 0.0
        %1107 = vmatpush1.msra.mxu0 0.0
        %1108 = vmatprep.subr.mxu0 0.0
        %1109 = vmatpush1.msra.mxu0 0.0
        %1110 = vmatprep.subr.mxu0 0.0
        %1111 = vmatpush1.msra.mxu0 0.0
        %1112 = vmatprep.subr.mxu0 0.0
        %1113 = vmatpush1.msra.mxu0 0.0
        %1114 = vmatprep.subr.mxu0 0.0
        %1115 = vmatpush1.msra.mxu0 0.0
        %1116 = vmatprep.subr.mxu0 0.0
        %1117 = vmatpush1.msra.mxu0 0.0
        %1118 = vmatprep.subr.mxu0 0.0
        %1119 = vmatpush1.msra.mxu0 0.0
        %1120 = vmatprep.subr.mxu0 0.0
        %1121 = vmatpush1.msra.mxu0 0.0
        %1122 = vmatprep.subr.mxu0 0.0
        %1123 = vmatpush1.msra.mxu0 0.0
        %1124 = vmatprep.subr.mxu0 0.0
        %1125 = vmatpush1.msra.mxu0 0.0
        %1126 = vmatprep.subr.mxu0 0.0
        %1127 = vmatpush1.msra.mxu0 0.0
        %1128 = vmatprep.subr.mxu0 0.0
        %1129 = vmatpush1.msra.mxu0 0.0
        %1130 = vmatprep.subr.mxu0 0.0
        %1131 = vmatpush1.msra.mxu0 0.0
        %1132 = vmatprep.subr.mxu0 0.0
        %1133 = vmatpush1.msra.mxu0 0.0
        %1134 = vmatprep.subr.mxu0 0.0
        %1135 = vmatpush1.msra.mxu0 0.0
        %1136 = vmatprep.subr.mxu0 0.0
        %1137 = vmatpush1.msra.mxu0 0.0
        %1138 = vmatprep.subr.mxu0 0.0
        %1139 = vmatpush1.msra.mxu0 0.0
        %1140 = vmatprep.subr.mxu0 0.0
        %1141 = vmatpush1.msra.mxu0 0.0
        %1142 = vmatprep.subr.mxu0 0.0
        %1143 = vmatpush1.msra.mxu0 0.0
        %1144 = vmatprep.subr.mxu0 0.0
        %1145 = vmatpush1.msra.mxu0 0.0
        %1146 = vmatprep.subr.mxu0 0.0
        %1147 = vmatpush1.msra.mxu0 0.0
        %1148 = vmatprep.subr.mxu0 0.0
        %1149 = vmatpush1.msra.mxu0 0.0
        %1150 = vmatprep.mubr.f32.mxu0 0.0
        %1151 = vmatmul.mubr.f32.gmra.mrb[0].mxu0 %v282
        %v1152 = vpop.f32.mrb[0].mxu0
        %v1153 = vadd.f32 0.0, %v1152
        %v1154 = vpop.f32.mrb[0].mxu0
        %1155 = vdwg.mxu0
        %1156 = vmatprep.subr.mxu0 0.0
        %1157 = vmatpush1.msra.mxu0 %v860
        %1158 = vmatprep.subr.mxu0 0.0
        %1159 = vmatpush1.msra.mxu0 %v861
        %1160 = vmatprep.subr.mxu0 0.0
        %1161 = vmatpush1.msra.mxu0 %v862
        %1162 = vmatprep.subr.mxu0 0.0
        %1163 = vmatpush1.msra.mxu0 %v863
        %1164 = vmatprep.subr.mxu0 0.0
        %1165 = vmatpush1.msra.mxu0 0.0
        %1166 = vmatprep.subr.mxu0 0.0
        %1167 = vmatpush1.msra.mxu0 0.0
        %1168 = vmatprep.subr.mxu0 0.0
        %1169 = vmatpush1.msra.mxu0 0.0
        %1170 = vmatprep.subr.mxu0 0.0
        %1171 = vmatpush1.msra.mxu0 0.0
        %1172 = vmatprep.subr.mxu0 0.0
        %1173 = vmatpush1.msra.mxu0 0.0
        %1174 = vmatprep.subr.mxu0 0.0
        %1175 = vmatpush1.msra.mxu0 0.0
        %1176 = vmatprep.subr.mxu0 0.0
        %1177 = vmatpush1.msra.mxu0 0.0
        %1178 = vmatprep.subr.mxu0 0.0
        %1179 = vmatpush1.msra.mxu0 0.0
        %1180 = vmatprep.subr.mxu0 0.0
        %1181 = vmatpush1.msra.mxu0 0.0
        %1182 = vmatprep.subr.mxu0 0.0
        %1183 = vmatpush1.msra.mxu0 0.0
        %1184 = vmatprep.subr.mxu0 0.0
        %1185 = vmatpush1.msra.mxu0 0.0
        %1186 = vmatprep.subr.mxu0 0.0
        %1187 = vmatpush1.msra.mxu0 0.0
        %1188 = vmatprep.subr.mxu0 0.0
        %1189 = vmatpush1.msra.mxu0 0.0
        %1190 = vmatprep.subr.mxu0 0.0
        %1191 = vmatpush1.msra.mxu0 0.0
        %1192 = vmatprep.subr.mxu0 0.0
        %1193 = vmatpush1.msra.mxu0 0.0
        %1194 = vmatprep.subr.mxu0 0.0
        %1195 = vmatpush1.msra.mxu0 0.0
        %1196 = vmatprep.subr.mxu0 0.0
        %1197 = vmatpush1.msra.mxu0 0.0
        %1198 = vmatprep.subr.mxu0 0.0
        %1199 = vmatpush1.msra.mxu0 0.0
        %1200 = vmatprep.subr.mxu0 0.0
        %1201 = vmatpush1.msra.mxu0 0.0
        %1202 = vmatprep.subr.mxu0 0.0
        %1203 = vmatpush1.msra.mxu0 0.0
        %1204 = vmatprep.subr.mxu0 0.0
        %1205 = vmatpush1.msra.mxu0 0.0
        %1206 = vmatprep.subr.mxu0 0.0
        %1207 = vmatpush1.msra.mxu0 0.0
        %1208 = vmatprep.subr.mxu0 0.0
        %1209 = vmatpush1.msra.mxu0 0.0
        %1210 = vmatprep.subr.mxu0 0.0
        %1211 = vmatpush1.msra.mxu0 0.0
        %1212 = vmatprep.subr.mxu0 0.0
        %1213 = vmatpush1.msra.mxu0 0.0
        %1214 = vmatprep.subr.mxu0 0.0
        %1215 = vmatpush1.msra.mxu0 0.0
        %1216 = vmatprep.subr.mxu0 0.0
        %1217 = vmatpush1.msra.mxu0 0.0
        %1218 = vmatprep.subr.mxu0 0.0
        %1219 = vmatpush1.msra.mxu0 0.0
        %1220 = vmatprep.mubr.f32.mxu0 0.0
        %1221 = vmatmul.mubr.f32.gmra.mrb[0].mxu0 %v282
        %v1222 = vpop.f32.mrb[0].mxu0
        %v1223 = vadd.f32 0.0, %v1222
        %v1224 = vpop.f32.mrb[0].mxu0
        %1225 = vdwg.mxu0
        %1226 = vmatprep.subr.mxu0 0.0
        %1227 = vmatpush1.msra.mxu0 %v864
        %1228 = vmatprep.subr.mxu0 0.0
        %1229 = vmatpush1.msra.mxu0 %v865
        %1230 = vmatprep.subr.mxu0 0.0
        %1231 = vmatpush1.msra.mxu0 %v866
        %1232 = vmatprep.subr.mxu0 0.0
        %1233 = vmatpush1.msra.mxu0 %v867
        %1234 = vmatprep.subr.mxu0 0.0
        %1235 = vmatpush1.msra.mxu0 0.0
        %1236 = vmatprep.subr.mxu0 0.0
        %1237 = vmatpush1.msra.mxu0 0.0
        %1238 = vmatprep.subr.mxu0 0.0
        %1239 = vmatpush1.msra.mxu0 0.0
        %1240 = vmatprep.subr.mxu0 0.0
        %1241 = vmatpush1.msra.mxu0 0.0
        %1242 = vmatprep.subr.mxu0 0.0
        %1243 = vmatpush1.msra.mxu0 0.0
        %1244 = vmatprep.subr.mxu0 0.0
        %1245 = vmatpush1.msra.mxu0 0.0
        %1246 = vmatprep.subr.mxu0 0.0
        %1247 = vmatpush1.msra.mxu0 0.0
        %1248 = vmatprep.subr.mxu0 0.0
        %1249 = vmatpush1.msra.mxu0 0.0
        %1250 = vmatprep.subr.mxu0 0.0
        %1251 = vmatpush1.msra.mxu0 0.0
        %1252 = vmatprep.subr.mxu0 0.0
        %1253 = vmatpush1.msra.mxu0 0.0
        %1254 = vmatprep.subr.mxu0 0.0
        %1255 = vmatpush1.msra.mxu0 0.0
        %1256 = vmatprep.subr.mxu0 0.0
        %1257 = vmatpush1.msra.mxu0 0.0
        %1258 = vmatprep.subr.mxu0 0.0
        %1259 = vmatpush1.msra.mxu0 0.0
        %1260 = vmatprep.subr.mxu0 0.0
        %1261 = vmatpush1.msra.mxu0 0.0
        %1262 = vmatprep.subr.mxu0 0.0
        %1263 = vmatpush1.msra.mxu0 0.0
        %1264 = vmatprep.subr.mxu0 0.0
        %1265 = vmatpush1.msra.mxu0 0.0
        %1266 = vmatprep.subr.mxu0 0.0
        %1267 = vmatpush1.msra.mxu0 0.0
        %1268 = vmatprep.subr.mxu0 0.0
        %1269 = vmatpush1.msra.mxu0 0.0
        %1270 = vmatprep.subr.mxu0 0.0
        %1271 = vmatpush1.msra.mxu0 0.0
        %1272 = vmatprep.subr.mxu0 0.0
        %1273 = vmatpush1.msra.mxu0 0.0
        %1274 = vmatprep.subr.mxu0 0.0
        %1275 = vmatpush1.msra.mxu0 0.0
        %1276 = vmatprep.subr.mxu0 0.0
        %1277 = vmatpush1.msra.mxu0 0.0
        %1278 = vmatprep.subr.mxu0 0.0
        %1279 = vmatpush1.msra.mxu0 0.0
        %1280 = vmatprep.subr.mxu0 0.0
        %1281 = vmatpush1.msra.mxu0 0.0
        %1282 = vmatprep.subr.mxu0 0.0
        %1283 = vmatpush1.msra.mxu0 0.0
        %1284 = vmatprep.subr.mxu0 0.0
        %1285 = vmatpush1.msra.mxu0 0.0
        %1286 = vmatprep.subr.mxu0 0.0
        %1287 = vmatpush1.msra.mxu0 0.0
        %1288 = vmatprep.subr.mxu0 0.0
        %1289 = vmatpush1.msra.mxu0 0.0
        %1290 = vmatprep.mubr.f32.mxu0 0.0
        %1291 = vmatmul.mubr.f32.gmra.mrb[0].mxu0 %v282
        %v1292 = vpop.f32.mrb[0].mxu0
        %v1293 = vadd.f32 0.0, %v1292
        %v1294 = vpop.f32.mrb[0].mxu0
        %1295 = vdwg.mxu0
        %1296 = vmatprep.subr.mxu0 0.0
        %1297 = vmatpush1.msra.mxu0 %v868
        %1298 = vmatprep.subr.mxu0 0.0
        %1299 = vmatpush1.msra.mxu0 %v869
        %1300 = vmatprep.subr.mxu0 0.0
        %1301 = vmatpush1.msra.mxu0 %v870
        %1302 = vmatprep.subr.mxu0 0.0
        %1303 = vmatpush1.msra.mxu0 %v871
        %1304 = vmatprep.subr.mxu0 0.0
        %1305 = vmatpush1.msra.mxu0 0.0
        %1306 = vmatprep.subr.mxu0 0.0
        %1307 = vmatpush1.msra.mxu0 0.0
        %1308 = vmatprep.subr.mxu0 0.0
        %1309 = vmatpush1.msra.mxu0 0.0
        %1310 = vmatprep.subr.mxu0 0.0
        %1311 = vmatpush1.msra.mxu0 0.0
        %1312 = vmatprep.subr.mxu0 0.0
        %1313 = vmatpush1.msra.mxu0 0.0
        %1314 = vmatprep.subr.mxu0 0.0
        %1315 = vmatpush1.msra.mxu0 0.0
        %1316 = vmatprep.subr.mxu0 0.0
        %1317 = vmatpush1.msra.mxu0 0.0
        %1318 = vmatprep.subr.mxu0 0.0
        %1319 = vmatpush1.msra.mxu0 0.0
        %1320 = vmatprep.subr.mxu0 0.0
        %1321 = vmatpush1.msra.mxu0 0.0
        %1322 = vmatprep.subr.mxu0 0.0
        %1323 = vmatpush1.msra.mxu0 0.0
        %1324 = vmatprep.subr.mxu0 0.0
        %1325 = vmatpush1.msra.mxu0 0.0
        %1326 = vmatprep.subr.mxu0 0.0
        %1327 = vmatpush1.msra.mxu0 0.0
        %1328 = vmatprep.subr.mxu0 0.0
        %1329 = vmatpush1.msra.mxu0 0.0
        %1330 = vmatprep.subr.mxu0 0.0
        %1331 = vmatpush1.msra.mxu0 0.0
        %1332 = vmatprep.subr.mxu0 0.0
        %1333 = vmatpush1.msra.mxu0 0.0
        %1334 = vmatprep.subr.mxu0 0.0
        %1335 = vmatpush1.msra.mxu0 0.0
        %1336 = vmatprep.subr.mxu0 0.0
        %1337 = vmatpush1.msra.mxu0 0.0
        %1338 = vmatprep.subr.mxu0 0.0
        %1339 = vmatpush1.msra.mxu0 0.0
        %1340 = vmatprep.subr.mxu0 0.0
        %1341 = vmatpush1.msra.mxu0 0.0
        %1342 = vmatprep.subr.mxu0 0.0
        %1343 = vmatpush1.msra.mxu0 0.0
        %1344 = vmatprep.subr.mxu0 0.0
        %1345 = vmatpush1.msra.mxu0 0.0
        %1346 = vmatprep.subr.mxu0 0.0
        %1347 = vmatpush1.msra.mxu0 0.0
        %1348 = vmatprep.subr.mxu0 0.0
        %1349 = vmatpush1.msra.mxu0 0.0
        %1350 = vmatprep.subr.mxu0 0.0
        %1351 = vmatpush1.msra.mxu0 0.0
        %1352 = vmatprep.subr.mxu0 0.0
        %1353 = vmatpush1.msra.mxu0 0.0
        %1354 = vmatprep.subr.mxu0 0.0
        %1355 = vmatpush1.msra.mxu0 0.0
        %1356 = vmatprep.subr.mxu0 0.0
        %1357 = vmatpush1.msra.mxu0 0.0
        %1358 = vmatprep.subr.mxu0 0.0
        %1359 = vmatpush1.msra.mxu0 0.0
        %1360 = vmatprep.mubr.f32.mxu0 0.0
        %1361 = vmatmul.mubr.f32.gmra.mrb[0].mxu0 %v282
        %v1362 = vpop.f32.mrb[0].mxu0
        %v1363 = vadd.f32 0.0, %v1362
        %v1364 = vpop.f32.mrb[0].mxu0
        %1365 = vdwg.mxu0
        %1366 = vmatprep.subr.mxu0 0.0
        %1367 = vmatpush1.msra.mxu0 %v872
        %1368 = vmatprep.subr.mxu0 0.0
        %1369 = vmatpush1.msra.mxu0 %v873
        %1370 = vmatprep.subr.mxu0 0.0
        %1371 = vmatpush1.msra.mxu0 %v874
        %1372 = vmatprep.subr.mxu0 0.0
        %1373 = vmatpush1.msra.mxu0 %v875
        %1374 = vmatprep.subr.mxu0 0.0
        %1375 = vmatpush1.msra.mxu0 0.0
        %1376 = vmatprep.subr.mxu0 0.0
        %1377 = vmatpush1.msra.mxu0 0.0
        %1378 = vmatprep.subr.mxu0 0.0
        %1379 = vmatpush1.msra.mxu0 0.0
        %1380 = vmatprep.subr.mxu0 0.0
        %1381 = vmatpush1.msra.mxu0 0.0
        %1382 = vmatprep.subr.mxu0 0.0
        %1383 = vmatpush1.msra.mxu0 0.0
        %1384 = vmatprep.subr.mxu0 0.0
        %1385 = vmatpush1.msra.mxu0 0.0
        %1386 = vmatprep.subr.mxu0 0.0
        %1387 = vmatpush1.msra.mxu0 0.0
        %1388 = vmatprep.subr.mxu0 0.0
        %1389 = vmatpush1.msra.mxu0 0.0
        %1390 = vmatprep.subr.mxu0 0.0
        %1391 = vmatpush1.msra.mxu0 0.0
        %1392 = vmatprep.subr.mxu0 0.0
        %1393 = vmatpush1.msra.mxu0 0.0
        %1394 = vmatprep.subr.mxu0 0.0
        %1395 = vmatpush1.msra.mxu0 0.0
        %1396 = vmatprep.subr.mxu0 0.0
        %1397 = vmatpush1.msra.mxu0 0.0
        %1398 = vmatprep.subr.mxu0 0.0
        %1399 = vmatpush1.msra.mxu0 0.0
        %1400 = vmatprep.subr.mxu0 0.0
        %1401 = vmatpush1.msra.mxu0 0.0
        %1402 = vmatprep.subr.mxu0 0.0
        %1403 = vmatpush1.msra.mxu0 0.0
        %1404 = vmatprep.subr.mxu0 0.0
        %1405 = vmatpush1.msra.mxu0 0.0
        %1406 = vmatprep.subr.mxu0 0.0
        %1407 = vmatpush1.msra.mxu0 0.0
        %1408 = vmatprep.subr.mxu0 0.0
        %1409 = vmatpush1.msra.mxu0 0.0
        %1410 = vmatprep.subr.mxu0 0.0
        %1411 = vmatpush1.msra.mxu0 0.0
        %1412 = vmatprep.subr.mxu0 0.0
        %1413 = vmatpush1.msra.mxu0 0.0
        %1414 = vmatprep.subr.mxu0 0.0
        %1415 = vmatpush1.msra.mxu0 0.0
        %1416 = vmatprep.subr.mxu0 0.0
        %1417 = vmatpush1.msra.mxu0 0.0
        %1418 = vmatprep.subr.mxu0 0.0
        %1419 = vmatpush1.msra.mxu0 0.0
        %1420 = vmatprep.subr.mxu0 0.0
        %1421 = vmatpush1.msra.mxu0 0.0
        %1422 = vmatprep.subr.mxu0 0.0
        %1423 = vmatpush1.msra.mxu0 0.0
        %1424 = vmatprep.subr.mxu0 0.0
        %1425 = vmatpush1.msra.mxu0 0.0
        %1426 = vmatprep.subr.mxu0 0.0
        %1427 = vmatpush1.msra.mxu0 0.0
        %1428 = vmatprep.subr.mxu0 0.0
        %1429 = vmatpush1.msra.mxu0 0.0
        %1430 = vmatprep.mubr.f32.mxu0 0.0
        %1431 = vmatmul.mubr.f32.gmra.mrb[0].mxu0 %v282
        %v1432 = vpop.f32.mrb[0].mxu0
        %v1433 = vadd.f32 0.0, %v1432
        %v1434 = vpop.f32.mrb[0].mxu0
        %1435 = vdwg.mxu0
        %v1436 = vld [vmem:[%s3] sm:$0xff]
        %v1437 = vld [vmem:[%s3 + $0x8] sm:$0xff]
        %v1438 = vld [vmem:[%s3 + $0x10] sm:$0xff]
        %v1439 = vld [vmem:[%s3 + $0x18] sm:$0xff]
        %v1440 = vld [vmem:[%s3 + $0x20] sm:$0xff]
        %v1441 = vld [vmem:[%s3 + $0x28] sm:$0xff]
        %v1442 = vld [vmem:[%s3 + $0x30] sm:$0xff]
        %v1443 = vld [vmem:[%s3 + $0x38] sm:$0xff]
        %v1444 = vld [vmem:[%s3 + $0x40] sm:$0xff]
        %v1445 = vld [vmem:[%s3 + $0x48] sm:$0xff]
        %v1446 = vld [vmem:[%s3 + $0x50] sm:$0xff]
        %v1447 = vld [vmem:[%s3 + $0x58] sm:$0xff]
        %v1448 = vld [vmem:[%s3 + $0x60] sm:$0xff]
        %v1449 = vld [vmem:[%s3 + $0x68] sm:$0xff]
        %v1450 = vld [vmem:[%s3 + $0x70] sm:$0xff]
        %v1451 = vld [vmem:[%s3 + $0x78] sm:$0xff]
        %v1452 = vld [vmem:[%s3 + $0x80] sm:$0xff]
        %v1453 = vld [vmem:[%s3 + $0x88] sm:$0xff]
        %v1454 = vld [vmem:[%s3 + $0x90] sm:$0xff]
        %v1455 = vld [vmem:[%s3 + $0x98] sm:$0xff]
        %v1456 = vld [vmem:[%s3 + $0xa0] sm:$0xff]
        %v1457 = vld [vmem:[%s3 + $0xa8] sm:$0xff]
        %v1458 = vld [vmem:[%s3 + $0xb0] sm:$0xff]
        %v1459 = vld [vmem:[%s3 + $0xb8] sm:$0xff]
        %v1460 = vld [vmem:[%s3 + $0xc0] sm:$0xff]
        %v1461 = vld [vmem:[%s3 + $0xc8] sm:$0xff]
        %v1462 = vld [vmem:[%s3 + $0xd0] sm:$0xff]
        %v1463 = vld [vmem:[%s3 + $0xd8] sm:$0xff]
        %v1464 = vld [vmem:[%s3 + $0xe0] sm:$0xff]
        %v1465 = vld [vmem:[%s3 + $0xe8] sm:$0xff]
        %v1466 = vld [vmem:[%s3 + $0xf0] sm:$0xff]
        %v1467 = vld [vmem:[%s3 + $0xf8] sm:$0xff]
        %1468 = vmatprep.subr.mxu0 0.0
        %1469 = vmatpush1.msra.mxu0 %v1436
        %1470 = vmatprep.subr.mxu0 0.0
        %1471 = vmatpush1.msra.mxu0 %v1437
        %1472 = vmatprep.subr.mxu0 0.0
        %1473 = vmatpush1.msra.mxu0 %v1438
        %1474 = vmatprep.subr.mxu0 0.0
        %1475 = vmatpush1.msra.mxu0 %v1439
        %1476 = vmatprep.subr.mxu0 0.0
        %1477 = vmatpush1.msra.mxu0 0.0
        %1478 = vmatprep.subr.mxu0 0.0
        %1479 = vmatpush1.msra.mxu0 0.0
        %1480 = vmatprep.subr.mxu0 0.0
        %1481 = vmatpush1.msra.mxu0 0.0
        %1482 = vmatprep.subr.mxu0 0.0
        %1483 = vmatpush1.msra.mxu0 0.0
        %1484 = vmatprep.subr.mxu0 0.0
        %1485 = vmatpush1.msra.mxu0 0.0
        %1486 = vmatprep.subr.mxu0 0.0
        %1487 = vmatpush1.msra.mxu0 0.0
        %1488 = vmatprep.subr.mxu0 0.0
        %1489 = vmatpush1.msra.mxu0 0.0
        %1490 = vmatprep.subr.mxu0 0.0
        %1491 = vmatpush1.msra.mxu0 0.0
        %1492 = vmatprep.subr.mxu0 0.0
        %1493 = vmatpush1.msra.mxu0 0.0
        %1494 = vmatprep.subr.mxu0 0.0
        %1495 = vmatpush1.msra.mxu0 0.0
        %1496 = vmatprep.subr.mxu0 0.0
        %1497 = vmatpush1.msra.mxu0 0.0
        %1498 = vmatprep.subr.mxu0 0.0
        %1499 = vmatpush1.msra.mxu0 0.0
        %1500 = vmatprep.subr.mxu0 0.0
        %1501 = vmatpush1.msra.mxu0 0.0
        %1502 = vmatprep.subr.mxu0 0.0
        %1503 = vmatpush1.msra.mxu0 0.0
        %1504 = vmatprep.subr.mxu0 0.0
        %1505 = vmatpush1.msra.mxu0 0.0
        %1506 = vmatprep.subr.mxu0 0.0
        %1507 = vmatpush1.msra.mxu0 0.0
        %1508 = vmatprep.subr.mxu0 0.0
        %1509 = vmatpush1.msra.mxu0 0.0
        %1510 = vmatprep.subr.mxu0 0.0
        %1511 = vmatpush1.msra.mxu0 0.0
        %1512 = vmatprep.subr.mxu0 0.0
        %1513 = vmatpush1.msra.mxu0 0.0
        %1514 = vmatprep.subr.mxu0 0.0
        %1515 = vmatpush1.msra.mxu0 0.0
        %1516 = vmatprep.subr.mxu0 0.0
        %1517 = vmatpush1.msra.mxu0 0.0
        %1518 = vmatprep.subr.mxu0 0.0
        %1519 = vmatpush1.msra.mxu0 0.0
        %1520 = vmatprep.subr.mxu0 0.0
        %1521 = vmatpush1.msra.mxu0 0.0
        %1522 = vmatprep.subr.mxu0 0.0
        %1523 = vmatpush1.msra.mxu0 0.0
        %1524 = vmatprep.subr.mxu0 0.0
        %1525 = vmatpush1.msra.mxu0 0.0
        %1526 = vmatprep.subr.mxu0 0.0
        %1527 = vmatpush1.msra.mxu0 0.0
        %1528 = vmatprep.subr.mxu0 0.0
        %1529 = vmatpush1.msra.mxu0 0.0
        %1530 = vmatprep.subr.mxu0 0.0
        %1531 = vmatpush1.msra.mxu0 0.0
        %1532 = vmatprep.mubr.f32.mxu0 0.0
        %1533 = vmatmul.mubr.f32.gmra.mrb[0].mxu0 %v282
        %v1534 = vpop.f32.mrb[0].mxu0
        %v1535 = vadd.f32 0.0, %v1534
        %v1536 = vpop.f32.mrb[0].mxu0
        %1537 = vdwg.mxu0
        %1538 = vmatprep.subr.mxu0 0.0
        %1539 = vmatpush1.msra.mxu0 %v1440
        %1540 = vmatprep.subr.mxu0 0.0
        %1541 = vmatpush1.msra.mxu0 %v1441
        %1542 = vmatprep.subr.mxu0 0.0
        %1543 = vmatpush1.msra.mxu0 %v1442
        %1544 = vmatprep.subr.mxu0 0.0
        %1545 = vmatpush1.msra.mxu0 %v1443
        %1546 = vmatprep.subr.mxu0 0.0
        %1547 = vmatpush1.msra.mxu0 0.0
        %1548 = vmatprep.subr.mxu0 0.0
        %1549 = vmatpush1.msra.mxu0 0.0
        %1550 = vmatprep.subr.mxu0 0.0
        %1551 = vmatpush1.msra.mxu0 0.0
        %1552 = vmatprep.subr.mxu0 0.0
        %1553 = vmatpush1.msra.mxu0 0.0
        %1554 = vmatprep.subr.mxu0 0.0
        %1555 = vmatpush1.msra.mxu0 0.0
        %1556 = vmatprep.subr.mxu0 0.0
        %1557 = vmatpush1.msra.mxu0 0.0
        %1558 = vmatprep.subr.mxu0 0.0
        %1559 = vmatpush1.msra.mxu0 0.0
        %1560 = vmatprep.subr.mxu0 0.0
        %1561 = vmatpush1.msra.mxu0 0.0
        %1562 = vmatprep.subr.mxu0 0.0
        %1563 = vmatpush1.msra.mxu0 0.0
        %1564 = vmatprep.subr.mxu0 0.0
        %1565 = vmatpush1.msra.mxu0 0.0
        %1566 = vmatprep.subr.mxu0 0.0
        %1567 = vmatpush1.msra.mxu0 0.0
        %1568 = vmatprep.subr.mxu0 0.0
        %1569 = vmatpush1.msra.mxu0 0.0
        %1570 = vmatprep.subr.mxu0 0.0
        %1571 = vmatpush1.msra.mxu0 0.0
        %1572 = vmatprep.subr.mxu0 0.0
        %1573 = vmatpush1.msra.mxu0 0.0
        %1574 = vmatprep.subr.mxu0 0.0
        %1575 = vmatpush1.msra.mxu0 0.0
        %1576 = vmatprep.subr.mxu0 0.0
        %1577 = vmatpush1.msra.mxu0 0.0
        %1578 = vmatprep.subr.mxu0 0.0
        %1579 = vmatpush1.msra.mxu0 0.0
        %1580 = vmatprep.subr.mxu0 0.0
        %1581 = vmatpush1.msra.mxu0 0.0
        %1582 = vmatprep.subr.mxu0 0.0
        %1583 = vmatpush1.msra.mxu0 0.0
        %1584 = vmatprep.subr.mxu0 0.0
        %1585 = vmatpush1.msra.mxu0 0.0
        %1586 = vmatprep.subr.mxu0 0.0
        %1587 = vmatpush1.msra.mxu0 0.0
        %1588 = vmatprep.subr.mxu0 0.0
        %1589 = vmatpush1.msra.mxu0 0.0
        %1590 = vmatprep.subr.mxu0 0.0
        %1591 = vmatpush1.msra.mxu0 0.0
        %1592 = vmatprep.subr.mxu0 0.0
        %1593 = vmatpush1.msra.mxu0 0.0
        %1594 = vmatprep.subr.mxu0 0.0
        %1595 = vmatpush1.msra.mxu0 0.0
        %1596 = vmatprep.subr.mxu0 0.0
        %1597 = vmatpush1.msra.mxu0 0.0
        %1598 = vmatprep.subr.mxu0 0.0
        %1599 = vmatpush1.msra.mxu0 0.0
        %1600 = vmatprep.subr.mxu0 0.0
        %1601 = vmatpush1.msra.mxu0 0.0
        %1602 = vmatprep.mubr.f32.mxu0 0.0
        %1603 = vmatmul.mubr.f32.gmra.mrb[0].mxu0 %v282
        %v1604 = vpop.f32.mrb[0].mxu0
        %v1605 = vadd.f32 0.0, %v1604
        %v1606 = vpop.f32.mrb[0].mxu0
        %1607 = vdwg.mxu0
        %1608 = vmatprep.subr.mxu0 0.0
        %1609 = vmatpush1.msra.mxu0 %v1444
        %1610 = vmatprep.subr.mxu0 0.0
        %1611 = vmatpush1.msra.mxu0 %v1445
        %1612 = vmatprep.subr.mxu0 0.0
        %1613 = vmatpush1.msra.mxu0 %v1446
        %1614 = vmatprep.subr.mxu0 0.0
        %1615 = vmatpush1.msra.mxu0 %v1447
        %1616 = vmatprep.subr.mxu0 0.0
        %1617 = vmatpush1.msra.mxu0 0.0
        %1618 = vmatprep.subr.mxu0 0.0
        %1619 = vmatpush1.msra.mxu0 0.0
        %1620 = vmatprep.subr.mxu0 0.0
        %1621 = vmatpush1.msra.mxu0 0.0
        %1622 = vmatprep.subr.mxu0 0.0
        %1623 = vmatpush1.msra.mxu0 0.0
        %1624 = vmatprep.subr.mxu0 0.0
        %1625 = vmatpush1.msra.mxu0 0.0
        %1626 = vmatprep.subr.mxu0 0.0
        %1627 = vmatpush1.msra.mxu0 0.0
        %1628 = vmatprep.subr.mxu0 0.0
        %1629 = vmatpush1.msra.mxu0 0.0
        %1630 = vmatprep.subr.mxu0 0.0
        %1631 = vmatpush1.msra.mxu0 0.0
        %1632 = vmatprep.subr.mxu0 0.0
        %1633 = vmatpush1.msra.mxu0 0.0
        %1634 = vmatprep.subr.mxu0 0.0
        %1635 = vmatpush1.msra.mxu0 0.0
        %1636 = vmatprep.subr.mxu0 0.0
        %1637 = vmatpush1.msra.mxu0 0.0
        %1638 = vmatprep.subr.mxu0 0.0
        %1639 = vmatpush1.msra.mxu0 0.0
        %1640 = vmatprep.subr.mxu0 0.0
        %1641 = vmatpush1.msra.mxu0 0.0
        %1642 = vmatprep.subr.mxu0 0.0
        %1643 = vmatpush1.msra.mxu0 0.0
        %1644 = vmatprep.subr.mxu0 0.0
        %1645 = vmatpush1.msra.mxu0 0.0
        %1646 = vmatprep.subr.mxu0 0.0
        %1647 = vmatpush1.msra.mxu0 0.0
        %1648 = vmatprep.subr.mxu0 0.0
        %1649 = vmatpush1.msra.mxu0 0.0
        %1650 = vmatprep.subr.mxu0 0.0
        %1651 = vmatpush1.msra.mxu0 0.0
        %1652 = vmatprep.subr.mxu0 0.0
        %1653 = vmatpush1.msra.mxu0 0.0
        %1654 = vmatprep.subr.mxu0 0.0
        %1655 = vmatpush1.msra.mxu0 0.0
        %1656 = vmatprep.subr.mxu0 0.0
        %1657 = vmatpush1.msra.mxu0 0.0
        %1658 = vmatprep.subr.mxu0 0.0
        %1659 = vmatpush1.msra.mxu0 0.0
        %1660 = vmatprep.subr.mxu0 0.0
        %1661 = vmatpush1.msra.mxu0 0.0
        %1662 = vmatprep.subr.mxu0 0.0
        %1663 = vmatpush1.msra.mxu0 0.0
        %1664 = vmatprep.subr.mxu0 0.0
        %1665 = vmatpush1.msra.mxu0 0.0
        %1666 = vmatprep.subr.mxu0 0.0
        %1667 = vmatpush1.msra.mxu0 0.0
        %1668 = vmatprep.subr.mxu0 0.0
        %1669 = vmatpush1.msra.mxu0 0.0
        %1670 = vmatprep.subr.mxu0 0.0
        %1671 = vmatpush1.msra.mxu0 0.0
        %1672 = vmatprep.mubr.f32.mxu0 0.0
        %1673 = vmatmul.mubr.f32.gmra.mrb[0].mxu0 %v282
        %v1674 = vpop.f32.mrb[0].mxu0
        %v1675 = vadd.f32 0.0, %v1674
        %v1676 = vpop.f32.mrb[0].mxu0
        %1677 = vdwg.mxu0
        %1678 = vmatprep.subr.mxu0 0.0
        %1679 = vmatpush1.msra.mxu0 %v1448
        %1680 = vmatprep.subr.mxu0 0.0
        %1681 = vmatpush1.msra.mxu0 %v1449
        %1682 = vmatprep.subr.mxu0 0.0
        %1683 = vmatpush1.msra.mxu0 %v1450
        %1684 = vmatprep.subr.mxu0 0.0
        %1685 = vmatpush1.msra.mxu0 %v1451
        %1686 = vmatprep.subr.mxu0 0.0
        %1687 = vmatpush1.msra.mxu0 0.0
        %1688 = vmatprep.subr.mxu0 0.0
        %1689 = vmatpush1.msra.mxu0 0.0
        %1690 = vmatprep.subr.mxu0 0.0
        %1691 = vmatpush1.msra.mxu0 0.0
        %1692 = vmatprep.subr.mxu0 0.0
        %1693 = vmatpush1.msra.mxu0 0.0
        %1694 = vmatprep.subr.mxu0 0.0
        %1695 = vmatpush1.msra.mxu0 0.0
        %1696 = vmatprep.subr.mxu0 0.0
        %1697 = vmatpush1.msra.mxu0 0.0
        %1698 = vmatprep.subr.mxu0 0.0
        %1699 = vmatpush1.msra.mxu0 0.0
        %1700 = vmatprep.subr.mxu0 0.0
        %1701 = vmatpush1.msra.mxu0 0.0
        %1702 = vmatprep.subr.mxu0 0.0
        %1703 = vmatpush1.msra.mxu0 0.0
        %1704 = vmatprep.subr.mxu0 0.0
        %1705 = vmatpush1.msra.mxu0 0.0
        %1706 = vmatprep.subr.mxu0 0.0
        %1707 = vmatpush1.msra.mxu0 0.0
        %1708 = vmatprep.subr.mxu0 0.0
        %1709 = vmatpush1.msra.mxu0 0.0
        %1710 = vmatprep.subr.mxu0 0.0
        %1711 = vmatpush1.msra.mxu0 0.0
        %1712 = vmatprep.subr.mxu0 0.0
        %1713 = vmatpush1.msra.mxu0 0.0
        %1714 = vmatprep.subr.mxu0 0.0
        %1715 = vmatpush1.msra.mxu0 0.0
        %1716 = vmatprep.subr.mxu0 0.0
        %1717 = vmatpush1.msra.mxu0 0.0
        %1718 = vmatprep.subr.mxu0 0.0
        %1719 = vmatpush1.msra.mxu0 0.0
        %1720 = vmatprep.subr.mxu0 0.0
        %1721 = vmatpush1.msra.mxu0 0.0
        %1722 = vmatprep.subr.mxu0 0.0
        %1723 = vmatpush1.msra.mxu0 0.0
        %1724 = vmatprep.subr.mxu0 0.0
        %1725 = vmatpush1.msra.mxu0 0.0
        %1726 = vmatprep.subr.mxu0 0.0
        %1727 = vmatpush1.msra.mxu0 0.0
        %1728 = vmatprep.subr.mxu0 0.0
        %1729 = vmatpush1.msra.mxu0 0.0
        %1730 = vmatprep.subr.mxu0 0.0
        %1731 = vmatpush1.msra.mxu0 0.0
        %1732 = vmatprep.subr.mxu0 0.0
        %1733 = vmatpush1.msra.mxu0 0.0
        %1734 = vmatprep.subr.mxu0 0.0
        %1735 = vmatpush1.msra.mxu0 0.0
        %1736 = vmatprep.subr.mxu0 0.0
        %1737 = vmatpush1.msra.mxu0 0.0
        %1738 = vmatprep.subr.mxu0 0.0
        %1739 = vmatpush1.msra.mxu0 0.0
        %1740 = vmatprep.subr.mxu0 0.0
        %1741 = vmatpush1.msra.mxu0 0.0
        %1742 = vmatprep.mubr.f32.mxu0 0.0
        %1743 = vmatmul.mubr.f32.gmra.mrb[0].mxu0 %v282
        %v1744 = vpop.f32.mrb[0].mxu0
        %v1745 = vadd.f32 0.0, %v1744
        %v1746 = vpop.f32.mrb[0].mxu0
        %1747 = vdwg.mxu0
        %1748 = vmatprep.subr.mxu0 0.0
        %1749 = vmatpush1.msra.mxu0 %v1452
        %1750 = vmatprep.subr.mxu0 0.0
        %1751 = vmatpush1.msra.mxu0 %v1453
        %1752 = vmatprep.subr.mxu0 0.0
        %1753 = vmatpush1.msra.mxu0 %v1454
        %1754 = vmatprep.subr.mxu0 0.0
        %1755 = vmatpush1.msra.mxu0 %v1455
        %1756 = vmatprep.subr.mxu0 0.0
        %1757 = vmatpush1.msra.mxu0 0.0
        %1758 = vmatprep.subr.mxu0 0.0
        %1759 = vmatpush1.msra.mxu0 0.0
        %1760 = vmatprep.subr.mxu0 0.0
        %1761 = vmatpush1.msra.mxu0 0.0
        %1762 = vmatprep.subr.mxu0 0.0
        %1763 = vmatpush1.msra.mxu0 0.0
        %1764 = vmatprep.subr.mxu0 0.0
        %1765 = vmatpush1.msra.mxu0 0.0
        %1766 = vmatprep.subr.mxu0 0.0
        %1767 = vmatpush1.msra.mxu0 0.0
        %1768 = vmatprep.subr.mxu0 0.0
        %1769 = vmatpush1.msra.mxu0 0.0
        %1770 = vmatprep.subr.mxu0 0.0
        %1771 = vmatpush1.msra.mxu0 0.0
        %1772 = vmatprep.subr.mxu0 0.0
        %1773 = vmatpush1.msra.mxu0 0.0
        %1774 = vmatprep.subr.mxu0 0.0
        %1775 = vmatpush1.msra.mxu0 0.0
        %1776 = vmatprep.subr.mxu0 0.0
        %1777 = vmatpush1.msra.mxu0 0.0
        %1778 = vmatprep.subr.mxu0 0.0
        %1779 = vmatpush1.msra.mxu0 0.0
        %1780 = vmatprep.subr.mxu0 0.0
        %1781 = vmatpush1.msra.mxu0 0.0
        %1782 = vmatprep.subr.mxu0 0.0
        %1783 = vmatpush1.msra.mxu0 0.0
        %1784 = vmatprep.subr.mxu0 0.0
        %1785 = vmatpush1.msra.mxu0 0.0
        %1786 = vmatprep.subr.mxu0 0.0
        %1787 = vmatpush1.msra.mxu0 0.0
        %1788 = vmatprep.subr.mxu0 0.0
        %1789 = vmatpush1.msra.mxu0 0.0
        %1790 = vmatprep.subr.mxu0 0.0
        %1791 = vmatpush1.msra.mxu0 0.0
        %1792 = vmatprep.subr.mxu0 0.0
        %1793 = vmatpush1.msra.mxu0 0.0
        %1794 = vmatprep.subr.mxu0 0.0
        %1795 = vmatpush1.msra.mxu0 0.0
        %1796 = vmatprep.subr.mxu0 0.0
        %1797 = vmatpush1.msra.mxu0 0.0
        %1798 = vmatprep.subr.mxu0 0.0
        %1799 = vmatpush1.msra.mxu0 0.0
        %1800 = vmatprep.subr.mxu0 0.0
        %1801 = vmatpush1.msra.mxu0 0.0
        %1802 = vmatprep.subr.mxu0 0.0
        %1803 = vmatpush1.msra.mxu0 0.0
        %1804 = vmatprep.subr.mxu0 0.0
        %1805 = vmatpush1.msra.mxu0 0.0
        %1806 = vmatprep.subr.mxu0 0.0
        %1807 = vmatpush1.msra.mxu0 0.0
        %1808 = vmatprep.subr.mxu0 0.0
        %1809 = vmatpush1.msra.mxu0 0.0
        %1810 = vmatprep.subr.mxu0 0.0
        %1811 = vmatpush1.msra.mxu0 0.0
        %1812 = vmatprep.mubr.f32.mxu0 0.0
        %1813 = vmatmul.mubr.f32.gmra.mrb[0].mxu0 %v282
        %v1814 = vpop.f32.mrb[0].mxu0
        %v1815 = vadd.f32 0.0, %v1814
        %v1816 = vpop.f32.mrb[0].mxu0
        %1817 = vdwg.mxu0
        %1818 = vmatprep.subr.mxu0 0.0
        %1819 = vmatpush1.msra.mxu0 %v1456
        %1820 = vmatprep.subr.mxu0 0.0
        %1821 = vmatpush1.msra.mxu0 %v1457
        %1822 = vmatprep.subr.mxu0 0.0
        %1823 = vmatpush1.msra.mxu0 %v1458
        %1824 = vmatprep.subr.mxu0 0.0
        %1825 = vmatpush1.msra.mxu0 %v1459
        %1826 = vmatprep.subr.mxu0 0.0
        %1827 = vmatpush1.msra.mxu0 0.0
        %1828 = vmatprep.subr.mxu0 0.0
        %1829 = vmatpush1.msra.mxu0 0.0
        %1830 = vmatprep.subr.mxu0 0.0
        %1831 = vmatpush1.msra.mxu0 0.0
        %1832 = vmatprep.subr.mxu0 0.0
        %1833 = vmatpush1.msra.mxu0 0.0
        %1834 = vmatprep.subr.mxu0 0.0
        %1835 = vmatpush1.msra.mxu0 0.0
        %1836 = vmatprep.subr.mxu0 0.0
        %1837 = vmatpush1.msra.mxu0 0.0
        %1838 = vmatprep.subr.mxu0 0.0
        %1839 = vmatpush1.msra.mxu0 0.0
        %1840 = vmatprep.subr.mxu0 0.0
        %1841 = vmatpush1.msra.mxu0 0.0
        %1842 = vmatprep.subr.mxu0 0.0
        %1843 = vmatpush1.msra.mxu0 0.0
        %1844 = vmatprep.subr.mxu0 0.0
        %1845 = vmatpush1.msra.mxu0 0.0
        %1846 = vmatprep.subr.mxu0 0.0
        %1847 = vmatpush1.msra.mxu0 0.0
        %1848 = vmatprep.subr.mxu0 0.0
        %1849 = vmatpush1.msra.mxu0 0.0
        %1850 = vmatprep.subr.mxu0 0.0
        %1851 = vmatpush1.msra.mxu0 0.0
        %1852 = vmatprep.subr.mxu0 0.0
        %1853 = vmatpush1.msra.mxu0 0.0
        %1854 = vmatprep.subr.mxu0 0.0
        %1855 = vmatpush1.msra.mxu0 0.0
        %1856 = vmatprep.subr.mxu0 0.0
        %1857 = vmatpush1.msra.mxu0 0.0
        %1858 = vmatprep.subr.mxu0 0.0
        %1859 = vmatpush1.msra.mxu0 0.0
        %1860 = vmatprep.subr.mxu0 0.0
        %1861 = vmatpush1.msra.mxu0 0.0
        %1862 = vmatprep.subr.mxu0 0.0
        %1863 = vmatpush1.msra.mxu0 0.0
        %1864 = vmatprep.subr.mxu0 0.0
        %1865 = vmatpush1.msra.mxu0 0.0
        %1866 = vmatprep.subr.mxu0 0.0
        %1867 = vmatpush1.msra.mxu0 0.0
        %1868 = vmatprep.subr.mxu0 0.0
        %1869 = vmatpush1.msra.mxu0 0.0
        %1870 = vmatprep.subr.mxu0 0.0
        %1871 = vmatpush1.msra.mxu0 0.0
        %1872 = vmatprep.subr.mxu0 0.0
        %1873 = vmatpush1.msra.mxu0 0.0
        %1874 = vmatprep.subr.mxu0 0.0
        %1875 = vmatpush1.msra.mxu0 0.0
        %1876 = vmatprep.subr.mxu0 0.0
        %1877 = vmatpush1.msra.mxu0 0.0
        %1878 = vmatprep.subr.mxu0 0.0
        %1879 = vmatpush1.msra.mxu0 0.0
        %1880 = vmatprep.subr.mxu0 0.0
        %1881 = vmatpush1.msra.mxu0 0.0
        %1882 = vmatprep.mubr.f32.mxu0 0.0
        %1883 = vmatmul.mubr.f32.gmra.mrb[0].mxu0 %v282
        %v1884 = vpop.f32.mrb[0].mxu0
        %v1885 = vadd.f32 0.0, %v1884
        %v1886 = vpop.f32.mrb[0].mxu0
        %1887 = vdwg.mxu0
        %1888 = vmatprep.subr.mxu0 0.0
        %1889 = vmatpush1.msra.mxu0 %v1460
        %1890 = vmatprep.subr.mxu0 0.0
        %1891 = vmatpush1.msra.mxu0 %v1461
        %1892 = vmatprep.subr.mxu0 0.0
        %1893 = vmatpush1.msra.mxu0 %v1462
        %1894 = vmatprep.subr.mxu0 0.0
        %1895 = vmatpush1.msra.mxu0 %v1463
        %1896 = vmatprep.subr.mxu0 0.0
        %1897 = vmatpush1.msra.mxu0 0.0
        %1898 = vmatprep.subr.mxu0 0.0
        %1899 = vmatpush1.msra.mxu0 0.0
        %1900 = vmatprep.subr.mxu0 0.0
        %1901 = vmatpush1.msra.mxu0 0.0
        %1902 = vmatprep.subr.mxu0 0.0
        %1903 = vmatpush1.msra.mxu0 0.0
        %1904 = vmatprep.subr.mxu0 0.0
        %1905 = vmatpush1.msra.mxu0 0.0
        %1906 = vmatprep.subr.mxu0 0.0
        %1907 = vmatpush1.msra.mxu0 0.0
        %1908 = vmatprep.subr.mxu0 0.0
        %1909 = vmatpush1.msra.mxu0 0.0
        %1910 = vmatprep.subr.mxu0 0.0
        %1911 = vmatpush1.msra.mxu0 0.0
        %1912 = vmatprep.subr.mxu0 0.0
        %1913 = vmatpush1.msra.mxu0 0.0
        %1914 = vmatprep.subr.mxu0 0.0
        %1915 = vmatpush1.msra.mxu0 0.0
        %1916 = vmatprep.subr.mxu0 0.0
        %1917 = vmatpush1.msra.mxu0 0.0
        %1918 = vmatprep.subr.mxu0 0.0
        %1919 = vmatpush1.msra.mxu0 0.0
        %1920 = vmatprep.subr.mxu0 0.0
        %1921 = vmatpush1.msra.mxu0 0.0
        %1922 = vmatprep.subr.mxu0 0.0
        %1923 = vmatpush1.msra.mxu0 0.0
        %1924 = vmatprep.subr.mxu0 0.0
        %1925 = vmatpush1.msra.mxu0 0.0
        %1926 = vmatprep.subr.mxu0 0.0
        %1927 = vmatpush1.msra.mxu0 0.0
        %1928 = vmatprep.subr.mxu0 0.0
        %1929 = vmatpush1.msra.mxu0 0.0
        %1930 = vmatprep.subr.mxu0 0.0
        %1931 = vmatpush1.msra.mxu0 0.0
        %1932 = vmatprep.subr.mxu0 0.0
        %1933 = vmatpush1.msra.mxu0 0.0
        %1934 = vmatprep.subr.mxu0 0.0
        %1935 = vmatpush1.msra.mxu0 0.0
        %1936 = vmatprep.subr.mxu0 0.0
        %1937 = vmatpush1.msra.mxu0 0.0
        %1938 = vmatprep.subr.mxu0 0.0
        %1939 = vmatpush1.msra.mxu0 0.0
        %1940 = vmatprep.subr.mxu0 0.0
        %1941 = vmatpush1.msra.mxu0 0.0
        %1942 = vmatprep.subr.mxu0 0.0
        %1943 = vmatpush1.msra.mxu0 0.0
        %1944 = vmatprep.subr.mxu0 0.0
        %1945 = vmatpush1.msra.mxu0 0.0
        %1946 = vmatprep.subr.mxu0 0.0
        %1947 = vmatpush1.msra.mxu0 0.0
        %1948 = vmatprep.subr.mxu0 0.0
        %1949 = vmatpush1.msra.mxu0 0.0
        %1950 = vmatprep.subr.mxu0 0.0
        %1951 = vmatpush1.msra.mxu0 0.0
        %1952 = vmatprep.mubr.f32.mxu0 0.0
        %1953 = vmatmul.mubr.f32.gmra.mrb[0].mxu0 %v282
        %v1954 = vpop.f32.mrb[0].mxu0
        %v1955 = vadd.f32 0.0, %v1954
        %v1956 = vpop.f32.mrb[0].mxu0
        %1957 = vdwg.mxu0
        %1958 = vmatprep.subr.mxu0 0.0
        %1959 = vmatpush1.msra.mxu0 %v1464
        %1960 = vmatprep.subr.mxu0 0.0
        %1961 = vmatpush1.msra.mxu0 %v1465
        %1962 = vmatprep.subr.mxu0 0.0
        %1963 = vmatpush1.msra.mxu0 %v1466
        %1964 = vmatprep.subr.mxu0 0.0
        %1965 = vmatpush1.msra.mxu0 %v1467
        %1966 = vmatprep.subr.mxu0 0.0
        %1967 = vmatpush1.msra.mxu0 0.0
        %1968 = vmatprep.subr.mxu0 0.0
        %1969 = vmatpush1.msra.mxu0 0.0
        %1970 = vmatprep.subr.mxu0 0.0
        %1971 = vmatpush1.msra.mxu0 0.0
        %1972 = vmatprep.subr.mxu0 0.0
        %1973 = vmatpush1.msra.mxu0 0.0
        %1974 = vmatprep.subr.mxu0 0.0
        %1975 = vmatpush1.msra.mxu0 0.0
        %1976 = vmatprep.subr.mxu0 0.0
        %1977 = vmatpush1.msra.mxu0 0.0
        %1978 = vmatprep.subr.mxu0 0.0
        %1979 = vmatpush1.msra.mxu0 0.0
        %1980 = vmatprep.subr.mxu0 0.0
        %1981 = vmatpush1.msra.mxu0 0.0
        %1982 = vmatprep.subr.mxu0 0.0
        %1983 = vmatpush1.msra.mxu0 0.0
        %1984 = vmatprep.subr.mxu0 0.0
        %1985 = vmatpush1.msra.mxu0 0.0
        %1986 = vmatprep.subr.mxu0 0.0
        %1987 = vmatpush1.msra.mxu0 0.0
        %1988 = vmatprep.subr.mxu0 0.0
        %1989 = vmatpush1.msra.mxu0 0.0
        %1990 = vmatprep.subr.mxu0 0.0
        %1991 = vmatpush1.msra.mxu0 0.0
        %1992 = vmatprep.subr.mxu0 0.0
        %1993 = vmatpush1.msra.mxu0 0.0
        %1994 = vmatprep.subr.mxu0 0.0
        %1995 = vmatpush1.msra.mxu0 0.0
        %1996 = vmatprep.subr.mxu0 0.0
        %1997 = vmatpush1.msra.mxu0 0.0
        %1998 = vmatprep.subr.mxu0 0.0
        %1999 = vmatpush1.msra.mxu0 0.0
        %2000 = vmatprep.subr.mxu0 0.0
        %2001 = vmatpush1.msra.mxu0 0.0
        %2002 = vmatprep.subr.mxu0 0.0
        %2003 = vmatpush1.msra.mxu0 0.0
        %2004 = vmatprep.subr.mxu0 0.0
        %2005 = vmatpush1.msra.mxu0 0.0
        %2006 = vmatprep.subr.mxu0 0.0
        %2007 = vmatpush1.msra.mxu0 0.0
        %2008 = vmatprep.subr.mxu0 0.0
        %2009 = vmatpush1.msra.mxu0 0.0
        %2010 = vmatprep.subr.mxu0 0.0
        %2011 = vmatpush1.msra.mxu0 0.0
        %2012 = vmatprep.subr.mxu0 0.0
        %2013 = vmatpush1.msra.mxu0 0.0
        %2014 = vmatprep.subr.mxu0 0.0
        %2015 = vmatpush1.msra.mxu0 0.0
        %2016 = vmatprep.subr.mxu0 0.0
        %2017 = vmatpush1.msra.mxu0 0.0
        %2018 = vmatprep.subr.mxu0 0.0
        %2019 = vmatpush1.msra.mxu0 0.0
        %2020 = vmatprep.subr.mxu0 0.0
        %2021 = vmatpush1.msra.mxu0 0.0
        %2022 = vmatprep.mubr.f32.mxu0 0.0
        %2023 = vmatmul.mubr.f32.gmra.mrb[0].mxu0 %v282
        %v2024 = vpop.f32.mrb[0].mxu0
        %v2025 = vadd.f32 0.0, %v2024
        %v2026 = vpop.f32.mrb[0].mxu0
        %2027 = vdwg.mxu0
        %vm2028 = vcmask 31744
        %v2030 = vsel %vm2028, %v351, 0
        %v2033 = vsel %vm2028, %v943, 0
        %2035 = vmatprep.subr.mxu0 0.0
        %2036 = vmatpush1.xpose.msra.mxu0 %v2033
        %2037 = vmatprep.subr.mxu0 0.0
        %2038 = vmatpush1.xpose.msra.mxu0 0.0
        %2039 = vmatprep.subr.mxu0 0.0
        %2040 = vmatpush1.xpose.msra.mxu0 0.0
        %2041 = vmatprep.subr.mxu0 0.0
        %2042 = vmatpush1.xpose.msra.mxu0 0.0
        %2043 = vmatprep.subr.mxu0 0.0
        %2044 = vmatpush1.xpose.msra.mxu0 0.0
        %2045 = vmatprep.subr.mxu0 0.0
        %2046 = vmatpush1.xpose.msra.mxu0 0.0
        %2047 = vmatprep.subr.mxu0 0.0
        %2048 = vmatpush1.xpose.msra.mxu0 0.0
        %2049 = vmatprep.subr.mxu0 0.0
        %2050 = vmatpush1.xpose.msra.mxu0 0.0
        %2051 = vmatprep.subr.mxu0 0.0
        %2052 = vmatpush1.xpose.msra.mxu0 0.0
        %2053 = vmatprep.subr.mxu0 0.0
        %2054 = vmatpush1.xpose.msra.mxu0 0.0
        %2055 = vmatprep.subr.mxu0 0.0
        %2056 = vmatpush1.xpose.msra.mxu0 0.0
        %2057 = vmatprep.subr.mxu0 0.0
        %2058 = vmatpush1.xpose.msra.mxu0 0.0
        %2059 = vmatprep.subr.mxu0 0.0
        %2060 = vmatpush1.xpose.msra.mxu0 0.0
        %2061 = vmatprep.subr.mxu0 0.0
        %2062 = vmatpush1.xpose.msra.mxu0 0.0
        %2063 = vmatprep.subr.mxu0 0.0
        %2064 = vmatpush1.xpose.msra.mxu0 0.0
        %2065 = vmatprep.subr.mxu0 0.0
        %2066 = vmatpush1.xpose.msra.mxu0 0.0
        %2067 = vmatprep.subr.mxu0 0.0
        %2068 = vmatpush1.xpose.msra.mxu0 0.0
        %2069 = vmatprep.subr.mxu0 0.0
        %2070 = vmatpush1.xpose.msra.mxu0 0.0
        %2071 = vmatprep.subr.mxu0 0.0
        %2072 = vmatpush1.xpose.msra.mxu0 0.0
        %2073 = vmatprep.subr.mxu0 0.0
        %2074 = vmatpush1.xpose.msra.mxu0 0.0
        %2075 = vmatprep.subr.mxu0 0.0
        %2076 = vmatpush1.xpose.msra.mxu0 0.0
        %2077 = vmatprep.subr.mxu0 0.0
        %2078 = vmatpush1.xpose.msra.mxu0 0.0
        %2079 = vmatprep.subr.mxu0 0.0
        %2080 = vmatpush1.xpose.msra.mxu0 0.0
        %2081 = vmatprep.subr.mxu0 0.0
        %2082 = vmatpush1.xpose.msra.mxu0 0.0
        %2083 = vmatprep.subr.mxu0 0.0
        %2084 = vmatpush1.xpose.msra.mxu0 0.0
        %2085 = vmatprep.subr.mxu0 0.0
        %2086 = vmatpush1.xpose.msra.mxu0 0.0
        %2087 = vmatprep.subr.mxu0 0.0
        %2088 = vmatpush1.xpose.msra.mxu0 0.0
        %2089 = vmatprep.subr.mxu0 0.0
        %2090 = vmatpush1.xpose.msra.mxu0 0.0
        %2091 = vmatprep.subr.mxu0 0.0
        %2092 = vmatpush1.xpose.msra.mxu0 0.0
        %2093 = vmatprep.subr.mxu0 0.0
        %2094 = vmatpush1.xpose.msra.mxu0 0.0
        %2095 = vmatprep.subr.mxu0 0.0
        %2096 = vmatpush1.xpose.msra.mxu0 0.0
        %2097 = vmatprep.subr.mxu0 0.0
        %2098 = vmatpush1.xpose.msra.mxu0 0.0
        %2099 = vmatprep.mubr.f32.mxu0 0.0
        %2100 = vmatmul.mubr.f32.gmra.mrb[0].mxu0 %v2030
        %v2101 = vpop.f32.mrb[0].mxu0
        %v2102 = vadd.f32 0.0, %v2101
        %v2103 = vpop.f32.mrb[0].mxu0
        %2104 = vdwg.mxu0
        %v2106 = vsel %vm2028, %v421, 0
        %v2109 = vsel %vm2028, %v1013, 0
        %2111 = vmatprep.subr.mxu0 0.0
        %2112 = vmatpush1.xpose.msra.mxu0 %v2109
        %2113 = vmatprep.subr.mxu0 0.0
        %2114 = vmatpush1.xpose.msra.mxu0 0.0
        %2115 = vmatprep.subr.mxu0 0.0
        %2116 = vmatpush1.xpose.msra.mxu0 0.0
        %2117 = vmatprep.subr.mxu0 0.0
        %2118 = vmatpush1.xpose.msra.mxu0 0.0
        %2119 = vmatprep.subr.mxu0 0.0
        %2120 = vmatpush1.xpose.msra.mxu0 0.0
        %2121 = vmatprep.subr.mxu0 0.0
        %2122 = vmatpush1.xpose.msra.mxu0 0.0
        %2123 = vmatprep.subr.mxu0 0.0
        %2124 = vmatpush1.xpose.msra.mxu0 0.0
        %2125 = vmatprep.subr.mxu0 0.0
        %2126 = vmatpush1.xpose.msra.mxu0 0.0
        %2127 = vmatprep.subr.mxu0 0.0
        %2128 = vmatpush1.xpose.msra.mxu0 0.0
        %2129 = vmatprep.subr.mxu0 0.0
        %2130 = vmatpush1.xpose.msra.mxu0 0.0
        %2131 = vmatprep.subr.mxu0 0.0
        %2132 = vmatpush1.xpose.msra.mxu0 0.0
        %2133 = vmatprep.subr.mxu0 0.0
        %2134 = vmatpush1.xpose.msra.mxu0 0.0
        %2135 = vmatprep.subr.mxu0 0.0
        %2136 = vmatpush1.xpose.msra.mxu0 0.0
        %2137 = vmatprep.subr.mxu0 0.0
        %2138 = vmatpush1.xpose.msra.mxu0 0.0
        %2139 = vmatprep.subr.mxu0 0.0
        %2140 = vmatpush1.xpose.msra.mxu0 0.0
        %2141 = vmatprep.subr.mxu0 0.0
        %2142 = vmatpush1.xpose.msra.mxu0 0.0
        %2143 = vmatprep.subr.mxu0 0.0
        %2144 = vmatpush1.xpose.msra.mxu0 0.0
        %2145 = vmatprep.subr.mxu0 0.0
        %2146 = vmatpush1.xpose.msra.mxu0 0.0
        %2147 = vmatprep.subr.mxu0 0.0
        %2148 = vmatpush1.xpose.msra.mxu0 0.0
        %2149 = vmatprep.subr.mxu0 0.0
        %2150 = vmatpush1.xpose.msra.mxu0 0.0
        %2151 = vmatprep.subr.mxu0 0.0
        %2152 = vmatpush1.xpose.msra.mxu0 0.0
        %2153 = vmatprep.subr.mxu0 0.0
        %2154 = vmatpush1.xpose.msra.mxu0 0.0
        %2155 = vmatprep.subr.mxu0 0.0
        %2156 = vmatpush1.xpose.msra.mxu0 0.0
        %2157 = vmatprep.subr.mxu0 0.0
        %2158 = vmatpush1.xpose.msra.mxu0 0.0
        %2159 = vmatprep.subr.mxu0 0.0
        %2160 = vmatpush1.xpose.msra.mxu0 0.0
        %2161 = vmatprep.subr.mxu0 0.0
        %2162 = vmatpush1.xpose.msra.mxu0 0.0
        %2163 = vmatprep.subr.mxu0 0.0
        %2164 = vmatpush1.xpose.msra.mxu0 0.0
        %2165 = vmatprep.subr.mxu0 0.0
        %2166 = vmatpush1.xpose.msra.mxu0 0.0
        %2167 = vmatprep.subr.mxu0 0.0
        %2168 = vmatpush1.xpose.msra.mxu0 0.0
        %2169 = vmatprep.subr.mxu0 0.0
        %2170 = vmatpush1.xpose.msra.mxu0 0.0
        %2171 = vmatprep.subr.mxu0 0.0
        %2172 = vmatpush1.xpose.msra.mxu0 0.0
        %2173 = vmatprep.subr.mxu0 0.0
        %2174 = vmatpush1.xpose.msra.mxu0 0.0
        %2175 = vmatprep.mubr.f32.mxu0 0.0
        %2176 = vmatmul.mubr.f32.gmra.mrb[0].mxu0 %v2106
        %v2177 = vpop.f32.mrb[0].mxu0
        %v2178 = vadd.f32 0.0, %v2177
        %v2179 = vpop.f32.mrb[0].mxu0
        %2180 = vdwg.mxu0
        %v2182 = vsel %vm2028, %v491, 0
        %v2185 = vsel %vm2028, %v1083, 0
        %2187 = vmatprep.subr.mxu0 0.0
        %2188 = vmatpush1.xpose.msra.mxu0 %v2185
        %2189 = vmatprep.subr.mxu0 0.0
        %2190 = vmatpush1.xpose.msra.mxu0 0.0
        %2191 = vmatprep.subr.mxu0 0.0
        %2192 = vmatpush1.xpose.msra.mxu0 0.0
        %2193 = vmatprep.subr.mxu0 0.0
        %2194 = vmatpush1.xpose.msra.mxu0 0.0
        %2195 = vmatprep.subr.mxu0 0.0
        %2196 = vmatpush1.xpose.msra.mxu0 0.0
        %2197 = vmatprep.subr.mxu0 0.0
        %2198 = vmatpush1.xpose.msra.mxu0 0.0
        %2199 = vmatprep.subr.mxu0 0.0
        %2200 = vmatpush1.xpose.msra.mxu0 0.0
        %2201 = vmatprep.subr.mxu0 0.0
        %2202 = vmatpush1.xpose.msra.mxu0 0.0
        %2203 = vmatprep.subr.mxu0 0.0
        %2204 = vmatpush1.xpose.msra.mxu0 0.0
        %2205 = vmatprep.subr.mxu0 0.0
        %2206 = vmatpush1.xpose.msra.mxu0 0.0
        %2207 = vmatprep.subr.mxu0 0.0
        %2208 = vmatpush1.xpose.msra.mxu0 0.0
        %2209 = vmatprep.subr.mxu0 0.0
        %2210 = vmatpush1.xpose.msra.mxu0 0.0
        %2211 = vmatprep.subr.mxu0 0.0
        %2212 = vmatpush1.xpose.msra.mxu0 0.0
        %2213 = vmatprep.subr.mxu0 0.0
        %2214 = vmatpush1.xpose.msra.mxu0 0.0
        %2215 = vmatprep.subr.mxu0 0.0
        %2216 = vmatpush1.xpose.msra.mxu0 0.0
        %2217 = vmatprep.subr.mxu0 0.0
        %2218 = vmatpush1.xpose.msra.mxu0 0.0
        %2219 = vmatprep.subr.mxu0 0.0
        %2220 = vmatpush1.xpose.msra.mxu0 0.0
        %2221 = vmatprep.subr.mxu0 0.0
        %2222 = vmatpush1.xpose.msra.mxu0 0.0
        %2223 = vmatprep.subr.mxu0 0.0
        %2224 = vmatpush1.xpose.msra.mxu0 0.0
        %2225 = vmatprep.subr.mxu0 0.0
        %2226 = vmatpush1.xpose.msra.mxu0 0.0
        %2227 = vmatprep.subr.mxu0 0.0
        %2228 = vmatpush1.xpose.msra.mxu0 0.0
        %2229 = vmatprep.subr.mxu0 0.0
        %2230 = vmatpush1.xpose.msra.mxu0 0.0
        %2231 = vmatprep.subr.mxu0 0.0
        %2232 = vmatpush1.xpose.msra.mxu0 0.0
        %2233 = vmatprep.subr.mxu0 0.0
        %2234 = vmatpush1.xpose.msra.mxu0 0.0
        %2235 = vmatprep.subr.mxu0 0.0
        %2236 = vmatpush1.xpose.msra.mxu0 0.0
        %2237 = vmatprep.subr.mxu0 0.0
        %2238 = vmatpush1.xpose.msra.mxu0 0.0
        %2239 = vmatprep.subr.mxu0 0.0
        %2240 = vmatpush1.xpose.msra.mxu0 0.0
        %2241 = vmatprep.subr.mxu0 0.0
        %2242 = vmatpush1.xpose.msra.mxu0 0.0
        %2243 = vmatprep.subr.mxu0 0.0
        %2244 = vmatpush1.xpose.msra.mxu0 0.0
        %2245 = vmatprep.subr.mxu0 0.0
        %2246 = vmatpush1.xpose.msra.mxu0 0.0
        %2247 = vmatprep.subr.mxu0 0.0
        %2248 = vmatpush1.xpose.msra.mxu0 0.0
        %2249 = vmatprep.subr.mxu0 0.0
        %2250 = vmatpush1.xpose.msra.mxu0 0.0
        %2251 = vmatprep.mubr.f32.mxu0 0.0
        %2252 = vmatmul.mubr.f32.gmra.mrb[0].mxu0 %v2182
        %v2253 = vpop.f32.mrb[0].mxu0
        %v2254 = vadd.f32 0.0, %v2253
        %v2255 = vpop.f32.mrb[0].mxu0
        %2256 = vdwg.mxu0
        %v2258 = vsel %vm2028, %v561, 0
        %v2261 = vsel %vm2028, %v1153, 0
        %2263 = vmatprep.subr.mxu0 0.0
        %2264 = vmatpush1.xpose.msra.mxu0 %v2261
        %2265 = vmatprep.subr.mxu0 0.0
        %2266 = vmatpush1.xpose.msra.mxu0 0.0
        %2267 = vmatprep.subr.mxu0 0.0
        %2268 = vmatpush1.xpose.msra.mxu0 0.0
        %2269 = vmatprep.subr.mxu0 0.0
        %2270 = vmatpush1.xpose.msra.mxu0 0.0
        %2271 = vmatprep.subr.mxu0 0.0
        %2272 = vmatpush1.xpose.msra.mxu0 0.0
        %2273 = vmatprep.subr.mxu0 0.0
        %2274 = vmatpush1.xpose.msra.mxu0 0.0
        %2275 = vmatprep.subr.mxu0 0.0
        %2276 = vmatpush1.xpose.msra.mxu0 0.0
        %2277 = vmatprep.subr.mxu0 0.0
        %2278 = vmatpush1.xpose.msra.mxu0 0.0
        %2279 = vmatprep.subr.mxu0 0.0
        %2280 = vmatpush1.xpose.msra.mxu0 0.0
        %2281 = vmatprep.subr.mxu0 0.0
        %2282 = vmatpush1.xpose.msra.mxu0 0.0
        %2283 = vmatprep.subr.mxu0 0.0
        %2284 = vmatpush1.xpose.msra.mxu0 0.0
        %2285 = vmatprep.subr.mxu0 0.0
        %2286 = vmatpush1.xpose.msra.mxu0 0.0
        %2287 = vmatprep.subr.mxu0 0.0
        %2288 = vmatpush1.xpose.msra.mxu0 0.0
        %2289 = vmatprep.subr.mxu0 0.0
        %2290 = vmatpush1.xpose.msra.mxu0 0.0
        %2291 = vmatprep.subr.mxu0 0.0
        %2292 = vmatpush1.xpose.msra.mxu0 0.0
        %2293 = vmatprep.subr.mxu0 0.0
        %2294 = vmatpush1.xpose.msra.mxu0 0.0
        %2295 = vmatprep.subr.mxu0 0.0
        %2296 = vmatpush1.xpose.msra.mxu0 0.0
        %2297 = vmatprep.subr.mxu0 0.0
        %2298 = vmatpush1.xpose.msra.mxu0 0.0
        %2299 = vmatprep.subr.mxu0 0.0
        %2300 = vmatpush1.xpose.msra.mxu0 0.0
        %2301 = vmatprep.subr.mxu0 0.0
        %2302 = vmatpush1.xpose.msra.mxu0 0.0
        %2303 = vmatprep.subr.mxu0 0.0
        %2304 = vmatpush1.xpose.msra.mxu0 0.0
        %2305 = vmatprep.subr.mxu0 0.0
        %2306 = vmatpush1.xpose.msra.mxu0 0.0
        %2307 = vmatprep.subr.mxu0 0.0
        %2308 = vmatpush1.xpose.msra.mxu0 0.0
        %2309 = vmatprep.subr.mxu0 0.0
        %2310 = vmatpush1.xpose.msra.mxu0 0.0
        %2311 = vmatprep.subr.mxu0 0.0
        %2312 = vmatpush1.xpose.msra.mxu0 0.0
        %2313 = vmatprep.subr.mxu0 0.0
        %2314 = vmatpush1.xpose.msra.mxu0 0.0
        %2315 = vmatprep.subr.mxu0 0.0
        %2316 = vmatpush1.xpose.msra.mxu0 0.0
        %2317 = vmatprep.subr.mxu0 0.0
        %2318 = vmatpush1.xpose.msra.mxu0 0.0
        %2319 = vmatprep.subr.mxu0 0.0
        %2320 = vmatpush1.xpose.msra.mxu0 0.0
        %2321 = vmatprep.subr.mxu0 0.0
        %2322 = vmatpush1.xpose.msra.mxu0 0.0
        %2323 = vmatprep.subr.mxu0 0.0
        %2324 = vmatpush1.xpose.msra.mxu0 0.0
        %2325 = vmatprep.subr.mxu0 0.0
        %2326 = vmatpush1.xpose.msra.mxu0 0.0
        %2327 = vmatprep.mubr.f32.mxu0 0.0
        %2328 = vmatmul.mubr.f32.gmra.mrb[0].mxu0 %v2258
        %v2329 = vpop.f32.mrb[0].mxu0
        %v2330 = vadd.f32 0.0, %v2329
        %v2331 = vpop.f32.mrb[0].mxu0
        %2332 = vdwg.mxu0
        %v2334 = vsel %vm2028, %v631, 0
        %v2337 = vsel %vm2028, %v1223, 0
        %2339 = vmatprep.subr.mxu0 0.0
        %2340 = vmatpush1.xpose.msra.mxu0 %v2337
        %2341 = vmatprep.subr.mxu0 0.0
        %2342 = vmatpush1.xpose.msra.mxu0 0.0
        %2343 = vmatprep.subr.mxu0 0.0
        %2344 = vmatpush1.xpose.msra.mxu0 0.0
        %2345 = vmatprep.subr.mxu0 0.0
        %2346 = vmatpush1.xpose.msra.mxu0 0.0
        %2347 = vmatprep.subr.mxu0 0.0
        %2348 = vmatpush1.xpose.msra.mxu0 0.0
        %2349 = vmatprep.subr.mxu0 0.0
        %2350 = vmatpush1.xpose.msra.mxu0 0.0
        %2351 = vmatprep.subr.mxu0 0.0
        %2352 = vmatpush1.xpose.msra.mxu0 0.0
        %2353 = vmatprep.subr.mxu0 0.0
        %2354 = vmatpush1.xpose.msra.mxu0 0.0
        %2355 = vmatprep.subr.mxu0 0.0
        %2356 = vmatpush1.xpose.msra.mxu0 0.0
        %2357 = vmatprep.subr.mxu0 0.0
        %2358 = vmatpush1.xpose.msra.mxu0 0.0
        %2359 = vmatprep.subr.mxu0 0.0
        %2360 = vmatpush1.xpose.msra.mxu0 0.0
        %2361 = vmatprep.subr.mxu0 0.0
        %2362 = vmatpush1.xpose.msra.mxu0 0.0
        %2363 = vmatprep.subr.mxu0 0.0
        %2364 = vmatpush1.xpose.msra.mxu0 0.0
        %2365 = vmatprep.subr.mxu0 0.0
        %2366 = vmatpush1.xpose.msra.mxu0 0.0
        %2367 = vmatprep.subr.mxu0 0.0
        %2368 = vmatpush1.xpose.msra.mxu0 0.0
        %2369 = vmatprep.subr.mxu0 0.0
        %2370 = vmatpush1.xpose.msra.mxu0 0.0
        %2371 = vmatprep.subr.mxu0 0.0
        %2372 = vmatpush1.xpose.msra.mxu0 0.0
        %2373 = vmatprep.subr.mxu0 0.0
        %2374 = vmatpush1.xpose.msra.mxu0 0.0
        %2375 = vmatprep.subr.mxu0 0.0
        %2376 = vmatpush1.xpose.msra.mxu0 0.0
        %2377 = vmatprep.subr.mxu0 0.0
        %2378 = vmatpush1.xpose.msra.mxu0 0.0
        %2379 = vmatprep.subr.mxu0 0.0
        %2380 = vmatpush1.xpose.msra.mxu0 0.0
        %2381 = vmatprep.subr.mxu0 0.0
        %2382 = vmatpush1.xpose.msra.mxu0 0.0
        %2383 = vmatprep.subr.mxu0 0.0
        %2384 = vmatpush1.xpose.msra.mxu0 0.0
        %2385 = vmatprep.subr.mxu0 0.0
        %2386 = vmatpush1.xpose.msra.mxu0 0.0
        %2387 = vmatprep.subr.mxu0 0.0
        %2388 = vmatpush1.xpose.msra.mxu0 0.0
        %2389 = vmatprep.subr.mxu0 0.0
        %2390 = vmatpush1.xpose.msra.mxu0 0.0
        %2391 = vmatprep.subr.mxu0 0.0
        %2392 = vmatpush1.xpose.msra.mxu0 0.0
        %2393 = vmatprep.subr.mxu0 0.0
        %2394 = vmatpush1.xpose.msra.mxu0 0.0
        %2395 = vmatprep.subr.mxu0 0.0
        %2396 = vmatpush1.xpose.msra.mxu0 0.0
        %2397 = vmatprep.subr.mxu0 0.0
        %2398 = vmatpush1.xpose.msra.mxu0 0.0
        %2399 = vmatprep.subr.mxu0 0.0
        %2400 = vmatpush1.xpose.msra.mxu0 0.0
        %2401 = vmatprep.subr.mxu0 0.0
        %2402 = vmatpush1.xpose.msra.mxu0 0.0
        %2403 = vmatprep.mubr.f32.mxu0 0.0
        %2404 = vmatmul.mubr.f32.gmra.mrb[0].mxu0 %v2334
        %v2405 = vpop.f32.mrb[0].mxu0
        %v2406 = vadd.f32 0.0, %v2405
        %v2407 = vpop.f32.mrb[0].mxu0
        %2408 = vdwg.mxu0
        %v2410 = vsel %vm2028, %v701, 0
        %v2413 = vsel %vm2028, %v1293, 0
        %2415 = vmatprep.subr.mxu0 0.0
        %2416 = vmatpush1.xpose.msra.mxu0 %v2413
        %2417 = vmatprep.subr.mxu0 0.0
        %2418 = vmatpush1.xpose.msra.mxu0 0.0
        %2419 = vmatprep.subr.mxu0 0.0
        %2420 = vmatpush1.xpose.msra.mxu0 0.0
        %2421 = vmatprep.subr.mxu0 0.0
        %2422 = vmatpush1.xpose.msra.mxu0 0.0
        %2423 = vmatprep.subr.mxu0 0.0
        %2424 = vmatpush1.xpose.msra.mxu0 0.0
        %2425 = vmatprep.subr.mxu0 0.0
        %2426 = vmatpush1.xpose.msra.mxu0 0.0
        %2427 = vmatprep.subr.mxu0 0.0
        %2428 = vmatpush1.xpose.msra.mxu0 0.0
        %2429 = vmatprep.subr.mxu0 0.0
        %2430 = vmatpush1.xpose.msra.mxu0 0.0
        %2431 = vmatprep.subr.mxu0 0.0
        %2432 = vmatpush1.xpose.msra.mxu0 0.0
        %2433 = vmatprep.subr.mxu0 0.0
        %2434 = vmatpush1.xpose.msra.mxu0 0.0
        %2435 = vmatprep.subr.mxu0 0.0
        %2436 = vmatpush1.xpose.msra.mxu0 0.0
        %2437 = vmatprep.subr.mxu0 0.0
        %2438 = vmatpush1.xpose.msra.mxu0 0.0
        %2439 = vmatprep.subr.mxu0 0.0
        %2440 = vmatpush1.xpose.msra.mxu0 0.0
        %2441 = vmatprep.subr.mxu0 0.0
        %2442 = vmatpush1.xpose.msra.mxu0 0.0
        %2443 = vmatprep.subr.mxu0 0.0
        %2444 = vmatpush1.xpose.msra.mxu0 0.0
        %2445 = vmatprep.subr.mxu0 0.0
        %2446 = vmatpush1.xpose.msra.mxu0 0.0
        %2447 = vmatprep.subr.mxu0 0.0
        %2448 = vmatpush1.xpose.msra.mxu0 0.0
        %2449 = vmatprep.subr.mxu0 0.0
        %2450 = vmatpush1.xpose.msra.mxu0 0.0
        %2451 = vmatprep.subr.mxu0 0.0
        %2452 = vmatpush1.xpose.msra.mxu0 0.0
        %2453 = vmatprep.subr.mxu0 0.0
        %2454 = vmatpush1.xpose.msra.mxu0 0.0
        %2455 = vmatprep.subr.mxu0 0.0
        %2456 = vmatpush1.xpose.msra.mxu0 0.0
        %2457 = vmatprep.subr.mxu0 0.0
        %2458 = vmatpush1.xpose.msra.mxu0 0.0
        %2459 = vmatprep.subr.mxu0 0.0
        %2460 = vmatpush1.xpose.msra.mxu0 0.0
        %2461 = vmatprep.subr.mxu0 0.0
        %2462 = vmatpush1.xpose.msra.mxu0 0.0
        %2463 = vmatprep.subr.mxu0 0.0
        %2464 = vmatpush1.xpose.msra.mxu0 0.0
        %2465 = vmatprep.subr.mxu0 0.0
        %2466 = vmatpush1.xpose.msra.mxu0 0.0
        %2467 = vmatprep.subr.mxu0 0.0
        %2468 = vmatpush1.xpose.msra.mxu0 0.0
        %2469 = vmatprep.subr.mxu0 0.0
        %2470 = vmatpush1.xpose.msra.mxu0 0.0
        %2471 = vmatprep.subr.mxu0 0.0
        %2472 = vmatpush1.xpose.msra.mxu0 0.0
        %2473 = vmatprep.subr.mxu0 0.0
        %2474 = vmatpush1.xpose.msra.mxu0 0.0
        %2475 = vmatprep.subr.mxu0 0.0
        %2476 = vmatpush1.xpose.msra.mxu0 0.0
        %2477 = vmatprep.subr.mxu0 0.0
        %2478 = vmatpush1.xpose.msra.mxu0 0.0
        %2479 = vmatprep.mubr.f32.mxu0 0.0
        %2480 = vmatmul.mubr.f32.gmra.mrb[0].mxu0 %v2410
        %v2481 = vpop.f32.mrb[0].mxu0
        %v2482 = vadd.f32 0.0, %v2481
        %v2483 = vpop.f32.mrb[0].mxu0
        %2484 = vdwg.mxu0
        %v2486 = vsel %vm2028, %v771, 0
        %v2489 = vsel %vm2028, %v1363, 0
        %2491 = vmatprep.subr.mxu0 0.0
        %2492 = vmatpush1.xpose.msra.mxu0 %v2489
        %2493 = vmatprep.subr.mxu0 0.0
        %2494 = vmatpush1.xpose.msra.mxu0 0.0
        %2495 = vmatprep.subr.mxu0 0.0
        %2496 = vmatpush1.xpose.msra.mxu0 0.0
        %2497 = vmatprep.subr.mxu0 0.0
        %2498 = vmatpush1.xpose.msra.mxu0 0.0
        %2499 = vmatprep.subr.mxu0 0.0
        %2500 = vmatpush1.xpose.msra.mxu0 0.0
        %2501 = vmatprep.subr.mxu0 0.0
        %2502 = vmatpush1.xpose.msra.mxu0 0.0
        %2503 = vmatprep.subr.mxu0 0.0
        %2504 = vmatpush1.xpose.msra.mxu0 0.0
        %2505 = vmatprep.subr.mxu0 0.0
        %2506 = vmatpush1.xpose.msra.mxu0 0.0
        %2507 = vmatprep.subr.mxu0 0.0
        %2508 = vmatpush1.xpose.msra.mxu0 0.0
        %2509 = vmatprep.subr.mxu0 0.0
        %2510 = vmatpush1.xpose.msra.mxu0 0.0
        %2511 = vmatprep.subr.mxu0 0.0
        %2512 = vmatpush1.xpose.msra.mxu0 0.0
        %2513 = vmatprep.subr.mxu0 0.0
        %2514 = vmatpush1.xpose.msra.mxu0 0.0
        %2515 = vmatprep.subr.mxu0 0.0
        %2516 = vmatpush1.xpose.msra.mxu0 0.0
        %2517 = vmatprep.subr.mxu0 0.0
        %2518 = vmatpush1.xpose.msra.mxu0 0.0
        %2519 = vmatprep.subr.mxu0 0.0
        %2520 = vmatpush1.xpose.msra.mxu0 0.0
        %2521 = vmatprep.subr.mxu0 0.0
        %2522 = vmatpush1.xpose.msra.mxu0 0.0
        %2523 = vmatprep.subr.mxu0 0.0
        %2524 = vmatpush1.xpose.msra.mxu0 0.0
        %2525 = vmatprep.subr.mxu0 0.0
        %2526 = vmatpush1.xpose.msra.mxu0 0.0
        %2527 = vmatprep.subr.mxu0 0.0
        %2528 = vmatpush1.xpose.msra.mxu0 0.0
        %2529 = vmatprep.subr.mxu0 0.0
        %2530 = vmatpush1.xpose.msra.mxu0 0.0
        %2531 = vmatprep.subr.mxu0 0.0
        %2532 = vmatpush1.xpose.msra.mxu0 0.0
        %2533 = vmatprep.subr.mxu0 0.0
        %2534 = vmatpush1.xpose.msra.mxu0 0.0
        %2535 = vmatprep.subr.mxu0 0.0
        %2536 = vmatpush1.xpose.msra.mxu0 0.0
        %2537 = vmatprep.subr.mxu0 0.0
        %2538 = vmatpush1.xpose.msra.mxu0 0.0
        %2539 = vmatprep.subr.mxu0 0.0
        %2540 = vmatpush1.xpose.msra.mxu0 0.0
        %2541 = vmatprep.subr.mxu0 0.0
        %2542 = vmatpush1.xpose.msra.mxu0 0.0
        %2543 = vmatprep.subr.mxu0 0.0
        %2544 = vmatpush1.xpose.msra.mxu0 0.0
        %2545 = vmatprep.subr.mxu0 0.0
        %2546 = vmatpush1.xpose.msra.mxu0 0.0
        %2547 = vmatprep.subr.mxu0 0.0
        %2548 = vmatpush1.xpose.msra.mxu0 0.0
        %2549 = vmatprep.subr.mxu0 0.0
        %2550 = vmatpush1.xpose.msra.mxu0 0.0
        %2551 = vmatprep.subr.mxu0 0.0
        %2552 = vmatpush1.xpose.msra.mxu0 0.0
        %2553 = vmatprep.subr.mxu0 0.0
        %2554 = vmatpush1.xpose.msra.mxu0 0.0
        %2555 = vmatprep.mubr.f32.mxu0 0.0
        %2556 = vmatmul.mubr.f32.gmra.mrb[0].mxu0 %v2486
        %v2557 = vpop.f32.mrb[0].mxu0
        %v2558 = vadd.f32 0.0, %v2557
        %v2559 = vpop.f32.mrb[0].mxu0
        %2560 = vdwg.mxu0
        %v2562 = vsel %vm2028, %v841, 0
        %v2565 = vsel %vm2028, %v1433, 0
        %2567 = vmatprep.subr.mxu0 0.0
        %2568 = vmatpush1.xpose.msra.mxu0 %v2565
        %2569 = vmatprep.subr.mxu0 0.0
        %2570 = vmatpush1.xpose.msra.mxu0 0.0
        %2571 = vmatprep.subr.mxu0 0.0
        %2572 = vmatpush1.xpose.msra.mxu0 0.0
        %2573 = vmatprep.subr.mxu0 0.0
        %2574 = vmatpush1.xpose.msra.mxu0 0.0
        %2575 = vmatprep.subr.mxu0 0.0
        %2576 = vmatpush1.xpose.msra.mxu0 0.0
        %2577 = vmatprep.subr.mxu0 0.0
        %2578 = vmatpush1.xpose.msra.mxu0 0.0
        %2579 = vmatprep.subr.mxu0 0.0
        %2580 = vmatpush1.xpose.msra.mxu0 0.0
        %2581 = vmatprep.subr.mxu0 0.0
        %2582 = vmatpush1.xpose.msra.mxu0 0.0
        %2583 = vmatprep.subr.mxu0 0.0
        %2584 = vmatpush1.xpose.msra.mxu0 0.0
        %2585 = vmatprep.subr.mxu0 0.0
        %2586 = vmatpush1.xpose.msra.mxu0 0.0
        %2587 = vmatprep.subr.mxu0 0.0
        %2588 = vmatpush1.xpose.msra.mxu0 0.0
        %2589 = vmatprep.subr.mxu0 0.0
        %2590 = vmatpush1.xpose.msra.mxu0 0.0
        %2591 = vmatprep.subr.mxu0 0.0
        %2592 = vmatpush1.xpose.msra.mxu0 0.0
        %2593 = vmatprep.subr.mxu0 0.0
        %2594 = vmatpush1.xpose.msra.mxu0 0.0
        %2595 = vmatprep.subr.mxu0 0.0
        %2596 = vmatpush1.xpose.msra.mxu0 0.0
        %2597 = vmatprep.subr.mxu0 0.0
        %2598 = vmatpush1.xpose.msra.mxu0 0.0
        %2599 = vmatprep.subr.mxu0 0.0
        %2600 = vmatpush1.xpose.msra.mxu0 0.0
        %2601 = vmatprep.subr.mxu0 0.0
        %2602 = vmatpush1.xpose.msra.mxu0 0.0
        %2603 = vmatprep.subr.mxu0 0.0
        %2604 = vmatpush1.xpose.msra.mxu0 0.0
        %2605 = vmatprep.subr.mxu0 0.0
        %2606 = vmatpush1.xpose.msra.mxu0 0.0
        %2607 = vmatprep.subr.mxu0 0.0
        %2608 = vmatpush1.xpose.msra.mxu0 0.0
        %2609 = vmatprep.subr.mxu0 0.0
        %2610 = vmatpush1.xpose.msra.mxu0 0.0
        %2611 = vmatprep.subr.mxu0 0.0
        %2612 = vmatpush1.xpose.msra.mxu0 0.0
        %2613 = vmatprep.subr.mxu0 0.0
        %2614 = vmatpush1.xpose.msra.mxu0 0.0
        %2615 = vmatprep.subr.mxu0 0.0
        %2616 = vmatpush1.xpose.msra.mxu0 0.0
        %2617 = vmatprep.subr.mxu0 0.0
        %2618 = vmatpush1.xpose.msra.mxu0 0.0
        %2619 = vmatprep.subr.mxu0 0.0
        %2620 = vmatpush1.xpose.msra.mxu0 0.0
        %2621 = vmatprep.subr.mxu0 0.0
        %2622 = vmatpush1.xpose.msra.mxu0 0.0
        %2623 = vmatprep.subr.mxu0 0.0
        %2624 = vmatpush1.xpose.msra.mxu0 0.0
        %2625 = vmatprep.subr.mxu0 0.0
        %2626 = vmatpush1.xpose.msra.mxu0 0.0
        %2627 = vmatprep.subr.mxu0 0.0
        %2628 = vmatpush1.xpose.msra.mxu0 0.0
        %2629 = vmatprep.subr.mxu0 0.0
        %2630 = vmatpush1.xpose.msra.mxu0 0.0
        %2631 = vmatprep.mubr.f32.mxu0 0.0
        %2632 = vmatmul.mubr.f32.gmra.mrb[0].mxu0 %v2562
        %v2633 = vpop.f32.mrb[0].mxu0
        %v2634 = vadd.f32 0.0, %v2633
        %v2635 = vpop.f32.mrb[0].mxu0
        %2636 = vdwg.mxu0
        %vm2637 = vcmask 64512
        %v2638 = vsel %vm2637, %v2102, -inf
        %2639 = vmax.xlane.f32.xlu0 %v2638
        %v2640 = vpop.xlane.xlu0 %2639
        %v2641 = vsel %vm2637, %v2178, -inf
        %2642 = vmax.xlane.f32.xlu0 %v2641
        %v2643 = vpop.xlane.xlu0 %2642
        %v2644 = vsel %vm2637, %v2254, -inf
        %2645 = vmax.xlane.f32.xlu0 %v2644
        %v2646 = vpop.xlane.xlu0 %2645
        %v2647 = vsel %vm2637, %v2330, -inf
        %2648 = vmax.xlane.f32.xlu0 %v2647
        %v2649 = vpop.xlane.xlu0 %2648
        %v2650 = vsel %vm2637, %v2406, -inf
        %2651 = vmax.xlane.f32.xlu0 %v2650
        %v2652 = vpop.xlane.xlu0 %2651
        %v2653 = vsel %vm2637, %v2482, -inf
        %2654 = vmax.xlane.f32.xlu0 %v2653
        %v2655 = vpop.xlane.xlu0 %2654
        %v2656 = vsel %vm2637, %v2558, -inf
        %2657 = vmax.xlane.f32.xlu0 %v2656
        %v2658 = vpop.xlane.xlu0 %2657
        %v2659 = vsel %vm2637, %v2634, -inf
        %2660 = vmax.xlane.f32.xlu0 %v2659
        %v2661 = vpop.xlane.xlu0 %2660
        %v2662 = vsub.f32 %v2102, %v2640
        %v2663 = vsub.f32 %v2178, %v2643
        %v2664 = vsub.f32 %v2254, %v2646
        %v2665 = vsub.f32 %v2330, %v2649
        %v2666 = vsub.f32 %v2406, %v2652
        %v2667 = vsub.f32 %v2482, %v2655
        %v2668 = vsub.f32 %v2558, %v2658
        %v2669 = vsub.f32 %v2634, %v2661
        %v2670 = vmul.f32 %v2662, 1.442695
        %v2671 = vpow.pop %v2670
        %v2672 = vmul.f32 %v2663, 1.442695
        %v2673 = vpow.pop %v2672
        %v2674 = vmul.f32 %v2664, 1.442695
        %v2675 = vpow.pop %v2674
        %v2676 = vmul.f32 %v2665, 1.442695
        %v2677 = vpow.pop %v2676
        %v2678 = vmul.f32 %v2666, 1.442695
        %v2679 = vpow.pop %v2678
        %v2680 = vmul.f32 %v2667, 1.442695
        %v2681 = vpow.pop %v2680
        %v2682 = vmul.f32 %v2668, 1.442695
        %v2683 = vpow.pop %v2682
        %v2684 = vmul.f32 %v2669, 1.442695
        %v2685 = vpow.pop %v2684
        %v2686 = vsel %vm2637, %v2671, 0.0
        %2687 = vadd.xlane.f32.xlu0 %v2686
        %v2688 = vpop.xlane.xlu0 %2687
        %v2689 = vsel %vm2637, %v2673, 0.0
        %2690 = vadd.xlane.f32.xlu0 %v2689
        %v2691 = vpop.xlane.xlu0 %2690
        %v2692 = vsel %vm2637, %v2675, 0.0
        %2693 = vadd.xlane.f32.xlu0 %v2692
        %v2694 = vpop.xlane.xlu0 %2693
        %v2695 = vsel %vm2637, %v2677, 0.0
        %2696 = vadd.xlane.f32.xlu0 %v2695
        %v2697 = vpop.xlane.xlu0 %2696
        %v2698 = vsel %vm2637, %v2679, 0.0
        %2699 = vadd.xlane.f32.xlu0 %v2698
        %v2700 = vpop.xlane.xlu0 %2699
        %v2701 = vsel %vm2637, %v2681, 0.0
        %2702 = vadd.xlane.f32.xlu0 %v2701
        %v2703 = vpop.xlane.xlu0 %2702
        %v2704 = vsel %vm2637, %v2683, 0.0
        %2705 = vadd.xlane.f32.xlu0 %v2704
        %v2706 = vpop.xlane.xlu0 %2705
        %v2707 = vsel %vm2637, %v2685, 0.0
        %2708 = vadd.xlane.f32.xlu0 %v2707
        %v2709 = vpop.xlane.xlu0 %2708
        %v2710 = vrcp.pop %v2688
        %v2711 = vmul.f32 %v2671, %v2710
        %v2712 = vrcp.pop %v2691
        %v2713 = vmul.f32 %v2673, %v2712
        %v2714 = vrcp.pop %v2694
        %v2715 = vmul.f32 %v2675, %v2714
        %v2716 = vrcp.pop %v2697
        %v2717 = vmul.f32 %v2677, %v2716
        %v2718 = vrcp.pop %v2700
        %v2719 = vmul.f32 %v2679, %v2718
        %v2720 = vrcp.pop %v2703
        %v2721 = vmul.f32 %v2681, %v2720
        %v2722 = vrcp.pop %v2706
        %v2723 = vmul.f32 %v2683, %v2722
        %v2724 = vrcp.pop %v2709
        %v2725 = vmul.f32 %v2685, %v2724
        %v2727 = vsel %vm2637, %v2711, 0
        %2729 = vmatprep.subr.mxu0 0.0
        %2730 = vmatpush1.msra.mxu0 %v1535
        %2731 = vmatprep.subr.mxu0 0.0
        %2732 = vmatpush1.msra.mxu0 0.0
        %2733 = vmatprep.subr.mxu0 0.0
        %2734 = vmatpush1.msra.mxu0 0.0
        %2735 = vmatprep.subr.mxu0 0.0
        %2736 = vmatpush1.msra.mxu0 0.0
        %2737 = vmatprep.subr.mxu0 0.0
        %2738 = vmatpush1.msra.mxu0 0.0
        %2739 = vmatprep.subr.mxu0 0.0
        %2740 = vmatpush1.msra.mxu0 0.0
        %2741 = vmatprep.subr.mxu0 0.0
        %2742 = vmatpush1.msra.mxu0 0.0
        %2743 = vmatprep.subr.mxu0 0.0
        %2744 = vmatpush1.msra.mxu0 0.0
        %2745 = vmatprep.subr.mxu0 0.0
        %2746 = vmatpush1.msra.mxu0 0.0
        %2747 = vmatprep.subr.mxu0 0.0
        %2748 = vmatpush1.msra.mxu0 0.0
        %2749 = vmatprep.subr.mxu0 0.0
        %2750 = vmatpush1.msra.mxu0 0.0
        %2751 = vmatprep.subr.mxu0 0.0
        %2752 = vmatpush1.msra.mxu0 0.0
        %2753 = vmatprep.subr.mxu0 0.0
        %2754 = vmatpush1.msra.mxu0 0.0
        %2755 = vmatprep.subr.mxu0 0.0
        %2756 = vmatpush1.msra.mxu0 0.0
        %2757 = vmatprep.subr.mxu0 0.0
        %2758 = vmatpush1.msra.mxu0 0.0
        %2759 = vmatprep.subr.mxu0 0.0
        %2760 = vmatpush1.msra.mxu0 0.0
        %2761 = vmatprep.subr.mxu0 0.0
        %2762 = vmatpush1.msra.mxu0 0.0
        %2763 = vmatprep.subr.mxu0 0.0
        %2764 = vmatpush1.msra.mxu0 0.0
        %2765 = vmatprep.subr.mxu0 0.0
        %2766 = vmatpush1.msra.mxu0 0.0
        %2767 = vmatprep.subr.mxu0 0.0
        %2768 = vmatpush1.msra.mxu0 0.0
        %2769 = vmatprep.subr.mxu0 0.0
        %2770 = vmatpush1.msra.mxu0 0.0
        %2771 = vmatprep.subr.mxu0 0.0
        %2772 = vmatpush1.msra.mxu0 0.0
        %2773 = vmatprep.subr.mxu0 0.0
        %2774 = vmatpush1.msra.mxu0 0.0
        %2775 = vmatprep.subr.mxu0 0.0
        %2776 = vmatpush1.msra.mxu0 0.0
        %2777 = vmatprep.subr.mxu0 0.0
        %2778 = vmatpush1.msra.mxu0 0.0
        %2779 = vmatprep.subr.mxu0 0.0
        %2780 = vmatpush1.msra.mxu0 0.0
        %2781 = vmatprep.subr.mxu0 0.0
        %2782 = vmatpush1.msra.mxu0 0.0
        %2783 = vmatprep.subr.mxu0 0.0
        %2784 = vmatpush1.msra.mxu0 0.0
        %2785 = vmatprep.subr.mxu0 0.0
        %2786 = vmatpush1.msra.mxu0 0.0
        %2787 = vmatprep.subr.mxu0 0.0
        %2788 = vmatpush1.msra.mxu0 0.0
        %2789 = vmatprep.subr.mxu0 0.0
        %2790 = vmatpush1.msra.mxu0 0.0
        %2791 = vmatprep.subr.mxu0 0.0
        %2792 = vmatpush1.msra.mxu0 0.0
        %2793 = vmatprep.mubr.f32.mxu0 0.0
        %2794 = vmatmul.mubr.f32.gmra.mrb[0].mxu0 %v2727
        %v2795 = vpop.f32.mrb[0].mxu0
        %v2796 = vadd.f32 0.0, %v2795
        %v2797 = vpop.f32.mrb[0].mxu0
        %2798 = vdwg.mxu0
        %v2800 = vsel %vm2637, %v2713, 0
        %2802 = vmatprep.subr.mxu0 0.0
        %2803 = vmatpush1.msra.mxu0 %v1605
        %2804 = vmatprep.subr.mxu0 0.0
        %2805 = vmatpush1.msra.mxu0 0.0
        %2806 = vmatprep.subr.mxu0 0.0
        %2807 = vmatpush1.msra.mxu0 0.0
        %2808 = vmatprep.subr.mxu0 0.0
        %2809 = vmatpush1.msra.mxu0 0.0
        %2810 = vmatprep.subr.mxu0 0.0
        %2811 = vmatpush1.msra.mxu0 0.0
        %2812 = vmatprep.subr.mxu0 0.0
        %2813 = vmatpush1.msra.mxu0 0.0
        %2814 = vmatprep.subr.mxu0 0.0
        %2815 = vmatpush1.msra.mxu0 0.0
        %2816 = vmatprep.subr.mxu0 0.0
        %2817 = vmatpush1.msra.mxu0 0.0
        %2818 = vmatprep.subr.mxu0 0.0
        %2819 = vmatpush1.msra.mxu0 0.0
        %2820 = vmatprep.subr.mxu0 0.0
        %2821 = vmatpush1.msra.mxu0 0.0
        %2822 = vmatprep.subr.mxu0 0.0
        %2823 = vmatpush1.msra.mxu0 0.0
        %2824 = vmatprep.subr.mxu0 0.0
        %2825 = vmatpush1.msra.mxu0 0.0
        %2826 = vmatprep.subr.mxu0 0.0
        %2827 = vmatpush1.msra.mxu0 0.0
        %2828 = vmatprep.subr.mxu0 0.0
        %2829 = vmatpush1.msra.mxu0 0.0
        %2830 = vmatprep.subr.mxu0 0.0
        %2831 = vmatpush1.msra.mxu0 0.0
        %2832 = vmatprep.subr.mxu0 0.0
        %2833 = vmatpush1.msra.mxu0 0.0
        %2834 = vmatprep.subr.mxu0 0.0
        %2835 = vmatpush1.msra.mxu0 0.0
        %2836 = vmatprep.subr.mxu0 0.0
        %2837 = vmatpush1.msra.mxu0 0.0
        %2838 = vmatprep.subr.mxu0 0.0
        %2839 = vmatpush1.msra.mxu0 0.0
        %2840 = vmatprep.subr.mxu0 0.0
        %2841 = vmatpush1.msra.mxu0 0.0
        %2842 = vmatprep.subr.mxu0 0.0
        %2843 = vmatpush1.msra.mxu0 0.0
        %2844 = vmatprep.subr.mxu0 0.0
        %2845 = vmatpush1.msra.mxu0 0.0
        %2846 = vmatprep.subr.mxu0 0.0
        %2847 = vmatpush1.msra.mxu0 0.0
        %2848 = vmatprep.subr.mxu0 0.0
        %2849 = vmatpush1.msra.mxu0 0.0
        %2850 = vmatprep.subr.mxu0 0.0
        %2851 = vmatpush1.msra.mxu0 0.0
        %2852 = vmatprep.subr.mxu0 0.0
        %2853 = vmatpush1.msra.mxu0 0.0
        %2854 = vmatprep.subr.mxu0 0.0
        %2855 = vmatpush1.msra.mxu0 0.0
        %2856 = vmatprep.subr.mxu0 0.0
        %2857 = vmatpush1.msra.mxu0 0.0
        %2858 = vmatprep.subr.mxu0 0.0
        %2859 = vmatpush1.msra.mxu0 0.0
        %2860 = vmatprep.subr.mxu0 0.0
        %2861 = vmatpush1.msra.mxu0 0.0
        %2862 = vmatprep.subr.mxu0 0.0
        %2863 = vmatpush1.msra.mxu0 0.0
        %2864 = vmatprep.subr.mxu0 0.0
        %2865 = vmatpush1.msra.mxu0 0.0
        %2866 = vmatprep.mubr.f32.mxu0 0.0
        %2867 = vmatmul.mubr.f32.gmra.mrb[0].mxu0 %v2800
        %v2868 = vpop.f32.mrb[0].mxu0
        %v2869 = vadd.f32 0.0, %v2868
        %v2870 = vpop.f32.mrb[0].mxu0
        %2871 = vdwg.mxu0
        %v2873 = vsel %vm2637, %v2715, 0
        %2875 = vmatprep.subr.mxu0 0.0
        %2876 = vmatpush1.msra.mxu0 %v1675
        %2877 = vmatprep.subr.mxu0 0.0
        %2878 = vmatpush1.msra.mxu0 0.0
        %2879 = vmatprep.subr.mxu0 0.0
        %2880 = vmatpush1.msra.mxu0 0.0
        %2881 = vmatprep.subr.mxu0 0.0
        %2882 = vmatpush1.msra.mxu0 0.0
        %2883 = vmatprep.subr.mxu0 0.0
        %2884 = vmatpush1.msra.mxu0 0.0
        %2885 = vmatprep.subr.mxu0 0.0
        %2886 = vmatpush1.msra.mxu0 0.0
        %2887 = vmatprep.subr.mxu0 0.0
        %2888 = vmatpush1.msra.mxu0 0.0
        %2889 = vmatprep.subr.mxu0 0.0
        %2890 = vmatpush1.msra.mxu0 0.0
        %2891 = vmatprep.subr.mxu0 0.0
        %2892 = vmatpush1.msra.mxu0 0.0
        %2893 = vmatprep.subr.mxu0 0.0
        %2894 = vmatpush1.msra.mxu0 0.0
        %2895 = vmatprep.subr.mxu0 0.0
        %2896 = vmatpush1.msra.mxu0 0.0
        %2897 = vmatprep.subr.mxu0 0.0
        %2898 = vmatpush1.msra.mxu0 0.0
        %2899 = vmatprep.subr.mxu0 0.0
        %2900 = vmatpush1.msra.mxu0 0.0
        %2901 = vmatprep.subr.mxu0 0.0
        %2902 = vmatpush1.msra.mxu0 0.0
        %2903 = vmatprep.subr.mxu0 0.0
        %2904 = vmatpush1.msra.mxu0 0.0
        %2905 = vmatprep.subr.mxu0 0.0
        %2906 = vmatpush1.msra.mxu0 0.0
        %2907 = vmatprep.subr.mxu0 0.0
        %2908 = vmatpush1.msra.mxu0 0.0
        %2909 = vmatprep.subr.mxu0 0.0
        %2910 = vmatpush1.msra.mxu0 0.0
        %2911 = vmatprep.subr.mxu0 0.0
        %2912 = vmatpush1.msra.mxu0 0.0
        %2913 = vmatprep.subr.mxu0 0.0
        %2914 = vmatpush1.msra.mxu0 0.0
        %2915 = vmatprep.subr.mxu0 0.0
        %2916 = vmatpush1.msra.mxu0 0.0
        %2917 = vmatprep.subr.mxu0 0.0
        %2918 = vmatpush1.msra.mxu0 0.0
        %2919 = vmatprep.subr.mxu0 0.0
        %2920 = vmatpush1.msra.mxu0 0.0
        %2921 = vmatprep.subr.mxu0 0.0
        %2922 = vmatpush1.msra.mxu0 0.0
        %2923 = vmatprep.subr.mxu0 0.0
        %2924 = vmatpush1.msra.mxu0 0.0
        %2925 = vmatprep.subr.mxu0 0.0
        %2926 = vmatpush1.msra.mxu0 0.0
        %2927 = vmatprep.subr.mxu0 0.0
        %2928 = vmatpush1.msra.mxu0 0.0
        %2929 = vmatprep.subr.mxu0 0.0
        %2930 = vmatpush1.msra.mxu0 0.0
        %2931 = vmatprep.subr.mxu0 0.0
        %2932 = vmatpush1.msra.mxu0 0.0
        %2933 = vmatprep.subr.mxu0 0.0
        %2934 = vmatpush1.msra.mxu0 0.0
        %2935 = vmatprep.subr.mxu0 0.0
        %2936 = vmatpush1.msra.mxu0 0.0
        %2937 = vmatprep.subr.mxu0 0.0
        %2938 = vmatpush1.msra.mxu0 0.0
        %2939 = vmatprep.mubr.f32.mxu0 0.0
        %2940 = vmatmul.mubr.f32.gmra.mrb[0].mxu0 %v2873
        %v2941 = vpop.f32.mrb[0].mxu0
        %v2942 = vadd.f32 0.0, %v2941
        %v2943 = vpop.f32.mrb[0].mxu0
        %2944 = vdwg.mxu0
        %v2946 = vsel %vm2637, %v2717, 0
        %2948 = vmatprep.subr.mxu0 0.0
        %2949 = vmatpush1.msra.mxu0 %v1745
        %2950 = vmatprep.subr.mxu0 0.0
        %2951 = vmatpush1.msra.mxu0 0.0
        %2952 = vmatprep.subr.mxu0 0.0
        %2953 = vmatpush1.msra.mxu0 0.0
        %2954 = vmatprep.subr.mxu0 0.0
        %2955 = vmatpush1.msra.mxu0 0.0
        %2956 = vmatprep.subr.mxu0 0.0
        %2957 = vmatpush1.msra.mxu0 0.0
        %2958 = vmatprep.subr.mxu0 0.0
        %2959 = vmatpush1.msra.mxu0 0.0
        %2960 = vmatprep.subr.mxu0 0.0
        %2961 = vmatpush1.msra.mxu0 0.0
        %2962 = vmatprep.subr.mxu0 0.0
        %2963 = vmatpush1.msra.mxu0 0.0
        %2964 = vmatprep.subr.mxu0 0.0
        %2965 = vmatpush1.msra.mxu0 0.0
        %2966 = vmatprep.subr.mxu0 0.0
        %2967 = vmatpush1.msra.mxu0 0.0
        %2968 = vmatprep.subr.mxu0 0.0
        %2969 = vmatpush1.msra.mxu0 0.0
        %2970 = vmatprep.subr.mxu0 0.0
        %2971 = vmatpush1.msra.mxu0 0.0
        %2972 = vmatprep.subr.mxu0 0.0
        %2973 = vmatpush1.msra.mxu0 0.0
        %2974 = vmatprep.subr.mxu0 0.0
        %2975 = vmatpush1.msra.mxu0 0.0
        %2976 = vmatprep.subr.mxu0 0.0
        %2977 = vmatpush1.msra.mxu0 0.0
        %2978 = vmatprep.subr.mxu0 0.0
        %2979 = vmatpush1.msra.mxu0 0.0
        %2980 = vmatprep.subr.mxu0 0.0
        %2981 = vmatpush1.msra.mxu0 0.0
        %2982 = vmatprep.subr.mxu0 0.0
        %2983 = vmatpush1.msra.mxu0 0.0
        %2984 = vmatprep.subr.mxu0 0.0
        %2985 = vmatpush1.msra.mxu0 0.0
        %2986 = vmatprep.subr.mxu0 0.0
        %2987 = vmatpush1.msra.mxu0 0.0
        %2988 = vmatprep.subr.mxu0 0.0
        %2989 = vmatpush1.msra.mxu0 0.0
        %2990 = vmatprep.subr.mxu0 0.0
        %2991 = vmatpush1.msra.mxu0 0.0
        %2992 = vmatprep.subr.mxu0 0.0
        %2993 = vmatpush1.msra.mxu0 0.0
        %2994 = vmatprep.subr.mxu0 0.0
        %2995 = vmatpush1.msra.mxu0 0.0
        %2996 = vmatprep.subr.mxu0 0.0
        %2997 = vmatpush1.msra.mxu0 0.0
        %2998 = vmatprep.subr.mxu0 0.0
        %2999 = vmatpush1.msra.mxu0 0.0
        %3000 = vmatprep.subr.mxu0 0.0
        %3001 = vmatpush1.msra.mxu0 0.0
        %3002 = vmatprep.subr.mxu0 0.0
        %3003 = vmatpush1.msra.mxu0 0.0
        %3004 = vmatprep.subr.mxu0 0.0
        %3005 = vmatpush1.msra.mxu0 0.0
        %3006 = vmatprep.subr.mxu0 0.0
        %3007 = vmatpush1.msra.mxu0 0.0
        %3008 = vmatprep.subr.mxu0 0.0
        %3009 = vmatpush1.msra.mxu0 0.0
        %3010 = vmatprep.subr.mxu0 0.0
        %3011 = vmatpush1.msra.mxu0 0.0
        %3012 = vmatprep.mubr.f32.mxu0 0.0
        %3013 = vmatmul.mubr.f32.gmra.mrb[0].mxu0 %v2946
        %v3014 = vpop.f32.mrb[0].mxu0
        %v3015 = vadd.f32 0.0, %v3014
        %v3016 = vpop.f32.mrb[0].mxu0
        %3017 = vdwg.mxu0
        %v3019 = vsel %vm2637, %v2719, 0
        %3021 = vmatprep.subr.mxu0 0.0
        %3022 = vmatpush1.msra.mxu0 %v1815
        %3023 = vmatprep.subr.mxu0 0.0
        %3024 = vmatpush1.msra.mxu0 0.0
        %3025 = vmatprep.subr.mxu0 0.0
        %3026 = vmatpush1.msra.mxu0 0.0
        %3027 = vmatprep.subr.mxu0 0.0
        %3028 = vmatpush1.msra.mxu0 0.0
        %3029 = vmatprep.subr.mxu0 0.0
        %3030 = vmatpush1.msra.mxu0 0.0
        %3031 = vmatprep.subr.mxu0 0.0
        %3032 = vmatpush1.msra.mxu0 0.0
        %3033 = vmatprep.subr.mxu0 0.0
        %3034 = vmatpush1.msra.mxu0 0.0
        %3035 = vmatprep.subr.mxu0 0.0
        %3036 = vmatpush1.msra.mxu0 0.0
        %3037 = vmatprep.subr.mxu0 0.0
        %3038 = vmatpush1.msra.mxu0 0.0
        %3039 = vmatprep.subr.mxu0 0.0
        %3040 = vmatpush1.msra.mxu0 0.0
        %3041 = vmatprep.subr.mxu0 0.0
        %3042 = vmatpush1.msra.mxu0 0.0
        %3043 = vmatprep.subr.mxu0 0.0
        %3044 = vmatpush1.msra.mxu0 0.0
        %3045 = vmatprep.subr.mxu0 0.0
        %3046 = vmatpush1.msra.mxu0 0.0
        %3047 = vmatprep.subr.mxu0 0.0
        %3048 = vmatpush1.msra.mxu0 0.0
        %3049 = vmatprep.subr.mxu0 0.0
        %3050 = vmatpush1.msra.mxu0 0.0
        %3051 = vmatprep.subr.mxu0 0.0
        %3052 = vmatpush1.msra.mxu0 0.0
        %3053 = vmatprep.subr.mxu0 0.0
        %3054 = vmatpush1.msra.mxu0 0.0
        %3055 = vmatprep.subr.mxu0 0.0
        %3056 = vmatpush1.msra.mxu0 0.0
        %3057 = vmatprep.subr.mxu0 0.0
        %3058 = vmatpush1.msra.mxu0 0.0
        %3059 = vmatprep.subr.mxu0 0.0
        %3060 = vmatpush1.msra.mxu0 0.0
        %3061 = vmatprep.subr.mxu0 0.0
        %3062 = vmatpush1.msra.mxu0 0.0
        %3063 = vmatprep.subr.mxu0 0.0
        %3064 = vmatpush1.msra.mxu0 0.0
        %3065 = vmatprep.subr.mxu0 0.0
        %3066 = vmatpush1.msra.mxu0 0.0
        %3067 = vmatprep.subr.mxu0 0.0
        %3068 = vmatpush1.msra.mxu0 0.0
        %3069 = vmatprep.subr.mxu0 0.0
        %3070 = vmatpush1.msra.mxu0 0.0
        %3071 = vmatprep.subr.mxu0 0.0
        %3072 = vmatpush1.msra.mxu0 0.0
        %3073 = vmatprep.subr.mxu0 0.0
        %3074 = vmatpush1.msra.mxu0 0.0
        %3075 = vmatprep.subr.mxu0 0.0
        %3076 = vmatpush1.msra.mxu0 0.0
        %3077 = vmatprep.subr.mxu0 0.0
        %3078 = vmatpush1.msra.mxu0 0.0
        %3079 = vmatprep.subr.mxu0 0.0
        %3080 = vmatpush1.msra.mxu0 0.0
        %3081 = vmatprep.subr.mxu0 0.0
        %3082 = vmatpush1.msra.mxu0 0.0
        %3083 = vmatprep.subr.mxu0 0.0
        %3084 = vmatpush1.msra.mxu0 0.0
        %3085 = vmatprep.mubr.f32.mxu0 0.0
        %3086 = vmatmul.mubr.f32.gmra.mrb[0].mxu0 %v3019
        %v3087 = vpop.f32.mrb[0].mxu0
        %v3088 = vadd.f32 0.0, %v3087
        %v3089 = vpop.f32.mrb[0].mxu0
        %3090 = vdwg.mxu0
        %v3092 = vsel %vm2637, %v2721, 0
        %3094 = vmatprep.subr.mxu0 0.0
        %3095 = vmatpush1.msra.mxu0 %v1885
        %3096 = vmatprep.subr.mxu0 0.0
        %3097 = vmatpush1.msra.mxu0 0.0
        %3098 = vmatprep.subr.mxu0 0.0
        %3099 = vmatpush1.msra.mxu0 0.0
        %3100 = vmatprep.subr.mxu0 0.0
        %3101 = vmatpush1.msra.mxu0 0.0
        %3102 = vmatprep.subr.mxu0 0.0
        %3103 = vmatpush1.msra.mxu0 0.0
        %3104 = vmatprep.subr.mxu0 0.0
        %3105 = vmatpush1.msra.mxu0 0.0
        %3106 = vmatprep.subr.mxu0 0.0
        %3107 = vmatpush1.msra.mxu0 0.0
        %3108 = vmatprep.subr.mxu0 0.0
        %3109 = vmatpush1.msra.mxu0 0.0
        %3110 = vmatprep.subr.mxu0 0.0
        %3111 = vmatpush1.msra.mxu0 0.0
        %3112 = vmatprep.subr.mxu0 0.0
        %3113 = vmatpush1.msra.mxu0 0.0
        %3114 = vmatprep.subr.mxu0 0.0
        %3115 = vmatpush1.msra.mxu0 0.0
        %3116 = vmatprep.subr.mxu0 0.0
        %3117 = vmatpush1.msra.mxu0 0.0
        %3118 = vmatprep.subr.mxu0 0.0
        %3119 = vmatpush1.msra.mxu0 0.0
        %3120 = vmatprep.subr.mxu0 0.0
        %3121 = vmatpush1.msra.mxu0 0.0
        %3122 = vmatprep.subr.mxu0 0.0
        %3123 = vmatpush1.msra.mxu0 0.0
        %3124 = vmatprep.subr.mxu0 0.0
        %3125 = vmatpush1.msra.mxu0 0.0
        %3126 = vmatprep.subr.mxu0 0.0
        %3127 = vmatpush1.msra.mxu0 0.0
        %3128 = vmatprep.subr.mxu0 0.0
        %3129 = vmatpush1.msra.mxu0 0.0
        %3130 = vmatprep.subr.mxu0 0.0
        %3131 = vmatpush1.msra.mxu0 0.0
        %3132 = vmatprep.subr.mxu0 0.0
        %3133 = vmatpush1.msra.mxu0 0.0
        %3134 = vmatprep.subr.mxu0 0.0
        %3135 = vmatpush1.msra.mxu0 0.0
        %3136 = vmatprep.subr.mxu0 0.0
        %3137 = vmatpush1.msra.mxu0 0.0
        %3138 = vmatprep.subr.mxu0 0.0
        %3139 = vmatpush1.msra.mxu0 0.0
        %3140 = vmatprep.subr.mxu0 0.0
        %3141 = vmatpush1.msra.mxu0 0.0
        %3142 = vmatprep.subr.mxu0 0.0
        %3143 = vmatpush1.msra.mxu0 0.0
        %3144 = vmatprep.subr.mxu0 0.0
        %3145 = vmatpush1.msra.mxu0 0.0
        %3146 = vmatprep.subr.mxu0 0.0
        %3147 = vmatpush1.msra.mxu0 0.0
        %3148 = vmatprep.subr.mxu0 0.0
        %3149 = vmatpush1.msra.mxu0 0.0
        %3150 = vmatprep.subr.mxu0 0.0
        %3151 = vmatpush1.msra.mxu0 0.0
        %3152 = vmatprep.subr.mxu0 0.0
        %3153 = vmatpush1.msra.mxu0 0.0
        %3154 = vmatprep.subr.mxu0 0.0
        %3155 = vmatpush1.msra.mxu0 0.0
        %3156 = vmatprep.subr.mxu0 0.0
        %3157 = vmatpush1.msra.mxu0 0.0
        %3158 = vmatprep.mubr.f32.mxu0 0.0
        %3159 = vmatmul.mubr.f32.gmra.mrb[0].mxu0 %v3092
        %v3160 = vpop.f32.mrb[0].mxu0
        %v3161 = vadd.f32 0.0, %v3160
        %v3162 = vpop.f32.mrb[0].mxu0
        %3163 = vdwg.mxu0
        %v3165 = vsel %vm2637, %v2723, 0
        %3167 = vmatprep.subr.mxu0 0.0
        %3168 = vmatpush1.msra.mxu0 %v1955
        %3169 = vmatprep.subr.mxu0 0.0
        %3170 = vmatpush1.msra.mxu0 0.0
        %3171 = vmatprep.subr.mxu0 0.0
        %3172 = vmatpush1.msra.mxu0 0.0
        %3173 = vmatprep.subr.mxu0 0.0
        %3174 = vmatpush1.msra.mxu0 0.0
        %3175 = vmatprep.subr.mxu0 0.0
        %3176 = vmatpush1.msra.mxu0 0.0
        %3177 = vmatprep.subr.mxu0 0.0
        %3178 = vmatpush1.msra.mxu0 0.0
        %3179 = vmatprep.subr.mxu0 0.0
        %3180 = vmatpush1.msra.mxu0 0.0
        %3181 = vmatprep.subr.mxu0 0.0
        %3182 = vmatpush1.msra.mxu0 0.0
        %3183 = vmatprep.subr.mxu0 0.0
        %3184 = vmatpush1.msra.mxu0 0.0
        %3185 = vmatprep.subr.mxu0 0.0
        %3186 = vmatpush1.msra.mxu0 0.0
        %3187 = vmatprep.subr.mxu0 0.0
        %3188 = vmatpush1.msra.mxu0 0.0
        %3189 = vmatprep.subr.mxu0 0.0
        %3190 = vmatpush1.msra.mxu0 0.0
        %3191 = vmatprep.subr.mxu0 0.0
        %3192 = vmatpush1.msra.mxu0 0.0
        %3193 = vmatprep.subr.mxu0 0.0
        %3194 = vmatpush1.msra.mxu0 0.0
        %3195 = vmatprep.subr.mxu0 0.0
        %3196 = vmatpush1.msra.mxu0 0.0
        %3197 = vmatprep.subr.mxu0 0.0
        %3198 = vmatpush1.msra.mxu0 0.0
        %3199 = vmatprep.subr.mxu0 0.0
        %3200 = vmatpush1.msra.mxu0 0.0
        %3201 = vmatprep.subr.mxu0 0.0
        %3202 = vmatpush1.msra.mxu0 0.0
        %3203 = vmatprep.subr.mxu0 0.0
        %3204 = vmatpush1.msra.mxu0 0.0
        %3205 = vmatprep.subr.mxu0 0.0
        %3206 = vmatpush1.msra.mxu0 0.0
        %3207 = vmatprep.subr.mxu0 0.0
        %3208 = vmatpush1.msra.mxu0 0.0
        %3209 = vmatprep.subr.mxu0 0.0
        %3210 = vmatpush1.msra.mxu0 0.0
        %3211 = vmatprep.subr.mxu0 0.0
        %3212 = vmatpush1.msra.mxu0 0.0
        %3213 = vmatprep.subr.mxu0 0.0
        %3214 = vmatpush1.msra.mxu0 0.0
        %3215 = vmatprep.subr.mxu0 0.0
        %3216 = vmatpush1.msra.mxu0 0.0
        %3217 = vmatprep.subr.mxu0 0.0
        %3218 = vmatpush1.msra.mxu0 0.0
        %3219 = vmatprep.subr.mxu0 0.0
        %3220 = vmatpush1.msra.mxu0 0.0
        %3221 = vmatprep.subr.mxu0 0.0
        %3222 = vmatpush1.msra.mxu0 0.0
        %3223 = vmatprep.subr.mxu0 0.0
        %3224 = vmatpush1.msra.mxu0 0.0
        %3225 = vmatprep.subr.mxu0 0.0
        %3226 = vmatpush1.msra.mxu0 0.0
        %3227 = vmatprep.subr.mxu0 0.0
        %3228 = vmatpush1.msra.mxu0 0.0
        %3229 = vmatprep.subr.mxu0 0.0
        %3230 = vmatpush1.msra.mxu0 0.0
        %3231 = vmatprep.mubr.f32.mxu0 0.0
        %3232 = vmatmul.mubr.f32.gmra.mrb[0].mxu0 %v3165
        %v3233 = vpop.f32.mrb[0].mxu0
        %v3234 = vadd.f32 0.0, %v3233
        %v3235 = vpop.f32.mrb[0].mxu0
        %3236 = vdwg.mxu0
        %v3238 = vsel %vm2637, %v2725, 0
        %3240 = vmatprep.subr.mxu0 0.0
        %3241 = vmatpush1.msra.mxu0 %v2025
        %3242 = vmatprep.subr.mxu0 0.0
        %3243 = vmatpush1.msra.mxu0 0.0
        %3244 = vmatprep.subr.mxu0 0.0
        %3245 = vmatpush1.msra.mxu0 0.0
        %3246 = vmatprep.subr.mxu0 0.0
        %3247 = vmatpush1.msra.mxu0 0.0
        %3248 = vmatprep.subr.mxu0 0.0
        %3249 = vmatpush1.msra.mxu0 0.0
        %3250 = vmatprep.subr.mxu0 0.0
        %3251 = vmatpush1.msra.mxu0 0.0
        %3252 = vmatprep.subr.mxu0 0.0
        %3253 = vmatpush1.msra.mxu0 0.0
        %3254 = vmatprep.subr.mxu0 0.0
        %3255 = vmatpush1.msra.mxu0 0.0
        %3256 = vmatprep.subr.mxu0 0.0
        %3257 = vmatpush1.msra.mxu0 0.0
        %3258 = vmatprep.subr.mxu0 0.0
        %3259 = vmatpush1.msra.mxu0 0.0
        %3260 = vmatprep.subr.mxu0 0.0
        %3261 = vmatpush1.msra.mxu0 0.0
        %3262 = vmatprep.subr.mxu0 0.0
        %3263 = vmatpush1.msra.mxu0 0.0
        %3264 = vmatprep.subr.mxu0 0.0
        %3265 = vmatpush1.msra.mxu0 0.0
        %3266 = vmatprep.subr.mxu0 0.0
        %3267 = vmatpush1.msra.mxu0 0.0
        %3268 = vmatprep.subr.mxu0 0.0
        %3269 = vmatpush1.msra.mxu0 0.0
        %3270 = vmatprep.subr.mxu0 0.0
        %3271 = vmatpush1.msra.mxu0 0.0
        %3272 = vmatprep.subr.mxu0 0.0
        %3273 = vmatpush1.msra.mxu0 0.0
        %3274 = vmatprep.subr.mxu0 0.0
        %3275 = vmatpush1.msra.mxu0 0.0
        %3276 = vmatprep.subr.mxu0 0.0
        %3277 = vmatpush1.msra.mxu0 0.0
        %3278 = vmatprep.subr.mxu0 0.0
        %3279 = vmatpush1.msra.mxu0 0.0
        %3280 = vmatprep.subr.mxu0 0.0
        %3281 = vmatpush1.msra.mxu0 0.0
        %3282 = vmatprep.subr.mxu0 0.0
        %3283 = vmatpush1.msra.mxu0 0.0
        %3284 = vmatprep.subr.mxu0 0.0
        %3285 = vmatpush1.msra.mxu0 0.0
        %3286 = vmatprep.subr.mxu0 0.0
        %3287 = vmatpush1.msra.mxu0 0.0
        %3288 = vmatprep.subr.mxu0 0.0
        %3289 = vmatpush1.msra.mxu0 0.0
        %3290 = vmatprep.subr.mxu0 0.0
        %3291 = vmatpush1.msra.mxu0 0.0
        %3292 = vmatprep.subr.mxu0 0.0
        %3293 = vmatpush1.msra.mxu0 0.0
        %3294 = vmatprep.subr.mxu0 0.0
        %3295 = vmatpush1.msra.mxu0 0.0
        %3296 = vmatprep.subr.mxu0 0.0
        %3297 = vmatpush1.msra.mxu0 0.0
        %3298 = vmatprep.subr.mxu0 0.0
        %3299 = vmatpush1.msra.mxu0 0.0
        %3300 = vmatprep.subr.mxu0 0.0
        %3301 = vmatpush1.msra.mxu0 0.0
        %3302 = vmatprep.subr.mxu0 0.0
        %3303 = vmatpush1.msra.mxu0 0.0
        %3304 = vmatprep.mubr.f32.mxu0 0.0
        %3305 = vmatmul.mubr.f32.gmra.mrb[0].mxu0 %v3238
        %v3306 = vpop.f32.mrb[0].mxu0
        %v3307 = vadd.f32 0.0, %v3306
        %v3308 = vpop.f32.mrb[0].mxu0
        %3309 = vdwg.mxu0
        %v3310 = vld [vmem:[%s4] sm:$0xf]
        %v3311 = vld [vmem:[%s4 + $0x4] sm:$0xf]
        %v3312 = vld [vmem:[%s4 + $0x8] sm:$0xf]
        %v3313 = vld [vmem:[%s4 + $0xc] sm:$0xf]
        %v3314 = vld [vmem:[%s4 + $0x10] sm:$0xf]
        %v3315 = vld [vmem:[%s4 + $0x14] sm:$0xf]
        %v3316 = vld [vmem:[%s4 + $0x18] sm:$0xf]
        %v3317 = vld [vmem:[%s4 + $0x1c] sm:$0xf]
        %v3319 = vsel %vm2028, %v2796, 0
        %vm3321 = vcmask 1043456
        %v3323 = vsel %vm3321, %v3310, 0
        %3325 = vmatprep.subr.mxu0 0.0
        %3326 = vmatpush1.msra.mxu0 %v3323
        %3327 = vmatprep.subr.mxu0 0.0
        %3328 = vmatpush1.msra.mxu0 0.0
        %3329 = vmatprep.subr.mxu0 0.0
        %3330 = vmatpush1.msra.mxu0 0.0
        %3331 = vmatprep.subr.mxu0 0.0
        %3332 = vmatpush1.msra.mxu0 0.0
        %3333 = vmatprep.subr.mxu0 0.0
        %3334 = vmatpush1.msra.mxu0 0.0
        %3335 = vmatprep.subr.mxu0 0.0
        %3336 = vmatpush1.msra.mxu0 0.0
        %3337 = vmatprep.subr.mxu0 0.0
        %3338 = vmatpush1.msra.mxu0 0.0
        %3339 = vmatprep.subr.mxu0 0.0
        %3340 = vmatpush1.msra.mxu0 0.0
        %3341 = vmatprep.subr.mxu0 0.0
        %3342 = vmatpush1.msra.mxu0 0.0
        %3343 = vmatprep.subr.mxu0 0.0
        %3344 = vmatpush1.msra.mxu0 0.0
        %3345 = vmatprep.subr.mxu0 0.0
        %3346 = vmatpush1.msra.mxu0 0.0
        %3347 = vmatprep.subr.mxu0 0.0
        %3348 = vmatpush1.msra.mxu0 0.0
        %3349 = vmatprep.subr.mxu0 0.0
        %3350 = vmatpush1.msra.mxu0 0.0
        %3351 = vmatprep.subr.mxu0 0.0
        %3352 = vmatpush1.msra.mxu0 0.0
        %3353 = vmatprep.subr.mxu0 0.0
        %3354 = vmatpush1.msra.mxu0 0.0
        %3355 = vmatprep.subr.mxu0 0.0
        %3356 = vmatpush1.msra.mxu0 0.0
        %3357 = vmatprep.subr.mxu0 0.0
        %3358 = vmatpush1.msra.mxu0 0.0
        %3359 = vmatprep.subr.mxu0 0.0
        %3360 = vmatpush1.msra.mxu0 0.0
        %3361 = vmatprep.subr.mxu0 0.0
        %3362 = vmatpush1.msra.mxu0 0.0
        %3363 = vmatprep.subr.mxu0 0.0
        %3364 = vmatpush1.msra.mxu0 0.0
        %3365 = vmatprep.subr.mxu0 0.0
        %3366 = vmatpush1.msra.mxu0 0.0
        %3367 = vmatprep.subr.mxu0 0.0
        %3368 = vmatpush1.msra.mxu0 0.0
        %3369 = vmatprep.subr.mxu0 0.0
        %3370 = vmatpush1.msra.mxu0 0.0
        %3371 = vmatprep.subr.mxu0 0.0
        %3372 = vmatpush1.msra.mxu0 0.0
        %3373 = vmatprep.subr.mxu0 0.0
        %3374 = vmatpush1.msra.mxu0 0.0
        %3375 = vmatprep.subr.mxu0 0.0
        %3376 = vmatpush1.msra.mxu0 0.0
        %3377 = vmatprep.subr.mxu0 0.0
        %3378 = vmatpush1.msra.mxu0 0.0
        %3379 = vmatprep.subr.mxu0 0.0
        %3380 = vmatpush1.msra.mxu0 0.0
        %3381 = vmatprep.subr.mxu0 0.0
        %3382 = vmatpush1.msra.mxu0 0.0
        %3383 = vmatprep.subr.mxu0 0.0
        %3384 = vmatpush1.msra.mxu0 0.0
        %3385 = vmatprep.subr.mxu0 0.0
        %3386 = vmatpush1.msra.mxu0 0.0
        %3387 = vmatprep.subr.mxu0 0.0
        %3388 = vmatpush1.msra.mxu0 0.0
        %3389 = vmatprep.mubr.f32.mxu0 0.0
        %3390 = vmatmul.mubr.f32.gmra.mrb[0].mxu0 %v3319
        %v3391 = vpop.f32.mrb[0].mxu0
        %v3392 = vadd.f32 0.0, %v3391
        %v3393 = vpop.f32.mrb[0].mxu0
        %3394 = vdwg.mxu0
        %v3396 = vsel %vm2028, %v2869, 0
        %v3399 = vsel %vm3321, %v3311, 0
        %3401 = vmatprep.subr.mxu0 0.0
        %3402 = vmatpush1.msra.mxu0 %v3399
        %3403 = vmatprep.subr.mxu0 0.0
        %3404 = vmatpush1.msra.mxu0 0.0
        %3405 = vmatprep.subr.mxu0 0.0
        %3406 = vmatpush1.msra.mxu0 0.0
        %3407 = vmatprep.subr.mxu0 0.0
        %3408 = vmatpush1.msra.mxu0 0.0
        %3409 = vmatprep.subr.mxu0 0.0
        %3410 = vmatpush1.msra.mxu0 0.0
        %3411 = vmatprep.subr.mxu0 0.0
        %3412 = vmatpush1.msra.mxu0 0.0
        %3413 = vmatprep.subr.mxu0 0.0
        %3414 = vmatpush1.msra.mxu0 0.0
        %3415 = vmatprep.subr.mxu0 0.0
        %3416 = vmatpush1.msra.mxu0 0.0
        %3417 = vmatprep.subr.mxu0 0.0
        %3418 = vmatpush1.msra.mxu0 0.0
        %3419 = vmatprep.subr.mxu0 0.0
        %3420 = vmatpush1.msra.mxu0 0.0
        %3421 = vmatprep.subr.mxu0 0.0
        %3422 = vmatpush1.msra.mxu0 0.0
        %3423 = vmatprep.subr.mxu0 0.0
        %3424 = vmatpush1.msra.mxu0 0.0
        %3425 = vmatprep.subr.mxu0 0.0
        %3426 = vmatpush1.msra.mxu0 0.0
        %3427 = vmatprep.subr.mxu0 0.0
        %3428 = vmatpush1.msra.mxu0 0.0
        %3429 = vmatprep.subr.mxu0 0.0
        %3430 = vmatpush1.msra.mxu0 0.0
        %3431 = vmatprep.subr.mxu0 0.0
        %3432 = vmatpush1.msra.mxu0 0.0
        %3433 = vmatprep.subr.mxu0 0.0
        %3434 = vmatpush1.msra.mxu0 0.0
        %3435 = vmatprep.subr.mxu0 0.0
        %3436 = vmatpush1.msra.mxu0 0.0
        %3437 = vmatprep.subr.mxu0 0.0
        %3438 = vmatpush1.msra.mxu0 0.0
        %3439 = vmatprep.subr.mxu0 0.0
        %3440 = vmatpush1.msra.mxu0 0.0
        %3441 = vmatprep.subr.mxu0 0.0
        %3442 = vmatpush1.msra.mxu0 0.0
        %3443 = vmatprep.subr.mxu0 0.0
        %3444 = vmatpush1.msra.mxu0 0.0
        %3445 = vmatprep.subr.mxu0 0.0
        %3446 = vmatpush1.msra.mxu0 0.0
        %3447 = vmatprep.subr.mxu0 0.0
        %3448 = vmatpush1.msra.mxu0 0.0
        %3449 = vmatprep.subr.mxu0 0.0
        %3450 = vmatpush1.msra.mxu0 0.0
        %3451 = vmatprep.subr.mxu0 0.0
        %3452 = vmatpush1.msra.mxu0 0.0
        %3453 = vmatprep.subr.mxu0 0.0
        %3454 = vmatpush1.msra.mxu0 0.0
        %3455 = vmatprep.subr.mxu0 0.0
        %3456 = vmatpush1.msra.mxu0 0.0
        %3457 = vmatprep.subr.mxu0 0.0
        %3458 = vmatpush1.msra.mxu0 0.0
        %3459 = vmatprep.subr.mxu0 0.0
        %3460 = vmatpush1.msra.mxu0 0.0
        %3461 = vmatprep.subr.mxu0 0.0
        %3462 = vmatpush1.msra.mxu0 0.0
        %3463 = vmatprep.subr.mxu0 0.0
        %3464 = vmatpush1.msra.mxu0 0.0
        %3465 = vmatprep.mubr.f32.mxu0 0.0
        %3466 = vmatmul.mubr.f32.gmra.mrb[0].mxu0 %v3396
        %v3467 = vpop.f32.mrb[0].mxu0
        %v3468 = vadd.f32 0.0, %v3467
        %v3469 = vpop.f32.mrb[0].mxu0
        %3470 = vdwg.mxu0
        %v3472 = vsel %vm2028, %v2942, 0
        %v3475 = vsel %vm3321, %v3312, 0
        %3477 = vmatprep.subr.mxu0 0.0
        %3478 = vmatpush1.msra.mxu0 %v3475
        %3479 = vmatprep.subr.mxu0 0.0
        %3480 = vmatpush1.msra.mxu0 0.0
        %3481 = vmatprep.subr.mxu0 0.0
        %3482 = vmatpush1.msra.mxu0 0.0
        %3483 = vmatprep.subr.mxu0 0.0
        %3484 = vmatpush1.msra.mxu0 0.0
        %3485 = vmatprep.subr.mxu0 0.0
        %3486 = vmatpush1.msra.mxu0 0.0
        %3487 = vmatprep.subr.mxu0 0.0
        %3488 = vmatpush1.msra.mxu0 0.0
        %3489 = vmatprep.subr.mxu0 0.0
        %3490 = vmatpush1.msra.mxu0 0.0
        %3491 = vmatprep.subr.mxu0 0.0
        %3492 = vmatpush1.msra.mxu0 0.0
        %3493 = vmatprep.subr.mxu0 0.0
        %3494 = vmatpush1.msra.mxu0 0.0
        %3495 = vmatprep.subr.mxu0 0.0
        %3496 = vmatpush1.msra.mxu0 0.0
        %3497 = vmatprep.subr.mxu0 0.0
        %3498 = vmatpush1.msra.mxu0 0.0
        %3499 = vmatprep.subr.mxu0 0.0
        %3500 = vmatpush1.msra.mxu0 0.0
        %3501 = vmatprep.subr.mxu0 0.0
        %3502 = vmatpush1.msra.mxu0 0.0
        %3503 = vmatprep.subr.mxu0 0.0
        %3504 = vmatpush1.msra.mxu0 0.0
        %3505 = vmatprep.subr.mxu0 0.0
        %3506 = vmatpush1.msra.mxu0 0.0
        %3507 = vmatprep.subr.mxu0 0.0
        %3508 = vmatpush1.msra.mxu0 0.0
        %3509 = vmatprep.subr.mxu0 0.0
        %3510 = vmatpush1.msra.mxu0 0.0
        %3511 = vmatprep.subr.mxu0 0.0
        %3512 = vmatpush1.msra.mxu0 0.0
        %3513 = vmatprep.subr.mxu0 0.0
        %3514 = vmatpush1.msra.mxu0 0.0
        %3515 = vmatprep.subr.mxu0 0.0
        %3516 = vmatpush1.msra.mxu0 0.0
        %3517 = vmatprep.subr.mxu0 0.0
        %3518 = vmatpush1.msra.mxu0 0.0
        %3519 = vmatprep.subr.mxu0 0.0
        %3520 = vmatpush1.msra.mxu0 0.0
        %3521 = vmatprep.subr.mxu0 0.0
        %3522 = vmatpush1.msra.mxu0 0.0
        %3523 = vmatprep.subr.mxu0 0.0
        %3524 = vmatpush1.msra.mxu0 0.0
        %3525 = vmatprep.subr.mxu0 0.0
        %3526 = vmatpush1.msra.mxu0 0.0
        %3527 = vmatprep.subr.mxu0 0.0
        %3528 = vmatpush1.msra.mxu0 0.0
        %3529 = vmatprep.subr.mxu0 0.0
        %3530 = vmatpush1.msra.mxu0 0.0
        %3531 = vmatprep.subr.mxu0 0.0
        %3532 = vmatpush1.msra.mxu0 0.0
        %3533 = vmatprep.subr.mxu0 0.0
        %3534 = vmatpush1.msra.mxu0 0.0
        %3535 = vmatprep.subr.mxu0 0.0
        %3536 = vmatpush1.msra.mxu0 0.0
        %3537 = vmatprep.subr.mxu0 0.0
        %3538 = vmatpush1.msra.mxu0 0.0
        %3539 = vmatprep.subr.mxu0 0.0
        %3540 = vmatpush1.msra.mxu0 0.0
        %3541 = vmatprep.mubr.f32.mxu0 0.0
        %3542 = vmatmul.mubr.f32.gmra.mrb[0].mxu0 %v3472
        %v3543 = vpop.f32.mrb[0].mxu0
        %v3544 = vadd.f32 0.0, %v3543
        %v3545 = vpop.f32.mrb[0].mxu0
        %3546 = vdwg.mxu0
        %v3548 = vsel %vm2028, %v3015, 0
        %v3551 = vsel %vm3321, %v3313, 0
        %3553 = vmatprep.subr.mxu0 0.0
        %3554 = vmatpush1.msra.mxu0 %v3551
        %3555 = vmatprep.subr.mxu0 0.0
        %3556 = vmatpush1.msra.mxu0 0.0
        %3557 = vmatprep.subr.mxu0 0.0
        %3558 = vmatpush1.msra.mxu0 0.0
        %3559 = vmatprep.subr.mxu0 0.0
        %3560 = vmatpush1.msra.mxu0 0.0
        %3561 = vmatprep.subr.mxu0 0.0
        %3562 = vmatpush1.msra.mxu0 0.0
        %3563 = vmatprep.subr.mxu0 0.0
        %3564 = vmatpush1.msra.mxu0 0.0
        %3565 = vmatprep.subr.mxu0 0.0
        %3566 = vmatpush1.msra.mxu0 0.0
        %3567 = vmatprep.subr.mxu0 0.0
        %3568 = vmatpush1.msra.mxu0 0.0
        %3569 = vmatprep.subr.mxu0 0.0
        %3570 = vmatpush1.msra.mxu0 0.0
        %3571 = vmatprep.subr.mxu0 0.0
        %3572 = vmatpush1.msra.mxu0 0.0
        %3573 = vmatprep.subr.mxu0 0.0
        %3574 = vmatpush1.msra.mxu0 0.0
        %3575 = vmatprep.subr.mxu0 0.0
        %3576 = vmatpush1.msra.mxu0 0.0
        %3577 = vmatprep.subr.mxu0 0.0
        %3578 = vmatpush1.msra.mxu0 0.0
        %3579 = vmatprep.subr.mxu0 0.0
        %3580 = vmatpush1.msra.mxu0 0.0
        %3581 = vmatprep.subr.mxu0 0.0
        %3582 = vmatpush1.msra.mxu0 0.0
        %3583 = vmatprep.subr.mxu0 0.0
        %3584 = vmatpush1.msra.mxu0 0.0
        %3585 = vmatprep.subr.mxu0 0.0
        %3586 = vmatpush1.msra.mxu0 0.0
        %3587 = vmatprep.subr.mxu0 0.0
        %3588 = vmatpush1.msra.mxu0 0.0
        %3589 = vmatprep.subr.mxu0 0.0
        %3590 = vmatpush1.msra.mxu0 0.0
        %3591 = vmatprep.subr.mxu0 0.0
        %3592 = vmatpush1.msra.mxu0 0.0
        %3593 = vmatprep.subr.mxu0 0.0
        %3594 = vmatpush1.msra.mxu0 0.0
        %3595 = vmatprep.subr.mxu0 0.0
        %3596 = vmatpush1.msra.mxu0 0.0
        %3597 = vmatprep.subr.mxu0 0.0
        %3598 = vmatpush1.msra.mxu0 0.0
        %3599 = vmatprep.subr.mxu0 0.0
        %3600 = vmatpush1.msra.mxu0 0.0
        %3601 = vmatprep.subr.mxu0 0.0
        %3602 = vmatpush1.msra.mxu0 0.0
        %3603 = vmatprep.subr.mxu0 0.0
        %3604 = vmatpush1.msra.mxu0 0.0
        %3605 = vmatprep.subr.mxu0 0.0
        %3606 = vmatpush1.msra.mxu0 0.0
        %3607 = vmatprep.subr.mxu0 0.0
        %3608 = vmatpush1.msra.mxu0 0.0
        %3609 = vmatprep.subr.mxu0 0.0
        %3610 = vmatpush1.msra.mxu0 0.0
        %3611 = vmatprep.subr.mxu0 0.0
        %3612 = vmatpush1.msra.mxu0 0.0
        %3613 = vmatprep.subr.mxu0 0.0
        %3614 = vmatpush1.msra.mxu0 0.0
        %3615 = vmatprep.subr.mxu0 0.0
        %3616 = vmatpush1.msra.mxu0 0.0
        %3617 = vmatprep.mubr.f32.mxu0 0.0
        %3618 = vmatmul.mubr.f32.gmra.mrb[0].mxu0 %v3548
        %v3619 = vpop.f32.mrb[0].mxu0
        %v3620 = vadd.f32 0.0, %v3619
        %v3621 = vpop.f32.mrb[0].mxu0
        %3622 = vdwg.mxu0
        %v3624 = vsel %vm2028, %v3088, 0
        %v3627 = vsel %vm3321, %v3314, 0
        %3629 = vmatprep.subr.mxu0 0.0
        %3630 = vmatpush1.msra.mxu0 %v3627
        %3631 = vmatprep.subr.mxu0 0.0
        %3632 = vmatpush1.msra.mxu0 0.0
        %3633 = vmatprep.subr.mxu0 0.0
        %3634 = vmatpush1.msra.mxu0 0.0
        %3635 = vmatprep.subr.mxu0 0.0
        %3636 = vmatpush1.msra.mxu0 0.0
        %3637 = vmatprep.subr.mxu0 0.0
        %3638 = vmatpush1.msra.mxu0 0.0
        %3639 = vmatprep.subr.mxu0 0.0
        %3640 = vmatpush1.msra.mxu0 0.0
        %3641 = vmatprep.subr.mxu0 0.0
        %3642 = vmatpush1.msra.mxu0 0.0
        %3643 = vmatprep.subr.mxu0 0.0
        %3644 = vmatpush1.msra.mxu0 0.0
        %3645 = vmatprep.subr.mxu0 0.0
        %3646 = vmatpush1.msra.mxu0 0.0
        %3647 = vmatprep.subr.mxu0 0.0
        %3648 = vmatpush1.msra.mxu0 0.0
        %3649 = vmatprep.subr.mxu0 0.0
        %3650 = vmatpush1.msra.mxu0 0.0
        %3651 = vmatprep.subr.mxu0 0.0
        %3652 = vmatpush1.msra.mxu0 0.0
        %3653 = vmatprep.subr.mxu0 0.0
        %3654 = vmatpush1.msra.mxu0 0.0
        %3655 = vmatprep.subr.mxu0 0.0
        %3656 = vmatpush1.msra.mxu0 0.0
        %3657 = vmatprep.subr.mxu0 0.0
        %3658 = vmatpush1.msra.mxu0 0.0
        %3659 = vmatprep.subr.mxu0 0.0
        %3660 = vmatpush1.msra.mxu0 0.0
        %3661 = vmatprep.subr.mxu0 0.0
        %3662 = vmatpush1.msra.mxu0 0.0
        %3663 = vmatprep.subr.mxu0 0.0
        %3664 = vmatpush1.msra.mxu0 0.0
        %3665 = vmatprep.subr.mxu0 0.0
        %3666 = vmatpush1.msra.mxu0 0.0
        %3667 = vmatprep.subr.mxu0 0.0
        %3668 = vmatpush1.msra.mxu0 0.0
        %3669 = vmatprep.subr.mxu0 0.0
        %3670 = vmatpush1.msra.mxu0 0.0
        %3671 = vmatprep.subr.mxu0 0.0
        %3672 = vmatpush1.msra.mxu0 0.0
        %3673 = vmatprep.subr.mxu0 0.0
        %3674 = vmatpush1.msra.mxu0 0.0
        %3675 = vmatprep.subr.mxu0 0.0
        %3676 = vmatpush1.msra.mxu0 0.0
        %3677 = vmatprep.subr.mxu0 0.0
        %3678 = vmatpush1.msra.mxu0 0.0
        %3679 = vmatprep.subr.mxu0 0.0
        %3680 = vmatpush1.msra.mxu0 0.0
        %3681 = vmatprep.subr.mxu0 0.0
        %3682 = vmatpush1.msra.mxu0 0.0
        %3683 = vmatprep.subr.mxu0 0.0
        %3684 = vmatpush1.msra.mxu0 0.0
        %3685 = vmatprep.subr.mxu0 0.0
        %3686 = vmatpush1.msra.mxu0 0.0
        %3687 = vmatprep.subr.mxu0 0.0
        %3688 = vmatpush1.msra.mxu0 0.0
        %3689 = vmatprep.subr.mxu0 0.0
        %3690 = vmatpush1.msra.mxu0 0.0
        %3691 = vmatprep.subr.mxu0 0.0
        %3692 = vmatpush1.msra.mxu0 0.0
        %3693 = vmatprep.mubr.f32.mxu0 0.0
        %3694 = vmatmul.mubr.f32.gmra.mrb[0].mxu0 %v3624
        %v3695 = vpop.f32.mrb[0].mxu0
        %v3696 = vadd.f32 0.0, %v3695
        %v3697 = vpop.f32.mrb[0].mxu0
        %3698 = vdwg.mxu0
        %v3700 = vsel %vm2028, %v3161, 0
        %v3703 = vsel %vm3321, %v3315, 0
        %3705 = vmatprep.subr.mxu0 0.0
        %3706 = vmatpush1.msra.mxu0 %v3703
        %3707 = vmatprep.subr.mxu0 0.0
        %3708 = vmatpush1.msra.mxu0 0.0
        %3709 = vmatprep.subr.mxu0 0.0
        %3710 = vmatpush1.msra.mxu0 0.0
        %3711 = vmatprep.subr.mxu0 0.0
        %3712 = vmatpush1.msra.mxu0 0.0
        %3713 = vmatprep.subr.mxu0 0.0
        %3714 = vmatpush1.msra.mxu0 0.0
        %3715 = vmatprep.subr.mxu0 0.0
        %3716 = vmatpush1.msra.mxu0 0.0
        %3717 = vmatprep.subr.mxu0 0.0
        %3718 = vmatpush1.msra.mxu0 0.0
        %3719 = vmatprep.subr.mxu0 0.0
        %3720 = vmatpush1.msra.mxu0 0.0
        %3721 = vmatprep.subr.mxu0 0.0
        %3722 = vmatpush1.msra.mxu0 0.0
        %3723 = vmatprep.subr.mxu0 0.0
        %3724 = vmatpush1.msra.mxu0 0.0
        %3725 = vmatprep.subr.mxu0 0.0
        %3726 = vmatpush1.msra.mxu0 0.0
        %3727 = vmatprep.subr.mxu0 0.0
        %3728 = vmatpush1.msra.mxu0 0.0
        %3729 = vmatprep.subr.mxu0 0.0
        %3730 = vmatpush1.msra.mxu0 0.0
        %3731 = vmatprep.subr.mxu0 0.0
        %3732 = vmatpush1.msra.mxu0 0.0
        %3733 = vmatprep.subr.mxu0 0.0
        %3734 = vmatpush1.msra.mxu0 0.0
        %3735 = vmatprep.subr.mxu0 0.0
        %3736 = vmatpush1.msra.mxu0 0.0
        %3737 = vmatprep.subr.mxu0 0.0
        %3738 = vmatpush1.msra.mxu0 0.0
        %3739 = vmatprep.subr.mxu0 0.0
        %3740 = vmatpush1.msra.mxu0 0.0
        %3741 = vmatprep.subr.mxu0 0.0
        %3742 = vmatpush1.msra.mxu0 0.0
        %3743 = vmatprep.subr.mxu0 0.0
        %3744 = vmatpush1.msra.mxu0 0.0
        %3745 = vmatprep.subr.mxu0 0.0
        %3746 = vmatpush1.msra.mxu0 0.0
        %3747 = vmatprep.subr.mxu0 0.0
        %3748 = vmatpush1.msra.mxu0 0.0
        %3749 = vmatprep.subr.mxu0 0.0
        %3750 = vmatpush1.msra.mxu0 0.0
        %3751 = vmatprep.subr.mxu0 0.0
        %3752 = vmatpush1.msra.mxu0 0.0
        %3753 = vmatprep.subr.mxu0 0.0
        %3754 = vmatpush1.msra.mxu0 0.0
        %3755 = vmatprep.subr.mxu0 0.0
        %3756 = vmatpush1.msra.mxu0 0.0
        %3757 = vmatprep.subr.mxu0 0.0
        %3758 = vmatpush1.msra.mxu0 0.0
        %3759 = vmatprep.subr.mxu0 0.0
        %3760 = vmatpush1.msra.mxu0 0.0
        %3761 = vmatprep.subr.mxu0 0.0
        %3762 = vmatpush1.msra.mxu0 0.0
        %3763 = vmatprep.subr.mxu0 0.0
        %3764 = vmatpush1.msra.mxu0 0.0
        %3765 = vmatprep.subr.mxu0 0.0
        %3766 = vmatpush1.msra.mxu0 0.0
        %3767 = vmatprep.subr.mxu0 0.0
        %3768 = vmatpush1.msra.mxu0 0.0
        %3769 = vmatprep.mubr.f32.mxu0 0.0
        %3770 = vmatmul.mubr.f32.gmra.mrb[0].mxu0 %v3700
        %v3771 = vpop.f32.mrb[0].mxu0
        %v3772 = vadd.f32 0.0, %v3771
        %v3773 = vpop.f32.mrb[0].mxu0
        %3774 = vdwg.mxu0
        %v3776 = vsel %vm2028, %v3234, 0
        %v3779 = vsel %vm3321, %v3316, 0
        %3781 = vmatprep.subr.mxu0 0.0
        %3782 = vmatpush1.msra.mxu0 %v3779
        %3783 = vmatprep.subr.mxu0 0.0
        %3784 = vmatpush1.msra.mxu0 0.0
        %3785 = vmatprep.subr.mxu0 0.0
        %3786 = vmatpush1.msra.mxu0 0.0
        %3787 = vmatprep.subr.mxu0 0.0
        %3788 = vmatpush1.msra.mxu0 0.0
        %3789 = vmatprep.subr.mxu0 0.0
        %3790 = vmatpush1.msra.mxu0 0.0
        %3791 = vmatprep.subr.mxu0 0.0
        %3792 = vmatpush1.msra.mxu0 0.0
        %3793 = vmatprep.subr.mxu0 0.0
        %3794 = vmatpush1.msra.mxu0 0.0
        %3795 = vmatprep.subr.mxu0 0.0
        %3796 = vmatpush1.msra.mxu0 0.0
        %3797 = vmatprep.subr.mxu0 0.0
        %3798 = vmatpush1.msra.mxu0 0.0
        %3799 = vmatprep.subr.mxu0 0.0
        %3800 = vmatpush1.msra.mxu0 0.0
        %3801 = vmatprep.subr.mxu0 0.0
        %3802 = vmatpush1.msra.mxu0 0.0
        %3803 = vmatprep.subr.mxu0 0.0
        %3804 = vmatpush1.msra.mxu0 0.0
        %3805 = vmatprep.subr.mxu0 0.0
        %3806 = vmatpush1.msra.mxu0 0.0
        %3807 = vmatprep.subr.mxu0 0.0
        %3808 = vmatpush1.msra.mxu0 0.0
        %3809 = vmatprep.subr.mxu0 0.0
        %3810 = vmatpush1.msra.mxu0 0.0
        %3811 = vmatprep.subr.mxu0 0.0
        %3812 = vmatpush1.msra.mxu0 0.0
        %3813 = vmatprep.subr.mxu0 0.0
        %3814 = vmatpush1.msra.mxu0 0.0
        %3815 = vmatprep.subr.mxu0 0.0
        %3816 = vmatpush1.msra.mxu0 0.0
        %3817 = vmatprep.subr.mxu0 0.0
        %3818 = vmatpush1.msra.mxu0 0.0
        %3819 = vmatprep.subr.mxu0 0.0
        %3820 = vmatpush1.msra.mxu0 0.0
        %3821 = vmatprep.subr.mxu0 0.0
        %3822 = vmatpush1.msra.mxu0 0.0
        %3823 = vmatprep.subr.mxu0 0.0
        %3824 = vmatpush1.msra.mxu0 0.0
        %3825 = vmatprep.subr.mxu0 0.0
        %3826 = vmatpush1.msra.mxu0 0.0
        %3827 = vmatprep.subr.mxu0 0.0
        %3828 = vmatpush1.msra.mxu0 0.0
        %3829 = vmatprep.subr.mxu0 0.0
        %3830 = vmatpush1.msra.mxu0 0.0
        %3831 = vmatprep.subr.mxu0 0.0
        %3832 = vmatpush1.msra.mxu0 0.0
        %3833 = vmatprep.subr.mxu0 0.0
        %3834 = vmatpush1.msra.mxu0 0.0
        %3835 = vmatprep.subr.mxu0 0.0
        %3836 = vmatpush1.msra.mxu0 0.0
        %3837 = vmatprep.subr.mxu0 0.0
        %3838 = vmatpush1.msra.mxu0 0.0
        %3839 = vmatprep.subr.mxu0 0.0
        %3840 = vmatpush1.msra.mxu0 0.0
        %3841 = vmatprep.subr.mxu0 0.0
        %3842 = vmatpush1.msra.mxu0 0.0
        %3843 = vmatprep.subr.mxu0 0.0
        %3844 = vmatpush1.msra.mxu0 0.0
        %3845 = vmatprep.mubr.f32.mxu0 0.0
        %3846 = vmatmul.mubr.f32.gmra.mrb[0].mxu0 %v3776
        %v3847 = vpop.f32.mrb[0].mxu0
        %v3848 = vadd.f32 0.0, %v3847
        %v3849 = vpop.f32.mrb[0].mxu0
        %3850 = vdwg.mxu0
        %v3852 = vsel %vm2028, %v3307, 0
        %v3855 = vsel %vm3321, %v3317, 0
        %3857 = vmatprep.subr.mxu0 0.0
        %3858 = vmatpush1.msra.mxu0 %v3855
        %3859 = vmatprep.subr.mxu0 0.0
        %3860 = vmatpush1.msra.mxu0 0.0
        %3861 = vmatprep.subr.mxu0 0.0
        %3862 = vmatpush1.msra.mxu0 0.0
        %3863 = vmatprep.subr.mxu0 0.0
        %3864 = vmatpush1.msra.mxu0 0.0
        %3865 = vmatprep.subr.mxu0 0.0
        %3866 = vmatpush1.msra.mxu0 0.0
        %3867 = vmatprep.subr.mxu0 0.0
        %3868 = vmatpush1.msra.mxu0 0.0
        %3869 = vmatprep.subr.mxu0 0.0
        %3870 = vmatpush1.msra.mxu0 0.0
        %3871 = vmatprep.subr.mxu0 0.0
        %3872 = vmatpush1.msra.mxu0 0.0
        %3873 = vmatprep.subr.mxu0 0.0
        %3874 = vmatpush1.msra.mxu0 0.0
        %3875 = vmatprep.subr.mxu0 0.0
        %3876 = vmatpush1.msra.mxu0 0.0
        %3877 = vmatprep.subr.mxu0 0.0
        %3878 = vmatpush1.msra.mxu0 0.0
        %3879 = vmatprep.subr.mxu0 0.0
        %3880 = vmatpush1.msra.mxu0 0.0
        %3881 = vmatprep.subr.mxu0 0.0
        %3882 = vmatpush1.msra.mxu0 0.0
        %3883 = vmatprep.subr.mxu0 0.0
        %3884 = vmatpush1.msra.mxu0 0.0
        %3885 = vmatprep.subr.mxu0 0.0
        %3886 = vmatpush1.msra.mxu0 0.0
        %3887 = vmatprep.subr.mxu0 0.0
        %3888 = vmatpush1.msra.mxu0 0.0
        %3889 = vmatprep.subr.mxu0 0.0
        %3890 = vmatpush1.msra.mxu0 0.0
        %3891 = vmatprep.subr.mxu0 0.0
        %3892 = vmatpush1.msra.mxu0 0.0
        %3893 = vmatprep.subr.mxu0 0.0
        %3894 = vmatpush1.msra.mxu0 0.0
        %3895 = vmatprep.subr.mxu0 0.0
        %3896 = vmatpush1.msra.mxu0 0.0
        %3897 = vmatprep.subr.mxu0 0.0
        %3898 = vmatpush1.msra.mxu0 0.0
        %3899 = vmatprep.subr.mxu0 0.0
        %3900 = vmatpush1.msra.mxu0 0.0
        %3901 = vmatprep.subr.mxu0 0.0
        %3902 = vmatpush1.msra.mxu0 0.0
        %3903 = vmatprep.subr.mxu0 0.0
        %3904 = vmatpush1.msra.mxu0 0.0
        %3905 = vmatprep.subr.mxu0 0.0
        %3906 = vmatpush1.msra.mxu0 0.0
        %3907 = vmatprep.subr.mxu0 0.0
        %3908 = vmatpush1.msra.mxu0 0.0
        %3909 = vmatprep.subr.mxu0 0.0
        %3910 = vmatpush1.msra.mxu0 0.0
        %3911 = vmatprep.subr.mxu0 0.0
        %3912 = vmatpush1.msra.mxu0 0.0
        %3913 = vmatprep.subr.mxu0 0.0
        %3914 = vmatpush1.msra.mxu0 0.0
        %3915 = vmatprep.subr.mxu0 0.0
        %3916 = vmatpush1.msra.mxu0 0.0
        %3917 = vmatprep.subr.mxu0 0.0
        %3918 = vmatpush1.msra.mxu0 0.0
        %3919 = vmatprep.subr.mxu0 0.0
        %3920 = vmatpush1.msra.mxu0 0.0
        %3921 = vmatprep.mubr.f32.mxu0 0.0
        %3922 = vmatmul.mubr.f32.gmra.mrb[0].mxu0 %v3852
        %v3923 = vpop.f32.mrb[0].mxu0
        %v3924 = vadd.f32 0.0, %v3923
        %v3925 = vpop.f32.mrb[0].mxu0
        %3926 = vdwg.mxu0
        %v3927 = vsel %vm280, %v3392, 0.0
        %v3928 = vsel %vm280, %v3468, 0.0
        %v3929 = vadd.f32 %v3927, %v3928
        %v3930 = vsel %vm280, %v3544, 0.0
        %v3931 = vadd.f32 %v3929, %v3930
        %v3932 = vsel %vm280, %v3620, 0.0
        %v3933 = vadd.f32 %v3931, %v3932
        %v3934 = vsel %vm280, %v3696, 0.0
        %v3935 = vadd.f32 %v3933, %v3934
        %v3936 = vsel %vm280, %v3772, 0.0
        %v3937 = vadd.f32 %v3935, %v3936
        %v3938 = vsel %vm280, %v3848, 0.0
        %v3939 = vadd.f32 %v3937, %v3938
        %v3940 = vsel %vm280, %v3924, 0.0
        %v3941 = vadd.f32 %v3939, %v3940
        %v3942 = vld [vmem:[%s5] sm:$0x1]
        %v3944 = vlaneseq
        %v3945 = vshrl.u32 %v3944, 7
        %v3946 = vsub.s32 0, %v3945
        %v3947 = vrot.slane %v3942, %v3946
        %v3949 = vadd.f32 %v3941, %v3947
        %3950 = vst.msk [vmem:[%s242] sm:$0xff] %vm280, %v3949
        %s3951 = sand.u32 %s159, 1
        %s3952 = scalar_lea.sflag [#allocation3], %s3951
        %s3953 = sand.u32 %s159, 1
        %s3954 = smul.addr %s3953, 8
        %s3955 = scalar_lea.vmem [#allocation2], %s3954
        // Predicated region
        $region45: #{tpu_custom_call.1} parent=43 // pred_check
          %p3956 = pneg %p169
        $region46: #{tpu_custom_call.1} parent=43 // pred_check_branch
          %3958 = sbr.rel (%p3956) target = $region48
        $region47: #{tpu_custom_call.1} parent=43 // pred_region
          %s3960 = ssub.s32 128, 128
          %3961 = vsyncadd %s3952, %s3960
          %s3962 = smul.addr %s20, 128
          %s3963 = scalar_lea.hbm %s6, %s3962
          %s3965 = sshll.u32 %s3955, 4
          %s3966 = int_to_ptr.vmem [resolvable:$true] %s3965
          %3968 = dma.vmem_to_hbm [thread:$0]  %s3966, 128, %s3963, %s3952
        $region48: #{tpu_custom_call.1} parent=43 // pred_fallthru
          _
      $region44: #{tpu_custom_call.1} parent=5 // pred_fallthru
        _
      %p3969 = scmp.le.s32.totalorder 2, %s15
      // Predicated region
      $region49: #{tpu_custom_call.1} parent=5 // pred_check
        %p3970 = pneg %p3969
      $region50: #{tpu_custom_call.1} parent=5 // pred_check_branch
        %3972 = sbr.rel (%p3970) target = $region52
      $region51: #{tpu_custom_call.1} parent=5 // pred_region
        %s3973 = ssub.s32 %s15, 2
        // Predicated region
        $region53: #{tpu_custom_call.1} parent=51 // pred_check
          %p3974 = pneg %p175
        $region54: #{tpu_custom_call.1} parent=51 // pred_check_branch
          %3976 = sbr.rel (%p3974) target = $region56
        $region55: #{tpu_custom_call.1} parent=51 // pred_region
          %s3977 = sand.u32 %s160, 1
          %s3978 = scalar_lea.sflag [#allocation3], %s3977
          %s3979 = sand.u32 %s160, 1
          %s3980 = smul.addr %s3979, 8
          %s3981 = scalar_lea.vmem [#allocation2], %s3980
          %3982 = dma.done %s3978, 128
        $region56: #{tpu_custom_call.1} parent=51 // pred_fallthru
          _
      $region52: #{tpu_custom_call.1} parent=5 // pred_fallthru
        _
    $region6: #{tpu_custom_call.1} parent=1 // loop_footer
      %s19 = sadd.s32 1, %s15
    $region7: #{tpu_custom_call.1} parent=1 // loop_footer_branch
      %14 = sbr.rel target = $region3
    $region8: #{tpu_custom_call.1} parent=1 // loop_exit
      _
    %3983 = vsyncpa [#allocation3], 1
    %s3984 = scalar_lea.sflag [#allocation3], 1
    %3985 = vsyncpa %s3984, 1

</llo_original>
